<compile_context>
chip_gen: v7x
topology: tpu7x:2x2x1
jax: 0.10.0
libtpu: 0.0.40
codegen_flags: <defaults>
</compile_context>

<pallas_src>
import numpy as np

import jax
import jax.numpy as jnp
from jax import lax
from jax.experimental import pallas as pl
from jax.experimental.pallas import tpu as pltpu

EPS = 1e-5
NEG = -1.0e30        # finite "-inf" for max-pool padding (bf16-safe, 0*NEG = 0)

# Model hyper-parameters (consistent with LeNet.__init__):
#   input_size=28 -> first_channels=1 ; filter_size=3 -> n=4 ; pool_type='max'
NFILTERS = 8
NCLASSES = 10
LINEAR = 32
INPUT_SIZE = 28
BATCH = 2


# -----------------------------------------------------------------------------
# In-kernel helpers (traced inside the Pallas kernel)
# -----------------------------------------------------------------------------
def _roll_lanes(a, s):
    """y[:, p] = a[:, (p + s) mod P]  --  XLU lane rotation (roll by -s)."""
    p = a.shape[-1]
    k = (-s) % p
    if k == 0:
        return a
    return pltpu.roll(a, shift=k, axis=1)


def _conv1_block(a, wp, wc_ref, sc_ref, bi_ref, am_ref):
    """Cin==1 conv3x3 as 9 broadcast FMAs on the VPU (MXU would be <1% full).

    a: (1, hp*wp) f32 zero-padded flat input.  Returns (Cout, hp*wp) f32 with
    BN(eval)+ReLU applied and ~-inf at every non-valid-center lane.
    """
    w = wc_ref[...]                                    # (Cout, 9) f32
    z = None
    k = 0
    for di in range(3):
        for dj in range(3):
            s = (di - 1) * wp + (dj - 1)
            tap = a if s == 0 else _roll_lanes(a, s)   # (1, P)
            term = w[:, k:k + 1] * tap                 # (Cout,1)*(1,P)->(Cout,P)
            z = term if z is None else z + term
            k += 1
    return jnp.maximum(z * sc_ref[...] + bi_ref[...], 0.0) + am_ref[...]


def _conv_block(a, wp, wc_ref, sc_ref, bi_ref, am_ref):
    """Conv3x3(pad=1, no bias) + BN(eval) + ReLU as one MXU GEMM.

    a: (Cin, hp*wp) f32, zero-padded flat activations (channel on sublanes,
    flat padded pixel on lanes).  The 9 im2col taps are lane rotations; any
    wrapped lane lands on a border position that am_ref later sets to ~-inf,
    so the circular wrap never contaminates a valid center.
    """
    taps = [a if (di == 1 and dj == 1) else _roll_lanes(a, (di - 1) * wp + (dj - 1))
            for di in range(3) for dj in range(3)]
    col = jnp.concatenate(taps, axis=0).astype(jnp.bfloat16)    # (9*Cin, P)
    z = jnp.dot(wc_ref[...], col, preferred_element_type=jnp.float32)
    # fused BatchNorm(eval) + ReLU, then ~-inf at non-valid-center lanes so the
    # separable max below implements MaxPool2d(kernel=3, stride=2, padding=1).
    return jnp.maximum(z * sc_ref[...] + bi_ref[...], 0.0) + am_ref[...]


def _maxpool3(z, wp):
    """Separable 3x3 max over the NEG-padded flat grid (XLU rolls + VPU max)."""
    v = jnp.maximum(jnp.maximum(_roll_lanes(z, -wp), z), _roll_lanes(z, wp))
    return jnp.maximum(jnp.maximum(_roll_lanes(v, -1), v), _roll_lanes(v, 1))


def _pool_and_select(z, wp, sel_ref):
    """MaxPool(3,2,1) + stride-2 downsample + zero re-pad as one 0/1 GEMM."""
    m = _maxpool3(z, wp)
    # sel is exactly 0/1 and NEG is finite, so NEG lanes contribute exact zeros.
    return jnp.dot(m.astype(jnp.bfloat16), sel_ref[...],
                   preferred_element_type=jnp.float32)


def _lenet_kernel(x_ref,
                  wc1, sc1, bi1, am1, sel1,
                  wc2, sc2, bi2, am2, sel2,
                  wc3, sc3, bi3, am3,
                  wbig, msk, rmat, b1, w2, b2,
                  o_ref):
    f32 = jnp.float32

    # ---- first_layers: 3x (conv3x3 + BN + ReLU + MaxPool(3,2,1)) ----
    a = x_ref[0]                                          # (1, 30*30) f32
    z = _conv1_block(a, 30, wc1, sc1, bi1, am1)           # (8, 900)
    a = _pool_and_select(z, 30, sel1)                     # (8, 16*16)

    z = _conv_block(a, 16, wc2, sc2, bi2, am2)            # (8, 256)
    a = _pool_and_select(z, 16, sel2)                     # (8, 9*9)

    z = _conv_block(a, 9, wc3, sc3, bi3, am3)             # (8, 81)
    m = _maxpool3(z, 9)                                   # (8, 81)

    # ---- layer-3 downsample + NCHW flatten + Linear1(+BN1d) in one GEMM ----
    # wbig[src, c*L+l] = W1fold[l, c*16 + pool_idx(src)]  (0 for non-centers)
    p = jnp.dot(m.astype(jnp.bfloat16), wbig[...],
                preferred_element_type=f32)               # (8, NFILTERS*LINEAR)
    # keep each channel's own LINEAR-wide block (diag mask), reduce channels,
    # then regroup the lane blocks with a constant 0/1 matrix.
    s = jnp.sum(p * msk[...], axis=0, keepdims=True)      # (1, NFILTERS*LINEAR)
    h1 = jnp.dot(s, rmat[...], preferred_element_type=f32) + b1[...]
    h1 = jnp.maximum(h1, 0.0)                             # (1, LINEAR)

    # ---- last_layers tail: Dropout(id) -> Linear2 ----
    o_ref[0] = jnp.dot(h1, w2[...], preferred_element_type=f32) + b2[...]
    # TODO(synk): eval-mode forward only (Dropout = identity, BatchNorm uses
    #             running statistics); training-mode batch-stats not implemented.


# -----------------------------------------------------------------------------
# Host-side glue: one-time parameter repacking + the single-kernel forward
# -----------------------------------------------------------------------------
def prepare_params(p):
    """One-time repack of the module parameters into kernel-ready arrays."""
    def fold_bn(g, b, rm, rv):
        s = np.asarray(g, np.float32) / np.sqrt(np.asarray(rv, np.float32) + EPS)
        return s, np.asarray(b, np.float32) - np.asarray(rm, np.float32) * s

    def pack_conv(w, g, b, rm, rv, dtype):
        w = np.asarray(w, np.float32)
        cout, cin = w.shape[0], w.shape[1]
        # torch (Cout,Cin,kh,kw) -> (Cout, 9*Cin), column (kh*3+kw)*Cin + ci
        wmat = w.transpose(2, 3, 1, 0).reshape(9 * cin, cout).T
        s, bias = fold_bn(g, b, rm, rv)
        return (jnp.asarray(wmat, dtype=dtype),
                jnp.asarray(s.reshape(cout, 1)),
                jnp.asarray(bias.reshape(cout, 1)))

    def neg_mask(h, w):
        hp, wp = h + 2, w + 2
        am = np.full((hp, wp), NEG, np.float32)
        am[1:h + 1, 1:w + 1] = 0.0                    # 0 at valid conv centers
        return jnp.asarray(am.reshape(1, hp * wp))

    def pool_sel(h, w):
        # flat padded (h+2,w+2) -> flat zero-padded (ho+2,wo+2); picks the
        # stride-2 odd/odd pool centers, zero columns give the re-pad border.
        hp, wp = h + 2, w + 2
        ho, wo = (h - 1) // 2 + 1, (w - 1) // 2 + 1
        hq, wq = ho + 2, wo + 2
        sel = np.zeros((hp * wp, hq * wq), np.float32)
        for i in range(ho):
            for j in range(wo):
                sel[(2 * i + 1) * wp + 2 * j + 1, (i + 1) * wq + j + 1] = 1.0
        return jnp.asarray(sel, dtype=jnp.bfloat16)

    wc1, sc1, bi1 = pack_conv(p["w_c1"], p["g_c1"], p["b_c1"], p["rm_c1"], p["rv_c1"],
                              jnp.float32)            # layer 1 stays f32 (VPU path)
    wc2, sc2, bi2 = pack_conv(p["w_c2"], p["g_c2"], p["b_c2"], p["rm_c2"], p["rv_c2"],
                              jnp.bfloat16)
    wc3, sc3, bi3 = pack_conv(p["w_c3"], p["g_c3"], p["b_c3"], p["rm_c3"], p["rv_c3"],
                              jnp.bfloat16)
    am1, am2, am3 = neg_mask(28, 28), neg_mask(14, 14), neg_mask(7, 7)
    sel1, sel2 = pool_sel(28, 28), pool_sel(14, 14)

    # Layer-3 maxpool downsample + NCHW flatten + Linear1 (BN1d folded) as one
    # (81, NFILTERS*LINEAR) 0/1-structured weight matrix + diag mask + regroup.
    s1, sh1 = fold_bn(p["g_l1"], p["b_l1"], p["rm_l1"], p["rv_l1"])
    w1f = np.asarray(p["w1"], np.float32) * s1[:, None]      # (LINEAR, 128)
    wbig = np.zeros((9 * 9, NFILTERS * LINEAR), np.float32)
    for c in range(NFILTERS):
        for i in range(4):
            for j in range(4):
                src = (2 * i + 1) * 9 + (2 * j + 1)
                wbig[src, c * LINEAR:(c + 1) * LINEAR] = w1f[:, c * 16 + i * 4 + j]
    msk = np.zeros((NFILTERS, NFILTERS * LINEAR), np.float32)
    rmat = np.zeros((NFILTERS * LINEAR, LINEAR), np.float32)
    for c in range(NFILTERS):
        msk[c, c * LINEAR:(c + 1) * LINEAR] = 1.0
        rmat[np.arange(LINEAR) + c * LINEAR, np.arange(LINEAR)] = 1.0

    b1 = (np.asarray(p["b1"], np.float32) * s1 + sh1).reshape(1, LINEAR)
    w2 = np.asarray(p["w2"], np.float32).T                   # (LINEAR, NCLASSES)
    b2 = np.asarray(p["b2"], np.float32).reshape(1, NCLASSES)

    return (wc1, sc1, bi1, am1, sel1,
            wc2, sc2, bi2, am2, sel2,
            wc3, sc3, bi3, am3,
            jnp.asarray(wbig, dtype=jnp.bfloat16), jnp.asarray(msk),
            jnp.asarray(rmat), jnp.asarray(b1), jnp.asarray(w2), jnp.asarray(b2))


def lenet_forward(x, kparams):
    """Forward pass: one pallas_call, grid=(batch,) marked parallel."""
    n = x.shape[0]
    pw = (INPUT_SIZE + 2) ** 2
    # zero-pad 28x28 -> 30x30 and flatten per sample in the wrapper (one cheap
    # XLA op) so the kernel never builds the padded layout from row slices.
    xp = jnp.pad(x[:, 0], ((0, 0), (1, 1), (1, 1))).reshape(n, 1, pw)

    param_specs = [pl.BlockSpec(a.shape, lambda b, nd=a.ndim: (0,) * nd)
                   for a in kparams]
    out = pl.pallas_call(
        _lenet_kernel,
        out_shape=jax.ShapeDtypeStruct((n, 1, NCLASSES), jnp.float32),
        grid=(n,),
        in_specs=[pl.BlockSpec((1, 1, pw), lambda b: (b, 0, 0))] + param_specs,
        out_specs=pl.BlockSpec((1, 1, NCLASSES), lambda b: (b, 0, 0)),
        compiler_params=pltpu.CompilerParams(dimension_semantics=("parallel",)),
    )(xp, *kparams)
    return out.reshape(n, NCLASSES)


# -----------------------------------------------------------------------------
# Pure-JAX reference (independent check of the kernel)
# -----------------------------------------------------------------------------
def lenet_reference(x, p):
    def conv_bn_relu(y, w, g, b, rm, rv):
        y = lax.conv_general_dilated(y, w, (1, 1), ((1, 1), (1, 1)),
                                     dimension_numbers=("NCHW", "OIHW", "NCHW"))
        s = g / jnp.sqrt(rv + EPS)
        y = y * s[None, :, None, None] + (b - rm * s)[None, :, None, None]
        return jnp.maximum(y, 0.0)

    def maxpool(y):
        return lax.reduce_window(y, -jnp.inf, lax.max, (1, 1, 3, 3), (1, 1, 2, 2),
                                 ((0, 0), (0, 0), (1, 1), (1, 1)))

    y = maxpool(conv_bn_relu(x, p["w_c1"], p["g_c1"], p["b_c1"], p["rm_c1"], p["rv_c1"]))
    y = maxpool(conv_bn_relu(y, p["w_c2"], p["g_c2"], p["b_c2"], p["rm_c2"], p["rv_c2"]))
    y = maxpool(conv_bn_relu(y, p["w_c3"], p["g_c3"], p["b_c3"], p["rm_c3"], p["rv_c3"]))
    yf = y.reshape(y.shape[0], -1)
    s1 = p["g_l1"] / jnp.sqrt(p["rv_l1"] + EPS)
    h = jnp.maximum((yf @ p["w1"].T + p["b1"] - p["rm_l1"]) * s1 + p["b_l1"], 0.0)
    return h @ p["w2"].T + p["b2"]


# -----------------------------------------------------------------------------
# Deterministic parameter init (shapes follow the module's __init__)
# -----------------------------------------------------------------------------
def init_params(key):
    ks = jax.random.split(key, 32)
    it = iter(ks)

    def uni(shape, bound):
        return jax.random.uniform(next(it), shape, jnp.float32, -bound, bound)

    def bn(c):
        g = 1.0 + 0.1 * jax.random.uniform(next(it), (c,), jnp.float32)
        b = 0.1 * jax.random.uniform(next(it), (c,), jnp.float32, -1.0, 1.0)
        rm = 0.1 * jax.random.uniform(next(it), (c,), jnp.float32, -1.0, 1.0)
        rv = 1.0 + 0.1 * jax.random.uniform(next(it), (c,), jnp.float32)
        return g, b, rm, rv

    p = {}
    p["w_c1"] = uni((NFILTERS, 1, 3, 3), (1 * 9) ** -0.5)
    p["g_c1"], p["b_c1"], p["rm_c1"], p["rv_c1"] = bn(NFILTERS)
    p["w_c2"] = uni((NFILTERS, NFILTERS, 3, 3), (NFILTERS * 9) ** -0.5)
    p["g_c2"], p["b_c2"], p["rm_c2"], p["rv_c2"] = bn(NFILTERS)
    p["w_c3"] = uni((NFILTERS, NFILTERS, 3, 3), (NFILTERS * 9) ** -0.5)
    p["g_c3"], p["b_c3"], p["rm_c3"], p["rv_c3"] = bn(NFILTERS)

    in_feat = NFILTERS * 4 * 4
    p["w1"] = uni((LINEAR, in_feat), in_feat ** -0.5)
    p["b1"] = uni((LINEAR,), in_feat ** -0.5)
    p["g_l1"], p["b_l1"], p["rm_l1"], p["rv_l1"] = bn(LINEAR)
    p["w2"] = uni((NCLASSES, LINEAR), LINEAR ** -0.5)
    p["b2"] = uni((NCLASSES,), LINEAR ** -0.5)
    return p


if __name__ == "__main__":
    key = jax.random.PRNGKey(0)
    pkey, xkey = jax.random.split(key)
    params = init_params(pkey)
    kparams = prepare_params(params)
    x = jax.random.normal(xkey, (BATCH, 1, INPUT_SIZE, INPUT_SIZE), jnp.float32)

    fwd = jax.jit(lenet_forward)
    logits = jax.block_until_ready(fwd(x, kparams))

    assert logits.shape == (BATCH, NCLASSES), logits.shape
    assert bool(jnp.all(jnp.isfinite(logits)))
    ref = lenet_reference(x, params)
    err = float(jnp.max(jnp.abs(logits - ref)))
    assert err < 0.1, f"max |kernel - reference| = {err}"
    print("KERNEL_OK")
</pallas_src>

<mosaic_0001>
module attributes {stable_mosaic.version = 11 : i64} {
  func.func @_lenet_kernel(%arg0: i32, %arg1: memref<1x1x900xf32, #tpu.memory_space<vmem>>, %arg2: memref<8x9xf32, #tpu.memory_space<vmem>>, %arg3: memref<8x1xf32, #tpu.memory_space<vmem>>, %arg4: memref<8x1xf32, #tpu.memory_space<vmem>>, %arg5: memref<1x900xf32, #tpu.memory_space<vmem>>, %arg6: memref<900x256xbf16, #tpu.memory_space<vmem>>, %arg7: memref<8x72xbf16, #tpu.memory_space<vmem>>, %arg8: memref<8x1xf32, #tpu.memory_space<vmem>>, %arg9: memref<8x1xf32, #tpu.memory_space<vmem>>, %arg10: memref<1x256xf32, #tpu.memory_space<vmem>>, %arg11: memref<256x81xbf16, #tpu.memory_space<vmem>>, %arg12: memref<8x72xbf16, #tpu.memory_space<vmem>>, %arg13: memref<8x1xf32, #tpu.memory_space<vmem>>, %arg14: memref<8x1xf32, #tpu.memory_space<vmem>>, %arg15: memref<1x81xf32, #tpu.memory_space<vmem>>, %arg16: memref<81x256xbf16, #tpu.memory_space<vmem>>, %arg17: memref<8x256xf32, #tpu.memory_space<vmem>>, %arg18: memref<256x32xf32, #tpu.memory_space<vmem>>, %arg19: memref<1x32xf32, #tpu.memory_space<vmem>>, %arg20: memref<32x10xf32, #tpu.memory_space<vmem>>, %arg21: memref<1x10xf32, #tpu.memory_space<vmem>>, %arg22: memref<1x1x10xf32, #tpu.memory_space<vmem>>) attributes {dimension_semantics = [#tpu.dimension_semantics<parallel>], iteration_bounds = array<i64: 2>, scalar_prefetch = 0 : i64, scratch_operands = 0 : i64, tpu.core_type = #tpu.core_type<tc>, window_params = [{transform_indices = @transform_0, window_bounds = array<i64: 1, 1, 900>}, {pipeline_mode = #tpu.pipeline_mode<synchronous>, transform_indices = @transform_1, window_bounds = array<i64: 8, 9>}, {pipeline_mode = #tpu.pipeline_mode<synchronous>, transform_indices = @transform_2, window_bounds = array<i64: 8, 1>}, {pipeline_mode = #tpu.pipeline_mode<synchronous>, transform_indices = @transform_3, window_bounds = array<i64: 8, 1>}, {pipeline_mode = #tpu.pipeline_mode<synchronous>, transform_indices = @transform_4, window_bounds = array<i64: 1, 900>}, {pipeline_mode = #tpu.pipeline_mode<synchronous>, transform_indices = @transform_5, window_bounds = array<i64: 900, 256>}, {pipeline_mode = #tpu.pipeline_mode<synchronous>, transform_indices = @transform_6, window_bounds = array<i64: 8, 72>}, {pipeline_mode = #tpu.pipeline_mode<synchronous>, transform_indices = @transform_7, window_bounds = array<i64: 8, 1>}, {pipeline_mode = #tpu.pipeline_mode<synchronous>, transform_indices = @transform_8, window_bounds = array<i64: 8, 1>}, {pipeline_mode = #tpu.pipeline_mode<synchronous>, transform_indices = @transform_9, window_bounds = array<i64: 1, 256>}, {pipeline_mode = #tpu.pipeline_mode<synchronous>, transform_indices = @transform_10, window_bounds = array<i64: 256, 81>}, {pipeline_mode = #tpu.pipeline_mode<synchronous>, transform_indices = @transform_11, window_bounds = array<i64: 8, 72>}, {pipeline_mode = #tpu.pipeline_mode<synchronous>, transform_indices = @transform_12, window_bounds = array<i64: 8, 1>}, {pipeline_mode = #tpu.pipeline_mode<synchronous>, transform_indices = @transform_13, window_bounds = array<i64: 8, 1>}, {pipeline_mode = #tpu.pipeline_mode<synchronous>, transform_indices = @transform_14, window_bounds = array<i64: 1, 81>}, {pipeline_mode = #tpu.pipeline_mode<synchronous>, transform_indices = @transform_15, window_bounds = array<i64: 81, 256>}, {pipeline_mode = #tpu.pipeline_mode<synchronous>, transform_indices = @transform_16, window_bounds = array<i64: 8, 256>}, {pipeline_mode = #tpu.pipeline_mode<synchronous>, transform_indices = @transform_17, window_bounds = array<i64: 256, 32>}, {pipeline_mode = #tpu.pipeline_mode<synchronous>, transform_indices = @transform_18, window_bounds = array<i64: 1, 32>}, {pipeline_mode = #tpu.pipeline_mode<synchronous>, transform_indices = @transform_19, window_bounds = array<i64: 32, 10>}, {pipeline_mode = #tpu.pipeline_mode<synchronous>, transform_indices = @transform_20, window_bounds = array<i64: 1, 10>}, {transform_indices = @transform_21, window_bounds = array<i64: 1, 1, 10>}]} {
    %c0 = arith.constant 0 : index
    %c0_0 = arith.constant 0 : index
    %c0_1 = arith.constant 0 : index
    %0 = vector.load %arg1[%c0, %c0_0, %c0_1] : memref<1x1x900xf32, #tpu.memory_space<vmem>>, vector<1x1x900xf32>
    %1 = vector.shape_cast %0 : vector<1x1x900xf32> to vector<1x900xf32>
    %c0_2 = arith.constant 0 : index
    %c0_3 = arith.constant 0 : index
    %2 = vector.load %arg2[%c0_2, %c0_3] : memref<8x9xf32, #tpu.memory_space<vmem>>, vector<8x9xf32>
    %c31_i32 = arith.constant 31 : i32
    %3 = tpu.dynamic_rotate %1 by %c31_i32 dim 1 : vector<1x900xf32>, i32 -> vector<1x900xf32>
    %4 = vector.extract_strided_slice %2 {offsets = [0, 0], sizes = [8, 1], strides = [1, 1]} : vector<8x9xf32> to vector<8x1xf32>
    %5 = vector.broadcast %4 : vector<8x1xf32> to vector<8x900xf32>
    %6 = vector.broadcast %3 : vector<1x900xf32> to vector<8x900xf32>
    %7 = arith.mulf %5, %6 : vector<8x900xf32>
    %c30_i32 = arith.constant 30 : i32
    %8 = tpu.dynamic_rotate %1 by %c30_i32 dim 1 : vector<1x900xf32>, i32 -> vector<1x900xf32>
    %9 = vector.extract_strided_slice %2 {offsets = [0, 1], sizes = [8, 1], strides = [1, 1]} : vector<8x9xf32> to vector<8x1xf32>
    %10 = vector.broadcast %9 : vector<8x1xf32> to vector<8x900xf32>
    %11 = vector.broadcast %8 : vector<1x900xf32> to vector<8x900xf32>
    %12 = arith.mulf %10, %11 : vector<8x900xf32>
    %13 = arith.addf %7, %12 : vector<8x900xf32>
    %c29_i32 = arith.constant 29 : i32
    %14 = tpu.dynamic_rotate %1 by %c29_i32 dim 1 : vector<1x900xf32>, i32 -> vector<1x900xf32>
    %15 = vector.extract_strided_slice %2 {offsets = [0, 2], sizes = [8, 1], strides = [1, 1]} : vector<8x9xf32> to vector<8x1xf32>
    %16 = vector.broadcast %15 : vector<8x1xf32> to vector<8x900xf32>
    %17 = vector.broadcast %14 : vector<1x900xf32> to vector<8x900xf32>
    %18 = arith.mulf %16, %17 : vector<8x900xf32>
    %19 = arith.addf %13, %18 : vector<8x900xf32>
    %c1_i32 = arith.constant 1 : i32
    %20 = tpu.dynamic_rotate %1 by %c1_i32 dim 1 : vector<1x900xf32>, i32 -> vector<1x900xf32>
    %21 = vector.extract_strided_slice %2 {offsets = [0, 3], sizes = [8, 1], strides = [1, 1]} : vector<8x9xf32> to vector<8x1xf32>
    %22 = vector.broadcast %21 : vector<8x1xf32> to vector<8x900xf32>
    %23 = vector.broadcast %20 : vector<1x900xf32> to vector<8x900xf32>
    %24 = arith.mulf %22, %23 : vector<8x900xf32>
    %25 = arith.addf %19, %24 : vector<8x900xf32>
    %26 = vector.extract_strided_slice %2 {offsets = [0, 4], sizes = [8, 1], strides = [1, 1]} : vector<8x9xf32> to vector<8x1xf32>
    %27 = vector.broadcast %26 : vector<8x1xf32> to vector<8x900xf32>
    %28 = vector.broadcast %1 : vector<1x900xf32> to vector<8x900xf32>
    %29 = arith.mulf %27, %28 : vector<8x900xf32>
    %30 = arith.addf %25, %29 : vector<8x900xf32>
    %c899_i32 = arith.constant 899 : i32
    %31 = tpu.dynamic_rotate %1 by %c899_i32 dim 1 : vector<1x900xf32>, i32 -> vector<1x900xf32>
    %32 = vector.extract_strided_slice %2 {offsets = [0, 5], sizes = [8, 1], strides = [1, 1]} : vector<8x9xf32> to vector<8x1xf32>
    %33 = vector.broadcast %32 : vector<8x1xf32> to vector<8x900xf32>
    %34 = vector.broadcast %31 : vector<1x900xf32> to vector<8x900xf32>
    %35 = arith.mulf %33, %34 : vector<8x900xf32>
    %36 = arith.addf %30, %35 : vector<8x900xf32>
    %c871_i32 = arith.constant 871 : i32
    %37 = tpu.dynamic_rotate %1 by %c871_i32 dim 1 : vector<1x900xf32>, i32 -> vector<1x900xf32>
    %38 = vector.extract_strided_slice %2 {offsets = [0, 6], sizes = [8, 1], strides = [1, 1]} : vector<8x9xf32> to vector<8x1xf32>
    %39 = vector.broadcast %38 : vector<8x1xf32> to vector<8x900xf32>
    %40 = vector.broadcast %37 : vector<1x900xf32> to vector<8x900xf32>
    %41 = arith.mulf %39, %40 : vector<8x900xf32>
    %42 = arith.addf %36, %41 : vector<8x900xf32>
    %c870_i32 = arith.constant 870 : i32
    %43 = tpu.dynamic_rotate %1 by %c870_i32 dim 1 : vector<1x900xf32>, i32 -> vector<1x900xf32>
    %44 = vector.extract_strided_slice %2 {offsets = [0, 7], sizes = [8, 1], strides = [1, 1]} : vector<8x9xf32> to vector<8x1xf32>
    %45 = vector.broadcast %44 : vector<8x1xf32> to vector<8x900xf32>
    %46 = vector.broadcast %43 : vector<1x900xf32> to vector<8x900xf32>
    %47 = arith.mulf %45, %46 : vector<8x900xf32>
    %48 = arith.addf %42, %47 : vector<8x900xf32>
    %c869_i32 = arith.constant 869 : i32
    %49 = tpu.dynamic_rotate %1 by %c869_i32 dim 1 : vector<1x900xf32>, i32 -> vector<1x900xf32>
    %50 = vector.extract_strided_slice %2 {offsets = [0, 8], sizes = [8, 1], strides = [1, 1]} : vector<8x9xf32> to vector<8x1xf32>
    %51 = vector.broadcast %50 : vector<8x1xf32> to vector<8x900xf32>
    %52 = vector.broadcast %49 : vector<1x900xf32> to vector<8x900xf32>
    %53 = arith.mulf %51, %52 : vector<8x900xf32>
    %54 = arith.addf %48, %53 : vector<8x900xf32>
    %c0_4 = arith.constant 0 : index
    %c0_5 = arith.constant 0 : index
    %55 = vector.load %arg3[%c0_4, %c0_5] : memref<8x1xf32, #tpu.memory_space<vmem>>, vector<8x1xf32>
    %56 = vector.broadcast %55 : vector<8x1xf32> to vector<8x900xf32>
    %57 = arith.mulf %54, %56 : vector<8x900xf32>
    %c0_6 = arith.constant 0 : index
    %c0_7 = arith.constant 0 : index
    %58 = vector.load %arg4[%c0_6, %c0_7] : memref<8x1xf32, #tpu.memory_space<vmem>>, vector<8x1xf32>
    %59 = vector.broadcast %58 : vector<8x1xf32> to vector<8x900xf32>
    %60 = arith.addf %57, %59 : vector<8x900xf32>
    %cst = arith.constant 0.000000e+00 : f32
    %61 = vector.broadcast %cst : f32 to vector<8x900xf32>
    %62 = arith.maximumf %60, %61 : vector<8x900xf32>
    %c0_8 = arith.constant 0 : index
    %c0_9 = arith.constant 0 : index
    %63 = vector.load %arg5[%c0_8, %c0_9] : memref<1x900xf32, #tpu.memory_space<vmem>>, vector<1x900xf32>
    %64 = vector.broadcast %63 : vector<1x900xf32> to vector<8x900xf32>
    %65 = arith.addf %62, %64 : vector<8x900xf32>
    %c30_i32_10 = arith.constant 30 : i32
    %66 = tpu.dynamic_rotate %65 by %c30_i32_10 dim 1 : vector<8x900xf32>, i32 -> vector<8x900xf32>
    %67 = arith.maximumf %66, %65 : vector<8x900xf32>
    %c870_i32_11 = arith.constant 870 : i32
    %68 = tpu.dynamic_rotate %65 by %c870_i32_11 dim 1 : vector<8x900xf32>, i32 -> vector<8x900xf32>
    %69 = arith.maximumf %67, %68 : vector<8x900xf32>
    %c1_i32_12 = arith.constant 1 : i32
    %70 = tpu.dynamic_rotate %69 by %c1_i32_12 dim 1 : vector<8x900xf32>, i32 -> vector<8x900xf32>
    %71 = arith.maximumf %70, %69 : vector<8x900xf32>
    %c899_i32_13 = arith.constant 899 : i32
    %72 = tpu.dynamic_rotate %69 by %c899_i32_13 dim 1 : vector<8x900xf32>, i32 -> vector<8x900xf32>
    %73 = arith.maximumf %71, %72 : vector<8x900xf32>
    %74 = arith.truncf %73 : vector<8x900xf32> to vector<8x900xbf16>
    %c0_14 = arith.constant 0 : index
    %c0_15 = arith.constant 0 : index
    %75 = vector.load %arg6[%c0_14, %c0_15] : memref<900x256xbf16, #tpu.memory_space<vmem>>, vector<900x256xbf16>
    %cst_16 = arith.constant dense<0.000000e+00> : vector<8x256xf32>
    %76 = tpu.matmul %74, %75, %cst_16 {dimension_numbers = #tpu.dot_dimension_numbers<[1], [0], [0], [1], [0, 0, 1, 1], [], []>} : vector<8x900xbf16>, vector<900x256xbf16>, vector<8x256xf32> -> vector<8x256xf32>
    %c17_i32 = arith.constant 17 : i32
    %77 = tpu.dynamic_rotate %76 by %c17_i32 dim 1 : vector<8x256xf32>, i32 -> vector<8x256xf32>
    %c16_i32 = arith.constant 16 : i32
    %78 = tpu.dynamic_rotate %76 by %c16_i32 dim 1 : vector<8x256xf32>, i32 -> vector<8x256xf32>
    %c15_i32 = arith.constant 15 : i32
    %79 = tpu.dynamic_rotate %76 by %c15_i32 dim 1 : vector<8x256xf32>, i32 -> vector<8x256xf32>
    %c1_i32_17 = arith.constant 1 : i32
    %80 = tpu.dynamic_rotate %76 by %c1_i32_17 dim 1 : vector<8x256xf32>, i32 -> vector<8x256xf32>
    %c255_i32 = arith.constant 255 : i32
    %81 = tpu.dynamic_rotate %76 by %c255_i32 dim 1 : vector<8x256xf32>, i32 -> vector<8x256xf32>
    %c241_i32 = arith.constant 241 : i32
    %82 = tpu.dynamic_rotate %76 by %c241_i32 dim 1 : vector<8x256xf32>, i32 -> vector<8x256xf32>
    %c240_i32 = arith.constant 240 : i32
    %83 = tpu.dynamic_rotate %76 by %c240_i32 dim 1 : vector<8x256xf32>, i32 -> vector<8x256xf32>
    %c239_i32 = arith.constant 239 : i32
    %84 = tpu.dynamic_rotate %76 by %c239_i32 dim 1 : vector<8x256xf32>, i32 -> vector<8x256xf32>
    %85 = tpu.concatenate %77, %78, %79, %80, %76, %81, %82, %83, %84 in 0 : vector<8x256xf32>, vector<8x256xf32>, vector<8x256xf32>, vector<8x256xf32>, vector<8x256xf32>, vector<8x256xf32>, vector<8x256xf32>, vector<8x256xf32>, vector<8x256xf32> -> vector<72x256xf32>
    %86 = arith.truncf %85 : vector<72x256xf32> to vector<72x256xbf16>
    %c0_18 = arith.constant 0 : index
    %c0_19 = arith.constant 0 : index
    %87 = vector.load %arg7[%c0_18, %c0_19] : memref<8x72xbf16, #tpu.memory_space<vmem>>, vector<8x72xbf16>
    %cst_20 = arith.constant dense<0.000000e+00> : vector<8x256xf32>
    %88 = tpu.matmul %87, %86, %cst_20 {dimension_numbers = #tpu.dot_dimension_numbers<[1], [0], [0], [1], [0, 0, 1, 1], [], []>} : vector<8x72xbf16>, vector<72x256xbf16>, vector<8x256xf32> -> vector<8x256xf32>
    %c0_21 = arith.constant 0 : index
    %c0_22 = arith.constant 0 : index
    %89 = vector.load %arg8[%c0_21, %c0_22] : memref<8x1xf32, #tpu.memory_space<vmem>>, vector<8x1xf32>
    %90 = vector.broadcast %89 : vector<8x1xf32> to vector<8x256xf32>
    %91 = arith.mulf %88, %90 : vector<8x256xf32>
    %c0_23 = arith.constant 0 : index
    %c0_24 = arith.constant 0 : index
    %92 = vector.load %arg9[%c0_23, %c0_24] : memref<8x1xf32, #tpu.memory_space<vmem>>, vector<8x1xf32>
    %93 = vector.broadcast %92 : vector<8x1xf32> to vector<8x256xf32>
    %94 = arith.addf %91, %93 : vector<8x256xf32>
    %cst_25 = arith.constant 0.000000e+00 : f32
    %95 = vector.broadcast %cst_25 : f32 to vector<8x256xf32>
    %96 = arith.maximumf %94, %95 : vector<8x256xf32>
    %c0_26 = arith.constant 0 : index
    %c0_27 = arith.constant 0 : index
    %97 = vector.load %arg10[%c0_26, %c0_27] : memref<1x256xf32, #tpu.memory_space<vmem>>, vector<1x256xf32>
    %98 = vector.broadcast %97 : vector<1x256xf32> to vector<8x256xf32>
    %99 = arith.addf %96, %98 : vector<8x256xf32>
    %c16_i32_28 = arith.constant 16 : i32
    %100 = tpu.dynamic_rotate %99 by %c16_i32_28 dim 1 : vector<8x256xf32>, i32 -> vector<8x256xf32>
    %101 = arith.maximumf %100, %99 : vector<8x256xf32>
    %c240_i32_29 = arith.constant 240 : i32
    %102 = tpu.dynamic_rotate %99 by %c240_i32_29 dim 1 : vector<8x256xf32>, i32 -> vector<8x256xf32>
    %103 = arith.maximumf %101, %102 : vector<8x256xf32>
    %c1_i32_30 = arith.constant 1 : i32
    %104 = tpu.dynamic_rotate %103 by %c1_i32_30 dim 1 : vector<8x256xf32>, i32 -> vector<8x256xf32>
    %105 = arith.maximumf %104, %103 : vector<8x256xf32>
    %c255_i32_31 = arith.constant 255 : i32
    %106 = tpu.dynamic_rotate %103 by %c255_i32_31 dim 1 : vector<8x256xf32>, i32 -> vector<8x256xf32>
    %107 = arith.maximumf %105, %106 : vector<8x256xf32>
    %108 = arith.truncf %107 : vector<8x256xf32> to vector<8x256xbf16>
    %c0_32 = arith.constant 0 : index
    %c0_33 = arith.constant 0 : index
    %109 = vector.load %arg11[%c0_32, %c0_33] : memref<256x81xbf16, #tpu.memory_space<vmem>>, vector<256x81xbf16>
    %cst_34 = arith.constant dense<0.000000e+00> : vector<8x81xf32>
    %110 = tpu.matmul %108, %109, %cst_34 {dimension_numbers = #tpu.dot_dimension_numbers<[1], [0], [0], [1], [0, 0, 1, 1], [], []>} : vector<8x256xbf16>, vector<256x81xbf16>, vector<8x81xf32> -> vector<8x81xf32>
    %c10_i32 = arith.constant 10 : i32
    %111 = tpu.dynamic_rotate %110 by %c10_i32 dim 1 : vector<8x81xf32>, i32 -> vector<8x81xf32>
    %c9_i32 = arith.constant 9 : i32
    %112 = tpu.dynamic_rotate %110 by %c9_i32 dim 1 : vector<8x81xf32>, i32 -> vector<8x81xf32>
    %c8_i32 = arith.constant 8 : i32
    %113 = tpu.dynamic_rotate %110 by %c8_i32 dim 1 : vector<8x81xf32>, i32 -> vector<8x81xf32>
    %c1_i32_35 = arith.constant 1 : i32
    %114 = tpu.dynamic_rotate %110 by %c1_i32_35 dim 1 : vector<8x81xf32>, i32 -> vector<8x81xf32>
    %c80_i32 = arith.constant 80 : i32
    %115 = tpu.dynamic_rotate %110 by %c80_i32 dim 1 : vector<8x81xf32>, i32 -> vector<8x81xf32>
    %c73_i32 = arith.constant 73 : i32
    %116 = tpu.dynamic_rotate %110 by %c73_i32 dim 1 : vector<8x81xf32>, i32 -> vector<8x81xf32>
    %c72_i32 = arith.constant 72 : i32
    %117 = tpu.dynamic_rotate %110 by %c72_i32 dim 1 : vector<8x81xf32>, i32 -> vector<8x81xf32>
    %c71_i32 = arith.constant 71 : i32
    %118 = tpu.dynamic_rotate %110 by %c71_i32 dim 1 : vector<8x81xf32>, i32 -> vector<8x81xf32>
    %119 = tpu.concatenate %111, %112, %113, %114, %110, %115, %116, %117, %118 in 0 : vector<8x81xf32>, vector<8x81xf32>, vector<8x81xf32>, vector<8x81xf32>, vector<8x81xf32>, vector<8x81xf32>, vector<8x81xf32>, vector<8x81xf32>, vector<8x81xf32> -> vector<72x81xf32>
    %120 = arith.truncf %119 : vector<72x81xf32> to vector<72x81xbf16>
    %c0_36 = arith.constant 0 : index
    %c0_37 = arith.constant 0 : index
    %121 = vector.load %arg12[%c0_36, %c0_37] : memref<8x72xbf16, #tpu.memory_space<vmem>>, vector<8x72xbf16>
    %cst_38 = arith.constant dense<0.000000e+00> : vector<8x81xf32>
    %122 = tpu.matmul %121, %120, %cst_38 {dimension_numbers = #tpu.dot_dimension_numbers<[1], [0], [0], [1], [0, 0, 1, 1], [], []>} : vector<8x72xbf16>, vector<72x81xbf16>, vector<8x81xf32> -> vector<8x81xf32>
    %c0_39 = arith.constant 0 : index
    %c0_40 = arith.constant 0 : index
    %123 = vector.load %arg13[%c0_39, %c0_40] : memref<8x1xf32, #tpu.memory_space<vmem>>, vector<8x1xf32>
    %124 = vector.broadcast %123 : vector<8x1xf32> to vector<8x81xf32>
    %125 = arith.mulf %122, %124 : vector<8x81xf32>
    %c0_41 = arith.constant 0 : index
    %c0_42 = arith.constant 0 : index
    %126 = vector.load %arg14[%c0_41, %c0_42] : memref<8x1xf32, #tpu.memory_space<vmem>>, vector<8x1xf32>
    %127 = vector.broadcast %126 : vector<8x1xf32> to vector<8x81xf32>
    %128 = arith.addf %125, %127 : vector<8x81xf32>
    %cst_43 = arith.constant 0.000000e+00 : f32
    %129 = vector.broadcast %cst_43 : f32 to vector<8x81xf32>
    %130 = arith.maximumf %128, %129 : vector<8x81xf32>
    %c0_44 = arith.constant 0 : index
    %c0_45 = arith.constant 0 : index
    %131 = vector.load %arg15[%c0_44, %c0_45] : memref<1x81xf32, #tpu.memory_space<vmem>>, vector<1x81xf32>
    %132 = vector.broadcast %131 : vector<1x81xf32> to vector<8x81xf32>
    %133 = arith.addf %130, %132 : vector<8x81xf32>
    %c9_i32_46 = arith.constant 9 : i32
    %134 = tpu.dynamic_rotate %133 by %c9_i32_46 dim 1 : vector<8x81xf32>, i32 -> vector<8x81xf32>
    %135 = arith.maximumf %134, %133 : vector<8x81xf32>
    %c72_i32_47 = arith.constant 72 : i32
    %136 = tpu.dynamic_rotate %133 by %c72_i32_47 dim 1 : vector<8x81xf32>, i32 -> vector<8x81xf32>
    %137 = arith.maximumf %135, %136 : vector<8x81xf32>
    %c1_i32_48 = arith.constant 1 : i32
    %138 = tpu.dynamic_rotate %137 by %c1_i32_48 dim 1 : vector<8x81xf32>, i32 -> vector<8x81xf32>
    %139 = arith.maximumf %138, %137 : vector<8x81xf32>
    %c80_i32_49 = arith.constant 80 : i32
    %140 = tpu.dynamic_rotate %137 by %c80_i32_49 dim 1 : vector<8x81xf32>, i32 -> vector<8x81xf32>
    %141 = arith.maximumf %139, %140 : vector<8x81xf32>
    %142 = arith.truncf %141 : vector<8x81xf32> to vector<8x81xbf16>
    %c0_50 = arith.constant 0 : index
    %c0_51 = arith.constant 0 : index
    %143 = vector.load %arg16[%c0_50, %c0_51] : memref<81x256xbf16, #tpu.memory_space<vmem>>, vector<81x256xbf16>
    %cst_52 = arith.constant dense<0.000000e+00> : vector<8x256xf32>
    %144 = tpu.matmul %142, %143, %cst_52 {dimension_numbers = #tpu.dot_dimension_numbers<[1], [0], [0], [1], [0, 0, 1, 1], [], []>} : vector<8x81xbf16>, vector<81x256xbf16>, vector<8x256xf32> -> vector<8x256xf32>
    %c0_53 = arith.constant 0 : index
    %c0_54 = arith.constant 0 : index
    %145 = vector.load %arg17[%c0_53, %c0_54] : memref<8x256xf32, #tpu.memory_space<vmem>>, vector<8x256xf32>
    %146 = arith.mulf %144, %145 : vector<8x256xf32>
    %cst_55 = arith.constant dense<0.000000e+00> : vector<256xf32>
    %147 = vector.multi_reduction <add>, %146, %cst_55 [0] : vector<8x256xf32> to vector<256xf32>
    %148 = vector.shape_cast %147 : vector<256xf32> to vector<1x256xf32>
    %c0_56 = arith.constant 0 : index
    %c0_57 = arith.constant 0 : index
    %149 = vector.load %arg18[%c0_56, %c0_57] : memref<256x32xf32, #tpu.memory_space<vmem>>, vector<256x32xf32>
    %cst_58 = arith.constant dense<0.000000e+00> : vector<1x32xf32>
    %150 = tpu.matmul %148, %149, %cst_58 {dimension_numbers = #tpu.dot_dimension_numbers<[1], [0], [0], [1], [0, 0, 1, 1], [], []>} : vector<1x256xf32>, vector<256x32xf32>, vector<1x32xf32> -> vector<1x32xf32>
    %c0_59 = arith.constant 0 : index
    %c0_60 = arith.constant 0 : index
    %151 = vector.load %arg19[%c0_59, %c0_60] : memref<1x32xf32, #tpu.memory_space<vmem>>, vector<1x32xf32>
    %152 = arith.addf %150, %151 : vector<1x32xf32>
    %cst_61 = arith.constant 0.000000e+00 : f32
    %153 = vector.broadcast %cst_61 : f32 to vector<1x32xf32>
    %154 = arith.maximumf %152, %153 : vector<1x32xf32>
    %c0_62 = arith.constant 0 : index
    %c0_63 = arith.constant 0 : index
    %155 = vector.load %arg20[%c0_62, %c0_63] : memref<32x10xf32, #tpu.memory_space<vmem>>, vector<32x10xf32>
    %cst_64 = arith.constant dense<0.000000e+00> : vector<1x10xf32>
    %156 = tpu.matmul %154, %155, %cst_64 {dimension_numbers = #tpu.dot_dimension_numbers<[1], [0], [0], [1], [0, 0, 1, 1], [], []>} : vector<1x32xf32>, vector<32x10xf32>, vector<1x10xf32> -> vector<1x10xf32>
    %c0_65 = arith.constant 0 : index
    %c0_66 = arith.constant 0 : index
    %157 = vector.load %arg21[%c0_65, %c0_66] : memref<1x10xf32, #tpu.memory_space<vmem>>, vector<1x10xf32>
    %158 = arith.addf %156, %157 : vector<1x10xf32>
    %c0_67 = arith.constant 0 : index
    %c0_68 = arith.constant 0 : index
    %c0_69 = arith.constant 0 : index
    %159 = vector.load %arg22[%c0_67, %c0_68, %c0_69] : memref<1x1x10xf32, #tpu.memory_space<vmem>>, vector<1x1x10xf32>
    %160 = vector.shape_cast %159 : vector<1x1x10xf32> to vector<1x10xf32>
    %161 = vector.shape_cast %158 : vector<1x10xf32> to vector<1x1x10xf32>
    tpu.vector_store %arg22[%c0_67, %c0_68, %c0_69], %161 {strides = array<i32>} : memref<1x1x10xf32, #tpu.memory_space<vmem>>, vector<1x1x10xf32>,
    return
  }
  func.func @transform_0(%arg0: i32) -> (i32, i32, i32) {
    %c0_i32 = arith.constant 0 : i32
    %c0_i32_0 = arith.constant 0 : i32
    %c0_i32_1 = arith.constant 0 : i32
    return %arg0, %c0_i32, %c0_i32_0 : i32, i32, i32
  }
  func.func @transform_1(%arg0: i32) -> (i32, i32) {
    %c0_i32 = arith.constant 0 : i32
    %c0_i32_0 = arith.constant 0 : i32
    %c0_i32_1 = arith.constant 0 : i32
    return %c0_i32, %c0_i32_0 : i32, i32
  }
  func.func @transform_2(%arg0: i32) -> (i32, i32) {
    %c0_i32 = arith.constant 0 : i32
    %c0_i32_0 = arith.constant 0 : i32
    %c0_i32_1 = arith.constant 0 : i32
    return %c0_i32, %c0_i32_0 : i32, i32
  }
  func.func @transform_3(%arg0: i32) -> (i32, i32) {
    %c0_i32 = arith.constant 0 : i32
    %c0_i32_0 = arith.constant 0 : i32
    %c0_i32_1 = arith.constant 0 : i32
    return %c0_i32, %c0_i32_0 : i32, i32
  }
  func.func @transform_4(%arg0: i32) -> (i32, i32) {
    %c0_i32 = arith.constant 0 : i32
    %c0_i32_0 = arith.constant 0 : i32
    %c0_i32_1 = arith.constant 0 : i32
    return %c0_i32, %c0_i32_0 : i32, i32
  }
  func.func @transform_5(%arg0: i32) -> (i32, i32) {
    %c0_i32 = arith.constant 0 : i32
    %c0_i32_0 = arith.constant 0 : i32
    %c0_i32_1 = arith.constant 0 : i32
    return %c0_i32, %c0_i32_0 : i32, i32
  }
  func.func @transform_6(%arg0: i32) -> (i32, i32) {
    %c0_i32 = arith.constant 0 : i32
    %c0_i32_0 = arith.constant 0 : i32
    %c0_i32_1 = arith.constant 0 : i32
    return %c0_i32, %c0_i32_0 : i32, i32
  }
  func.func @transform_7(%arg0: i32) -> (i32, i32) {
    %c0_i32 = arith.constant 0 : i32
    %c0_i32_0 = arith.constant 0 : i32
    %c0_i32_1 = arith.constant 0 : i32
    return %c0_i32, %c0_i32_0 : i32, i32
  }
  func.func @transform_8(%arg0: i32) -> (i32, i32) {
    %c0_i32 = arith.constant 0 : i32
    %c0_i32_0 = arith.constant 0 : i32
    %c0_i32_1 = arith.constant 0 : i32
    return %c0_i32, %c0_i32_0 : i32, i32
  }
  func.func @transform_9(%arg0: i32) -> (i32, i32) {
    %c0_i32 = arith.constant 0 : i32
    %c0_i32_0 = arith.constant 0 : i32
    %c0_i32_1 = arith.constant 0 : i32
    return %c0_i32, %c0_i32_0 : i32, i32
  }
  func.func @transform_10(%arg0: i32) -> (i32, i32) {
    %c0_i32 = arith.constant 0 : i32
    %c0_i32_0 = arith.constant 0 : i32
    %c0_i32_1 = arith.constant 0 : i32
    return %c0_i32, %c0_i32_0 : i32, i32
  }
  func.func @transform_11(%arg0: i32) -> (i32, i32) {
    %c0_i32 = arith.constant 0 : i32
    %c0_i32_0 = arith.constant 0 : i32
    %c0_i32_1 = arith.constant 0 : i32
    return %c0_i32, %c0_i32_0 : i32, i32
  }
  func.func @transform_12(%arg0: i32) -> (i32, i32) {
    %c0_i32 = arith.constant 0 : i32
    %c0_i32_0 = arith.constant 0 : i32
    %c0_i32_1 = arith.constant 0 : i32
    return %c0_i32, %c0_i32_0 : i32, i32
  }
  func.func @transform_13(%arg0: i32) -> (i32, i32) {
    %c0_i32 = arith.constant 0 : i32
    %c0_i32_0 = arith.constant 0 : i32
    %c0_i32_1 = arith.constant 0 : i32
    return %c0_i32, %c0_i32_0 : i32, i32
  }
  func.func @transform_14(%arg0: i32) -> (i32, i32) {
    %c0_i32 = arith.constant 0 : i32
    %c0_i32_0 = arith.constant 0 : i32
    %c0_i32_1 = arith.constant 0 : i32
    return %c0_i32, %c0_i32_0 : i32, i32
  }
  func.func @transform_15(%arg0: i32) -> (i32, i32) {
    %c0_i32 = arith.constant 0 : i32
    %c0_i32_0 = arith.constant 0 : i32
    %c0_i32_1 = arith.constant 0 : i32
    return %c0_i32, %c0_i32_0 : i32, i32
  }
  func.func @transform_16(%arg0: i32) -> (i32, i32) {
    %c0_i32 = arith.constant 0 : i32
    %c0_i32_0 = arith.constant 0 : i32
    %c0_i32_1 = arith.constant 0 : i32
    return %c0_i32, %c0_i32_0 : i32, i32
  }
  func.func @transform_17(%arg0: i32) -> (i32, i32) {
    %c0_i32 = arith.constant 0 : i32
    %c0_i32_0 = arith.constant 0 : i32
    %c0_i32_1 = arith.constant 0 : i32
    return %c0_i32, %c0_i32_0 : i32, i32
  }
  func.func @transform_18(%arg0: i32) -> (i32, i32) {
    %c0_i32 = arith.constant 0 : i32
    %c0_i32_0 = arith.constant 0 : i32
    %c0_i32_1 = arith.constant 0 : i32
    return %c0_i32, %c0_i32_0 : i32, i32
  }
  func.func @transform_19(%arg0: i32) -> (i32, i32) {
    %c0_i32 = arith.constant 0 : i32
    %c0_i32_0 = arith.constant 0 : i32
    %c0_i32_1 = arith.constant 0 : i32
    return %c0_i32, %c0_i32_0 : i32, i32
  }
  func.func @transform_20(%arg0: i32) -> (i32, i32) {
    %c0_i32 = arith.constant 0 : i32
    %c0_i32_0 = arith.constant 0 : i32
    %c0_i32_1 = arith.constant 0 : i32
    return %c0_i32, %c0_i32_0 : i32, i32
  }
  func.func @transform_21(%arg0: i32) -> (i32, i32, i32) {
    %c0_i32 = arith.constant 0 : i32
    %c0_i32_0 = arith.constant 0 : i32
    %c0_i32_1 = arith.constant 0 : i32
    return %arg0, %c0_i32, %c0_i32_0 : i32, i32, i32
  }
}

</mosaic_0001>

<llo_original>
// kernel: lenet_forward.1
$region0: #{lenet_forward.1}
  #allocation0 [shape = 'u32[]', space=smem, size = 0x4, offset = 0x4, fixed_abs, tag = 'smem constant byte address 0x4 - core index']
  #allocation1 [shape = 'u32[144,128]{1,0:T(1,128)}', space=vmem, size = 0x12000, scoped, tag = 'internal scratch']
  %s0 = inlined_call_operand.vmem [shape: f32[2,1,900], index: 0, kind: input, shape index: {}]
  %s1 = inlined_call_operand.hbm [shape: f32[8,9], index: 1, kind: input, shape index: {}]
  %s2 = inlined_call_operand.vmem [shape: f32[8,1], index: 2, kind: input, shape index: {}]
  %s3 = inlined_call_operand.vmem [shape: f32[8,1], index: 3, kind: input, shape index: {}]
  %s4 = inlined_call_operand.hbm [shape: f32[1,900], index: 4, kind: input, shape index: {}]
  %s5 = inlined_call_operand.vmem [shape: bf16[900,256], index: 5, kind: input, shape index: {}]
  %s6 = inlined_call_operand.hbm [shape: bf16[8,72], index: 6, kind: input, shape index: {}]
  %s7 = inlined_call_operand.vmem [shape: f32[8,1], index: 7, kind: input, shape index: {}]
  %s8 = inlined_call_operand.vmem [shape: f32[8,1], index: 8, kind: input, shape index: {}]
  %s9 = inlined_call_operand.hbm [shape: f32[1,256], index: 9, kind: input, shape index: {}]
  %s10 = inlined_call_operand.vmem [shape: bf16[256,81], index: 10, kind: input, shape index: {}]
  %s11 = inlined_call_operand.hbm [shape: bf16[8,72], index: 11, kind: input, shape index: {}]
  %s12 = inlined_call_operand.vmem [shape: f32[8,1], index: 12, kind: input, shape index: {}]
  %s13 = inlined_call_operand.vmem [shape: f32[8,1], index: 13, kind: input, shape index: {}]
  %s14 = inlined_call_operand.vmem [shape: f32[1,81], index: 14, kind: input, shape index: {}]
  %s15 = inlined_call_operand.vmem [shape: bf16[81,256], index: 15, kind: input, shape index: {}]
  %s16 = inlined_call_operand.vmem [shape: f32[8,256], index: 16, kind: input, shape index: {}]
  %s17 = inlined_call_operand.vmem [shape: f32[256,32], index: 17, kind: input, shape index: {}]
  %s18 = inlined_call_operand.vmem [shape: f32[1,32], index: 18, kind: input, shape index: {}]
  %s19 = inlined_call_operand.vmem [shape: f32[32,10], index: 19, kind: input, shape index: {}]
  %s20 = inlined_call_operand.vmem [shape: f32[1,10], index: 20, kind: input, shape index: {}]
  %s21 = inlined_call_operand.hbm [shape: f32[2,1,10], index: 21, kind: output, shape index: {}]
  %s22 = sld [smem:[#allocation0]]
  $region137: #{lenet_forward.1} parent=0
    _
  %s24 = ssub.s32 1, %s22
  %s25 = scalar_select 0, %s24, %s22
  $region1: #{lenet_forward.1} parent=0
    #allocation2 [shape = 'u8[4096]{0}', space=vmem, size = 0x1000, scoped, tag = 'input window, operand 1, single buffered']
    #allocation3 [shape = 's32[2]{0}', space=sflag, size = 0x8, scoped, tag = 'scoped memory for lenet_forward.1']
    #allocation4 [shape = 's32[2]{0}', space=sflag, size = 0x8, scoped, tag = 'scoped memory for lenet_forward.1']
    #allocation5 [shape = 'u8[4096]{0}', space=vmem, size = 0x1000, scoped, tag = 'input window, operand 4, single buffered']
    #allocation6 [shape = 's32[1]{0}', space=sflag, size = 0x4, scoped, tag = 'scoped memory for lenet_forward.1']
    #allocation7 [shape = 'u8[2048]{0}', space=vmem, size = 0x800, scoped, tag = 'input window, operand 6, single buffered']
    #allocation8 [shape = 'u8[1024]{0}', space=vmem, size = 0x400, scoped, tag = 'input window, operand 9, single buffered']
    #allocation9 [shape = 's32[1]{0}', space=sflag, size = 0x4, scoped, tag = 'scoped memory for lenet_forward.1']
    #allocation10 [shape = 'u8[2048]{0}', space=vmem, size = 0x800, scoped, tag = 'input window, operand 11, single buffered']
    #allocation11 [shape = 'u8[1024]{0}', space=vmem, size = 0x400, scoped, tag = 'output window, operand 0']
    %26 = vsyncpa [#allocation3], 0
    %27 = vsyncpa [#allocation6], 0
    %28 = vsyncpa [#allocation9], 0
    %29 = vsyncpa [#allocation4], 0
    %s30 = scalar_lea.sflag [#allocation4], 1
    %31 = vsyncpa %s30, 0
    loop: start=0, step=1, limit=4
    $region2: #{lenet_forward.1} parent=1 // loop_pre_header
      _
    $region3: #{lenet_forward.1} parent=1 // loop_header
      %s33 = sphi 0, %s37
      %p34 = scmp.ge.s32.totalorder %s33, 4
      %s43 = sphi 0, %s45
      %s46 = sphi 0, %s43
      %s47 = sphi 0, %s46
      %s63 = sphi 0, %s47
      %s67 = sphi 0, %s67
      %s69 = sphi 0, %s67
      %s70 = sphi 0, %s69
      %s84 = sphi 0, %s70
      %s88 = sphi 0, %s88
      %s90 = sphi 0, %s88
      %s91 = sphi 0, %s90
      %s105 = sphi 0, %s91
      %s109 = sphi 0, %s109
      %s111 = sphi 0, %s109
      %s112 = sphi 0, %s111
      %s126 = sphi 0, %s112
      %s130 = sphi 0, %s130
      %s132 = sphi 0, %s130
      %s133 = sphi 0, %s132
      %s147 = sphi 0, %s133
      %s151 = sphi 0, %s151
      %s153 = sphi 0, %s151
      %s154 = sphi 0, %s153
      %s168 = sphi 0, %s154
      %s172 = sphi 0, %s172
      %s174 = sphi 0, %s172
      %s175 = sphi 0, %s174
      %s189 = sphi 0, %s175
      %s193 = sphi 0, %s193
      %s195 = sphi 0, %s193
      %s196 = sphi 0, %s195
      %s210 = sphi 0, %s196
      %s214 = sphi 0, %s214
      %s216 = sphi 0, %s214
      %s217 = sphi 0, %s216
      %s231 = sphi 0, %s217
      %s235 = sphi 0, %s235
      %s237 = sphi 0, %s235
      %s238 = sphi 0, %s237
      %s252 = sphi 0, %s238
      %s256 = sphi 0, %s256
      %s258 = sphi 0, %s256
      %s259 = sphi 0, %s258
      %s273 = sphi 0, %s259
      %s277 = sphi 0, %s277
      %s279 = sphi 0, %s277
      %s280 = sphi 0, %s279
      %s294 = sphi 0, %s280
      %s298 = sphi 0, %s298
      %s300 = sphi 0, %s298
      %s301 = sphi 0, %s300
      %s315 = sphi 0, %s301
      %s319 = sphi 0, %s319
      %s321 = sphi 0, %s319
      %s322 = sphi 0, %s321
      %s336 = sphi 0, %s322
      %s340 = sphi 0, %s340
      %s342 = sphi 0, %s340
      %s343 = sphi 0, %s342
      %s357 = sphi 0, %s343
      %s361 = sphi 0, %s361
      %s363 = sphi 0, %s361
      %s364 = sphi 0, %s363
      %s378 = sphi 0, %s364
      %s382 = sphi 0, %s382
      %s384 = sphi 0, %s382
      %s385 = sphi 0, %s384
      %s399 = sphi 0, %s385
      %s403 = sphi 0, %s403
      %s405 = sphi 0, %s403
      %s406 = sphi 0, %s405
      %s420 = sphi 0, %s406
      %s424 = sphi 0, %s424
      %s426 = sphi 0, %s424
      %s427 = sphi 0, %s426
      %s441 = sphi 0, %s427
      %s445 = sphi 0, %s445
      %s447 = sphi 0, %s445
      %s448 = sphi 0, %s447
      %s462 = sphi 0, %s448
      %s466 = sphi 0, %s466
      %s468 = sphi 0, %s466
      %s469 = sphi 0, %s468
      %s483 = sphi 0, %s469
      %s489 = sphi 0, %s491
      %s492 = sphi 0, %s489
      %s493 = sphi 0, %s492
      %s509 = sphi 0, %s493
    $region4: #{lenet_forward.1} parent=1 // loop_header_branch
      %36 = sbr.rel (%p34) target = $region8
    $region5: #{lenet_forward.1} parent=1 // loop_body
      %s38 = ssub.s32 %s33, 1
      %s39 = ssub.s32 %s33, 2
      %s40 = sadd.s32 %s33, 1
      %s41 = ssub.s32 %s33, %s40
      %p42 = scmp.eq.s32.totalorder %s41, 0
      %s44 = sadd.s32 %s43, 1
      %s45 = scalar_select %p42, %s43, %s44
      %p48 = pneg %p42
      %p49 = scmp.eq.s32.totalorder %s33, 1
      %p50 = por %p48, %p49
      %p51 = scmp.ne.s32.totalorder %s43, %s46
      %p52 = scmp.eq.s32.totalorder %s33, 0
      %p53 = por %p51, %p52
      %p54 = scmp.ne.s32.totalorder %s43, %s46
      %p55 = scmp.eq.s32.totalorder %s38, 1
      %p56 = por %p54, %p55
      %p57 = scmp.ne.s32.totalorder %s46, %s47
      %p58 = scmp.eq.s32.totalorder %s38, 0
      %p59 = por %p57, %p58
      %p60 = scmp.ne.s32.totalorder %s46, %s47
      %p61 = scmp.eq.s32.totalorder %s39, 1
      %p62 = por %p60, %p61
      %p64 = scmp.ne.s32.totalorder %s47, %s63
      %p65 = scmp.eq.s32.totalorder %s39, 0
      %p66 = por %p64, %p65
      %s68 = sadd.s32 %s67, 1
      %p71 = scmp.eq.s32.totalorder %s33, 1
      %p72 = scmp.ne.s32.totalorder %s67, %s69
      %p73 = scmp.eq.s32.totalorder %s33, 0
      %p74 = por %p72, %p73
      %p75 = scmp.ne.s32.totalorder %s67, %s69
      %p76 = scmp.eq.s32.totalorder %s38, 1
      %p77 = por %p75, %p76
      %p78 = scmp.ne.s32.totalorder %s69, %s70
      %p79 = scmp.eq.s32.totalorder %s38, 0
      %p80 = por %p78, %p79
      %p81 = scmp.ne.s32.totalorder %s69, %s70
      %p82 = scmp.eq.s32.totalorder %s39, 1
      %p83 = por %p81, %p82
      %p85 = scmp.ne.s32.totalorder %s70, %s84
      %p86 = scmp.eq.s32.totalorder %s39, 0
      %p87 = por %p85, %p86
      %s89 = sadd.s32 %s88, 1
      %p92 = scmp.eq.s32.totalorder %s33, 1
      %p93 = scmp.ne.s32.totalorder %s88, %s90
      %p94 = scmp.eq.s32.totalorder %s33, 0
      %p95 = por %p93, %p94
      %p96 = scmp.ne.s32.totalorder %s88, %s90
      %p97 = scmp.eq.s32.totalorder %s38, 1
      %p98 = por %p96, %p97
      %p99 = scmp.ne.s32.totalorder %s90, %s91
      %p100 = scmp.eq.s32.totalorder %s38, 0
      %p101 = por %p99, %p100
      %p102 = scmp.ne.s32.totalorder %s90, %s91
      %p103 = scmp.eq.s32.totalorder %s39, 1
      %p104 = por %p102, %p103
      %p106 = scmp.ne.s32.totalorder %s91, %s105
      %p107 = scmp.eq.s32.totalorder %s39, 0
      %p108 = por %p106, %p107
      %s110 = sadd.s32 %s109, 1
      %p113 = scmp.eq.s32.totalorder %s33, 1
      %p114 = scmp.ne.s32.totalorder %s109, %s111
      %p115 = scmp.eq.s32.totalorder %s33, 0
      %p116 = por %p114, %p115
      %p117 = scmp.ne.s32.totalorder %s109, %s111
      %p118 = scmp.eq.s32.totalorder %s38, 1
      %p119 = por %p117, %p118
      %p120 = scmp.ne.s32.totalorder %s111, %s112
      %p121 = scmp.eq.s32.totalorder %s38, 0
      %p122 = por %p120, %p121
      %p123 = scmp.ne.s32.totalorder %s111, %s112
      %p124 = scmp.eq.s32.totalorder %s39, 1
      %p125 = por %p123, %p124
      %p127 = scmp.ne.s32.totalorder %s112, %s126
      %p128 = scmp.eq.s32.totalorder %s39, 0
      %p129 = por %p127, %p128
      %s131 = sadd.s32 %s130, 1
      %p134 = scmp.eq.s32.totalorder %s33, 1
      %p135 = scmp.ne.s32.totalorder %s130, %s132
      %p136 = scmp.eq.s32.totalorder %s33, 0
      %p137 = por %p135, %p136
      %p138 = scmp.ne.s32.totalorder %s130, %s132
      %p139 = scmp.eq.s32.totalorder %s38, 1
      %p140 = por %p138, %p139
      %p141 = scmp.ne.s32.totalorder %s132, %s133
      %p142 = scmp.eq.s32.totalorder %s38, 0
      %p143 = por %p141, %p142
      %p144 = scmp.ne.s32.totalorder %s132, %s133
      %p145 = scmp.eq.s32.totalorder %s39, 1
      %p146 = por %p144, %p145
      %p148 = scmp.ne.s32.totalorder %s133, %s147
      %p149 = scmp.eq.s32.totalorder %s39, 0
      %p150 = por %p148, %p149
      %s152 = sadd.s32 %s151, 1
      %p155 = scmp.eq.s32.totalorder %s33, 1
      %p156 = scmp.ne.s32.totalorder %s151, %s153
      %p157 = scmp.eq.s32.totalorder %s33, 0
      %p158 = por %p156, %p157
      %p159 = scmp.ne.s32.totalorder %s151, %s153
      %p160 = scmp.eq.s32.totalorder %s38, 1
      %p161 = por %p159, %p160
      %p162 = scmp.ne.s32.totalorder %s153, %s154
      %p163 = scmp.eq.s32.totalorder %s38, 0
      %p164 = por %p162, %p163
      %p165 = scmp.ne.s32.totalorder %s153, %s154
      %p166 = scmp.eq.s32.totalorder %s39, 1
      %p167 = por %p165, %p166
      %p169 = scmp.ne.s32.totalorder %s154, %s168
      %p170 = scmp.eq.s32.totalorder %s39, 0
      %p171 = por %p169, %p170
      %s173 = sadd.s32 %s172, 1
      %p176 = scmp.eq.s32.totalorder %s33, 1
      %p177 = scmp.ne.s32.totalorder %s172, %s174
      %p178 = scmp.eq.s32.totalorder %s33, 0
      %p179 = por %p177, %p178
      %p180 = scmp.ne.s32.totalorder %s172, %s174
      %p181 = scmp.eq.s32.totalorder %s38, 1
      %p182 = por %p180, %p181
      %p183 = scmp.ne.s32.totalorder %s174, %s175
      %p184 = scmp.eq.s32.totalorder %s38, 0
      %p185 = por %p183, %p184
      %p186 = scmp.ne.s32.totalorder %s174, %s175
      %p187 = scmp.eq.s32.totalorder %s39, 1
      %p188 = por %p186, %p187
      %p190 = scmp.ne.s32.totalorder %s175, %s189
      %p191 = scmp.eq.s32.totalorder %s39, 0
      %p192 = por %p190, %p191
      %s194 = sadd.s32 %s193, 1
      %p197 = scmp.eq.s32.totalorder %s33, 1
      %p198 = scmp.ne.s32.totalorder %s193, %s195
      %p199 = scmp.eq.s32.totalorder %s33, 0
      %p200 = por %p198, %p199
      %p201 = scmp.ne.s32.totalorder %s193, %s195
      %p202 = scmp.eq.s32.totalorder %s38, 1
      %p203 = por %p201, %p202
      %p204 = scmp.ne.s32.totalorder %s195, %s196
      %p205 = scmp.eq.s32.totalorder %s38, 0
      %p206 = por %p204, %p205
      %p207 = scmp.ne.s32.totalorder %s195, %s196
      %p208 = scmp.eq.s32.totalorder %s39, 1
      %p209 = por %p207, %p208
      %p211 = scmp.ne.s32.totalorder %s196, %s210
      %p212 = scmp.eq.s32.totalorder %s39, 0
      %p213 = por %p211, %p212
      %s215 = sadd.s32 %s214, 1
      %p218 = scmp.eq.s32.totalorder %s33, 1
      %p219 = scmp.ne.s32.totalorder %s214, %s216
      %p220 = scmp.eq.s32.totalorder %s33, 0
      %p221 = por %p219, %p220
      %p222 = scmp.ne.s32.totalorder %s214, %s216
      %p223 = scmp.eq.s32.totalorder %s38, 1
      %p224 = por %p222, %p223
      %p225 = scmp.ne.s32.totalorder %s216, %s217
      %p226 = scmp.eq.s32.totalorder %s38, 0
      %p227 = por %p225, %p226
      %p228 = scmp.ne.s32.totalorder %s216, %s217
      %p229 = scmp.eq.s32.totalorder %s39, 1
      %p230 = por %p228, %p229
      %p232 = scmp.ne.s32.totalorder %s217, %s231
      %p233 = scmp.eq.s32.totalorder %s39, 0
      %p234 = por %p232, %p233
      %s236 = sadd.s32 %s235, 1
      %p239 = scmp.eq.s32.totalorder %s33, 1
      %p240 = scmp.ne.s32.totalorder %s235, %s237
      %p241 = scmp.eq.s32.totalorder %s33, 0
      %p242 = por %p240, %p241
      %p243 = scmp.ne.s32.totalorder %s235, %s237
      %p244 = scmp.eq.s32.totalorder %s38, 1
      %p245 = por %p243, %p244
      %p246 = scmp.ne.s32.totalorder %s237, %s238
      %p247 = scmp.eq.s32.totalorder %s38, 0
      %p248 = por %p246, %p247
      %p249 = scmp.ne.s32.totalorder %s237, %s238
      %p250 = scmp.eq.s32.totalorder %s39, 1
      %p251 = por %p249, %p250
      %p253 = scmp.ne.s32.totalorder %s238, %s252
      %p254 = scmp.eq.s32.totalorder %s39, 0
      %p255 = por %p253, %p254
      %s257 = sadd.s32 %s256, 1
      %p260 = scmp.eq.s32.totalorder %s33, 1
      %p261 = scmp.ne.s32.totalorder %s256, %s258
      %p262 = scmp.eq.s32.totalorder %s33, 0
      %p263 = por %p261, %p262
      %p264 = scmp.ne.s32.totalorder %s256, %s258
      %p265 = scmp.eq.s32.totalorder %s38, 1
      %p266 = por %p264, %p265
      %p267 = scmp.ne.s32.totalorder %s258, %s259
      %p268 = scmp.eq.s32.totalorder %s38, 0
      %p269 = por %p267, %p268
      %p270 = scmp.ne.s32.totalorder %s258, %s259
      %p271 = scmp.eq.s32.totalorder %s39, 1
      %p272 = por %p270, %p271
      %p274 = scmp.ne.s32.totalorder %s259, %s273
      %p275 = scmp.eq.s32.totalorder %s39, 0
      %p276 = por %p274, %p275
      %s278 = sadd.s32 %s277, 1
      %p281 = scmp.eq.s32.totalorder %s33, 1
      %p282 = scmp.ne.s32.totalorder %s277, %s279
      %p283 = scmp.eq.s32.totalorder %s33, 0
      %p284 = por %p282, %p283
      %p285 = scmp.ne.s32.totalorder %s277, %s279
      %p286 = scmp.eq.s32.totalorder %s38, 1
      %p287 = por %p285, %p286
      %p288 = scmp.ne.s32.totalorder %s279, %s280
      %p289 = scmp.eq.s32.totalorder %s38, 0
      %p290 = por %p288, %p289
      %p291 = scmp.ne.s32.totalorder %s279, %s280
      %p292 = scmp.eq.s32.totalorder %s39, 1
      %p293 = por %p291, %p292
      %p295 = scmp.ne.s32.totalorder %s280, %s294
      %p296 = scmp.eq.s32.totalorder %s39, 0
      %p297 = por %p295, %p296
      %s299 = sadd.s32 %s298, 1
      %p302 = scmp.eq.s32.totalorder %s33, 1
      %p303 = scmp.ne.s32.totalorder %s298, %s300
      %p304 = scmp.eq.s32.totalorder %s33, 0
      %p305 = por %p303, %p304
      %p306 = scmp.ne.s32.totalorder %s298, %s300
      %p307 = scmp.eq.s32.totalorder %s38, 1
      %p308 = por %p306, %p307
      %p309 = scmp.ne.s32.totalorder %s300, %s301
      %p310 = scmp.eq.s32.totalorder %s38, 0
      %p311 = por %p309, %p310
      %p312 = scmp.ne.s32.totalorder %s300, %s301
      %p313 = scmp.eq.s32.totalorder %s39, 1
      %p314 = por %p312, %p313
      %p316 = scmp.ne.s32.totalorder %s301, %s315
      %p317 = scmp.eq.s32.totalorder %s39, 0
      %p318 = por %p316, %p317
      %s320 = sadd.s32 %s319, 1
      %p323 = scmp.eq.s32.totalorder %s33, 1
      %p324 = scmp.ne.s32.totalorder %s319, %s321
      %p325 = scmp.eq.s32.totalorder %s33, 0
      %p326 = por %p324, %p325
      %p327 = scmp.ne.s32.totalorder %s319, %s321
      %p328 = scmp.eq.s32.totalorder %s38, 1
      %p329 = por %p327, %p328
      %p330 = scmp.ne.s32.totalorder %s321, %s322
      %p331 = scmp.eq.s32.totalorder %s38, 0
      %p332 = por %p330, %p331
      %p333 = scmp.ne.s32.totalorder %s321, %s322
      %p334 = scmp.eq.s32.totalorder %s39, 1
      %p335 = por %p333, %p334
      %p337 = scmp.ne.s32.totalorder %s322, %s336
      %p338 = scmp.eq.s32.totalorder %s39, 0
      %p339 = por %p337, %p338
      %s341 = sadd.s32 %s340, 1
      %p344 = scmp.eq.s32.totalorder %s33, 1
      %p345 = scmp.ne.s32.totalorder %s340, %s342
      %p346 = scmp.eq.s32.totalorder %s33, 0
      %p347 = por %p345, %p346
      %p348 = scmp.ne.s32.totalorder %s340, %s342
      %p349 = scmp.eq.s32.totalorder %s38, 1
      %p350 = por %p348, %p349
      %p351 = scmp.ne.s32.totalorder %s342, %s343
      %p352 = scmp.eq.s32.totalorder %s38, 0
      %p353 = por %p351, %p352
      %p354 = scmp.ne.s32.totalorder %s342, %s343
      %p355 = scmp.eq.s32.totalorder %s39, 1
      %p356 = por %p354, %p355
      %p358 = scmp.ne.s32.totalorder %s343, %s357
      %p359 = scmp.eq.s32.totalorder %s39, 0
      %p360 = por %p358, %p359
      %s362 = sadd.s32 %s361, 1
      %p365 = scmp.eq.s32.totalorder %s33, 1
      %p366 = scmp.ne.s32.totalorder %s361, %s363
      %p367 = scmp.eq.s32.totalorder %s33, 0
      %p368 = por %p366, %p367
      %p369 = scmp.ne.s32.totalorder %s361, %s363
      %p370 = scmp.eq.s32.totalorder %s38, 1
      %p371 = por %p369, %p370
      %p372 = scmp.ne.s32.totalorder %s363, %s364
      %p373 = scmp.eq.s32.totalorder %s38, 0
      %p374 = por %p372, %p373
      %p375 = scmp.ne.s32.totalorder %s363, %s364
      %p376 = scmp.eq.s32.totalorder %s39, 1
      %p377 = por %p375, %p376
      %p379 = scmp.ne.s32.totalorder %s364, %s378
      %p380 = scmp.eq.s32.totalorder %s39, 0
      %p381 = por %p379, %p380
      %s383 = sadd.s32 %s382, 1
      %p386 = scmp.eq.s32.totalorder %s33, 1
      %p387 = scmp.ne.s32.totalorder %s382, %s384
      %p388 = scmp.eq.s32.totalorder %s33, 0
      %p389 = por %p387, %p388
      %p390 = scmp.ne.s32.totalorder %s382, %s384
      %p391 = scmp.eq.s32.totalorder %s38, 1
      %p392 = por %p390, %p391
      %p393 = scmp.ne.s32.totalorder %s384, %s385
      %p394 = scmp.eq.s32.totalorder %s38, 0
      %p395 = por %p393, %p394
      %p396 = scmp.ne.s32.totalorder %s384, %s385
      %p397 = scmp.eq.s32.totalorder %s39, 1
      %p398 = por %p396, %p397
      %p400 = scmp.ne.s32.totalorder %s385, %s399
      %p401 = scmp.eq.s32.totalorder %s39, 0
      %p402 = por %p400, %p401
      %s404 = sadd.s32 %s403, 1
      %p407 = scmp.eq.s32.totalorder %s33, 1
      %p408 = scmp.ne.s32.totalorder %s403, %s405
      %p409 = scmp.eq.s32.totalorder %s33, 0
      %p410 = por %p408, %p409
      %p411 = scmp.ne.s32.totalorder %s403, %s405
      %p412 = scmp.eq.s32.totalorder %s38, 1
      %p413 = por %p411, %p412
      %p414 = scmp.ne.s32.totalorder %s405, %s406
      %p415 = scmp.eq.s32.totalorder %s38, 0
      %p416 = por %p414, %p415
      %p417 = scmp.ne.s32.totalorder %s405, %s406
      %p418 = scmp.eq.s32.totalorder %s39, 1
      %p419 = por %p417, %p418
      %p421 = scmp.ne.s32.totalorder %s406, %s420
      %p422 = scmp.eq.s32.totalorder %s39, 0
      %p423 = por %p421, %p422
      %s425 = sadd.s32 %s424, 1
      %p428 = scmp.eq.s32.totalorder %s33, 1
      %p429 = scmp.ne.s32.totalorder %s424, %s426
      %p430 = scmp.eq.s32.totalorder %s33, 0
      %p431 = por %p429, %p430
      %p432 = scmp.ne.s32.totalorder %s424, %s426
      %p433 = scmp.eq.s32.totalorder %s38, 1
      %p434 = por %p432, %p433
      %p435 = scmp.ne.s32.totalorder %s426, %s427
      %p436 = scmp.eq.s32.totalorder %s38, 0
      %p437 = por %p435, %p436
      %p438 = scmp.ne.s32.totalorder %s426, %s427
      %p439 = scmp.eq.s32.totalorder %s39, 1
      %p440 = por %p438, %p439
      %p442 = scmp.ne.s32.totalorder %s427, %s441
      %p443 = scmp.eq.s32.totalorder %s39, 0
      %p444 = por %p442, %p443
      %s446 = sadd.s32 %s445, 1
      %p449 = scmp.eq.s32.totalorder %s33, 1
      %p450 = scmp.ne.s32.totalorder %s445, %s447
      %p451 = scmp.eq.s32.totalorder %s33, 0
      %p452 = por %p450, %p451
      %p453 = scmp.ne.s32.totalorder %s445, %s447
      %p454 = scmp.eq.s32.totalorder %s38, 1
      %p455 = por %p453, %p454
      %p456 = scmp.ne.s32.totalorder %s447, %s448
      %p457 = scmp.eq.s32.totalorder %s38, 0
      %p458 = por %p456, %p457
      %p459 = scmp.ne.s32.totalorder %s447, %s448
      %p460 = scmp.eq.s32.totalorder %s39, 1
      %p461 = por %p459, %p460
      %p463 = scmp.ne.s32.totalorder %s448, %s462
      %p464 = scmp.eq.s32.totalorder %s39, 0
      %p465 = por %p463, %p464
      %s467 = sadd.s32 %s466, 1
      %p470 = scmp.eq.s32.totalorder %s33, 1
      %p471 = scmp.ne.s32.totalorder %s466, %s468
      %p472 = scmp.eq.s32.totalorder %s33, 0
      %p473 = por %p471, %p472
      %p474 = scmp.ne.s32.totalorder %s466, %s468
      %p475 = scmp.eq.s32.totalorder %s38, 1
      %p476 = por %p474, %p475
      %p477 = scmp.ne.s32.totalorder %s468, %s469
      %p478 = scmp.eq.s32.totalorder %s38, 0
      %p479 = por %p477, %p478
      %p480 = scmp.ne.s32.totalorder %s468, %s469
      %p481 = scmp.eq.s32.totalorder %s39, 1
      %p482 = por %p480, %p481
      %p484 = scmp.ne.s32.totalorder %s469, %s483
      %p485 = scmp.eq.s32.totalorder %s39, 0
      %p486 = por %p484, %p485
      %s487 = ssub.s32 %s33, %s40
      %p488 = scmp.eq.s32.totalorder %s487, 0
      %s490 = sadd.s32 %s489, 1
      %s491 = scalar_select %p488, %s489, %s490
      %p494 = pneg %p488
      %p495 = scmp.eq.s32.totalorder %s33, 1
      %p496 = por %p494, %p495
      %p497 = scmp.ne.s32.totalorder %s489, %s492
      %p498 = scmp.eq.s32.totalorder %s33, 0
      %p499 = por %p497, %p498
      %p500 = scmp.ne.s32.totalorder %s489, %s492
      %p501 = scmp.eq.s32.totalorder %s38, 1
      %p502 = por %p500, %p501
      %p503 = scmp.ne.s32.totalorder %s492, %s493
      %p504 = scmp.eq.s32.totalorder %s38, 0
      %p505 = por %p503, %p504
      %p506 = scmp.ne.s32.totalorder %s492, %s493
      %p507 = scmp.eq.s32.totalorder %s39, 1
      %p508 = por %p506, %p507
      %p510 = scmp.ne.s32.totalorder %s493, %s509
      %p511 = scmp.eq.s32.totalorder %s39, 0
      %p512 = por %p510, %p511
      %p513 = scmp.le.s32.totalorder 1, %s33
      %p514 = scmp.lt.s32.totalorder %s33, 3
      %p515 = pnand %p513, %p514
      %p516 = pneg %p515
      // Predicated region
      $region9: #{lenet_forward.1} parent=5 // pred_check
        _
      $region10: #{lenet_forward.1} parent=5 // pred_check_branch
        %518 = sbr.rel (%p515) target = $region12
      $region11: #{lenet_forward.1} parent=5 // pred_region
        %s519 = ssub.s32 %s33, 1
        // Predicated region
        $region13: #{lenet_forward.1} parent=11 // pred_check
          %p520 = pneg %p80
        $region14: #{lenet_forward.1} parent=11 // pred_check_branch
          %522 = sbr.rel (%p520) target = $region16
        $region15: #{lenet_forward.1} parent=11 // pred_region
          %s524 = ssub.s32 128, 128
          %525 = vsyncadd [#allocation3], %s524
          %s527 = sshll.u32 [#allocation2], 4
          %s528 = int_to_ptr.vmem [resolvable:$true] %s527
          %530 = dma.hbm_to_vmem [thread:$0]  %s1, 128, %s528, [#allocation3]
        $region16: #{lenet_forward.1} parent=11 // pred_fallthru
          _
        // Predicated region
        $region17: #{lenet_forward.1} parent=11 // pred_check
          %p531 = pneg %p101
        $region18: #{lenet_forward.1} parent=11 // pred_check_branch
          %533 = sbr.rel (%p531) target = $region20
        $region19: #{lenet_forward.1} parent=11 // pred_region
          _
        $region20: #{lenet_forward.1} parent=11 // pred_fallthru
          _
        // Predicated region
        $region21: #{lenet_forward.1} parent=11 // pred_check
          %p534 = pneg %p122
        $region22: #{lenet_forward.1} parent=11 // pred_check_branch
          %536 = sbr.rel (%p534) target = $region24
        $region23: #{lenet_forward.1} parent=11 // pred_region
          _
        $region24: #{lenet_forward.1} parent=11 // pred_fallthru
          _
        // Predicated region
        $region25: #{lenet_forward.1} parent=11 // pred_check
          %p537 = pneg %p143
        $region26: #{lenet_forward.1} parent=11 // pred_check_branch
          %539 = sbr.rel (%p537) target = $region28
        $region27: #{lenet_forward.1} parent=11 // pred_region
          %s541 = ssub.s32 128, 128
          %542 = vsyncadd [#allocation6], %s541
          %s544 = sshll.u32 [#allocation5], 4
          %s545 = int_to_ptr.vmem [resolvable:$true] %s544
          %547 = dma.hbm_to_vmem [thread:$0]  %s4, 128, %s545, [#allocation6]
        $region28: #{lenet_forward.1} parent=11 // pred_fallthru
          _
        // Predicated region
        $region29: #{lenet_forward.1} parent=11 // pred_check
          %p548 = pneg %p164
        $region30: #{lenet_forward.1} parent=11 // pred_check_branch
          %550 = sbr.rel (%p548) target = $region32
        $region31: #{lenet_forward.1} parent=11 // pred_region
          _
        $region32: #{lenet_forward.1} parent=11 // pred_fallthru
          _
        // Predicated region
        $region33: #{lenet_forward.1} parent=11 // pred_check
          %p551 = pneg %p185
        $region34: #{lenet_forward.1} parent=11 // pred_check_branch
          %553 = sbr.rel (%p551) target = $region36
        $region35: #{lenet_forward.1} parent=11 // pred_region
          %s555 = ssub.s32 64, 64
          %556 = vsyncadd [#allocation6], %s555
          %s558 = sshll.u32 [#allocation7], 4
          %s559 = int_to_ptr.vmem [resolvable:$true] %s558
          %561 = dma.hbm_to_vmem [thread:$0]  %s6, 64, %s559, [#allocation6]
        $region36: #{lenet_forward.1} parent=11 // pred_fallthru
          _
        // Predicated region
        $region37: #{lenet_forward.1} parent=11 // pred_check
          %p562 = pneg %p206
        $region38: #{lenet_forward.1} parent=11 // pred_check_branch
          %564 = sbr.rel (%p562) target = $region40
        $region39: #{lenet_forward.1} parent=11 // pred_region
          _
        $region40: #{lenet_forward.1} parent=11 // pred_fallthru
          _
        // Predicated region
        $region41: #{lenet_forward.1} parent=11 // pred_check
          %p565 = pneg %p227
        $region42: #{lenet_forward.1} parent=11 // pred_check_branch
          %567 = sbr.rel (%p565) target = $region44
        $region43: #{lenet_forward.1} parent=11 // pred_region
          _
        $region44: #{lenet_forward.1} parent=11 // pred_fallthru
          _
        // Predicated region
        $region45: #{lenet_forward.1} parent=11 // pred_check
          %p568 = pneg %p248
        $region46: #{lenet_forward.1} parent=11 // pred_check_branch
          %570 = sbr.rel (%p568) target = $region48
        $region47: #{lenet_forward.1} parent=11 // pred_region
          %s572 = ssub.s32 32, 32
          %573 = vsyncadd [#allocation9], %s572
          %s575 = sshll.u32 [#allocation8], 4
          %s576 = int_to_ptr.vmem [resolvable:$true] %s575
          %578 = dma.hbm_to_vmem [thread:$0]  %s9, 32, %s576, [#allocation9]
        $region48: #{lenet_forward.1} parent=11 // pred_fallthru
          _
        // Predicated region
        $region49: #{lenet_forward.1} parent=11 // pred_check
          %p579 = pneg %p269
        $region50: #{lenet_forward.1} parent=11 // pred_check_branch
          %581 = sbr.rel (%p579) target = $region52
        $region51: #{lenet_forward.1} parent=11 // pred_region
          _
        $region52: #{lenet_forward.1} parent=11 // pred_fallthru
          _
        // Predicated region
        $region53: #{lenet_forward.1} parent=11 // pred_check
          %p582 = pneg %p290
        $region54: #{lenet_forward.1} parent=11 // pred_check_branch
          %584 = sbr.rel (%p582) target = $region56
        $region55: #{lenet_forward.1} parent=11 // pred_region
          %s586 = ssub.s32 64, 64
          %587 = vsyncadd [#allocation9], %s586
          %s589 = sshll.u32 [#allocation10], 4
          %s590 = int_to_ptr.vmem [resolvable:$true] %s589
          %592 = dma.hbm_to_vmem [thread:$0]  %s11, 64, %s590, [#allocation9]
        $region56: #{lenet_forward.1} parent=11 // pred_fallthru
          _
        // Predicated region
        $region57: #{lenet_forward.1} parent=11 // pred_check
          %p593 = pneg %p311
        $region58: #{lenet_forward.1} parent=11 // pred_check_branch
          %595 = sbr.rel (%p593) target = $region60
        $region59: #{lenet_forward.1} parent=11 // pred_region
          _
        $region60: #{lenet_forward.1} parent=11 // pred_fallthru
          _
        // Predicated region
        $region61: #{lenet_forward.1} parent=11 // pred_check
          %p596 = pneg %p332
        $region62: #{lenet_forward.1} parent=11 // pred_check_branch
          %598 = sbr.rel (%p596) target = $region64
        $region63: #{lenet_forward.1} parent=11 // pred_region
          _
        $region64: #{lenet_forward.1} parent=11 // pred_fallthru
          _
        // Predicated region
        $region65: #{lenet_forward.1} parent=11 // pred_check
          %p599 = pneg %p353
        $region66: #{lenet_forward.1} parent=11 // pred_check_branch
          %601 = sbr.rel (%p599) target = $region68
        $region67: #{lenet_forward.1} parent=11 // pred_region
          _
        $region68: #{lenet_forward.1} parent=11 // pred_fallthru
          _
        // Predicated region
        $region69: #{lenet_forward.1} parent=11 // pred_check
          %p602 = pneg %p374
        $region70: #{lenet_forward.1} parent=11 // pred_check_branch
          %604 = sbr.rel (%p602) target = $region72
        $region71: #{lenet_forward.1} parent=11 // pred_region
          _
        $region72: #{lenet_forward.1} parent=11 // pred_fallthru
          _
        // Predicated region
        $region73: #{lenet_forward.1} parent=11 // pred_check
          %p605 = pneg %p395
        $region74: #{lenet_forward.1} parent=11 // pred_check_branch
          %607 = sbr.rel (%p605) target = $region76
        $region75: #{lenet_forward.1} parent=11 // pred_region
          _
        $region76: #{lenet_forward.1} parent=11 // pred_fallthru
          _
        // Predicated region
        $region77: #{lenet_forward.1} parent=11 // pred_check
          %p608 = pneg %p416
        $region78: #{lenet_forward.1} parent=11 // pred_check_branch
          %610 = sbr.rel (%p608) target = $region80
        $region79: #{lenet_forward.1} parent=11 // pred_region
          _
        $region80: #{lenet_forward.1} parent=11 // pred_fallthru
          _
        // Predicated region
        $region81: #{lenet_forward.1} parent=11 // pred_check
          %p611 = pneg %p437
        $region82: #{lenet_forward.1} parent=11 // pred_check_branch
          %613 = sbr.rel (%p611) target = $region84
        $region83: #{lenet_forward.1} parent=11 // pred_region
          _
        $region84: #{lenet_forward.1} parent=11 // pred_fallthru
          _
        // Predicated region
        $region85: #{lenet_forward.1} parent=11 // pred_check
          %p614 = pneg %p458
        $region86: #{lenet_forward.1} parent=11 // pred_check_branch
          %616 = sbr.rel (%p614) target = $region88
        $region87: #{lenet_forward.1} parent=11 // pred_region
          _
        $region88: #{lenet_forward.1} parent=11 // pred_fallthru
          _
        // Predicated region
        $region89: #{lenet_forward.1} parent=11 // pred_check
          %p617 = pneg %p479
        $region90: #{lenet_forward.1} parent=11 // pred_check_branch
          %619 = sbr.rel (%p617) target = $region92
        $region91: #{lenet_forward.1} parent=11 // pred_region
          _
        $region92: #{lenet_forward.1} parent=11 // pred_fallthru
          _
      $region12: #{lenet_forward.1} parent=5 // pred_fallthru
        _
      %p620 = scmp.lt.s32.totalorder %s33, 2
      // Predicated region
      $region93: #{lenet_forward.1} parent=5 // pred_check
        %p621 = pneg %p620
      $region94: #{lenet_forward.1} parent=5 // pred_check_branch
        %623 = sbr.rel (%p621) target = $region96
      $region95: #{lenet_forward.1} parent=5 // pred_region
        // Predicated region
        $region97: #{lenet_forward.1} parent=95 // pred_check
          %p624 = pneg %p53
        $region98: #{lenet_forward.1} parent=95 // pred_check_branch
          %626 = sbr.rel (%p624) target = $region100
        $region99: #{lenet_forward.1} parent=95 // pred_region
          %p627 = scmp.lt.s32.totalorder %s33, 1
          %s628 = scalar_select %p627, %s33, 1
          %s629 = smul.addr %s628, 8
          %s630 = scalar_lea.vmem %s0, %s629
        $region100: #{lenet_forward.1} parent=95 // pred_fallthru
          _
      $region96: #{lenet_forward.1} parent=5 // pred_fallthru
        _
      %p631 = scmp.le.s32.totalorder 1, %s33
      %p632 = scmp.lt.s32.totalorder %s33, 3
      %p633 = pnand %p631, %p632
      %p634 = pneg %p633
      // Predicated region
      $region101: #{lenet_forward.1} parent=5 // pred_check
        _
      $region102: #{lenet_forward.1} parent=5 // pred_check_branch
        %636 = sbr.rel (%p633) target = $region104
      $region103: #{lenet_forward.1} parent=5 // pred_region
        %s637 = ssub.s32 %s33, 1
        // Predicated region
        $region105: #{lenet_forward.1} parent=103 // pred_check
          %p638 = pneg %p80
        $region106: #{lenet_forward.1} parent=103 // pred_check_branch
          %640 = sbr.rel (%p638) target = $region108
        $region107: #{lenet_forward.1} parent=103 // pred_region
          %641 = dma.done [#allocation3], 128
        $region108: #{lenet_forward.1} parent=103 // pred_fallthru
          _
        // Predicated region
        $region109: #{lenet_forward.1} parent=103 // pred_check
          %p642 = pneg %p143
        $region110: #{lenet_forward.1} parent=103 // pred_check_branch
          %644 = sbr.rel (%p642) target = $region112
        $region111: #{lenet_forward.1} parent=103 // pred_region
          %645 = dma.done [#allocation6], 128
        $region112: #{lenet_forward.1} parent=103 // pred_fallthru
          _
        // Predicated region
        $region113: #{lenet_forward.1} parent=103 // pred_check
          %p646 = pneg %p185
        $region114: #{lenet_forward.1} parent=103 // pred_check_branch
          %648 = sbr.rel (%p646) target = $region116
        $region115: #{lenet_forward.1} parent=103 // pred_region
          %649 = dma.done [#allocation6], 64
        $region116: #{lenet_forward.1} parent=103 // pred_fallthru
          _
        // Predicated region
        $region117: #{lenet_forward.1} parent=103 // pred_check
          %p650 = pneg %p248
        $region118: #{lenet_forward.1} parent=103 // pred_check_branch
          %652 = sbr.rel (%p650) target = $region120
        $region119: #{lenet_forward.1} parent=103 // pred_region
          %653 = dma.done [#allocation9], 32
        $region120: #{lenet_forward.1} parent=103 // pred_fallthru
          _
        // Predicated region
        $region121: #{lenet_forward.1} parent=103 // pred_check
          %p654 = pneg %p290
        $region122: #{lenet_forward.1} parent=103 // pred_check_branch
          %656 = sbr.rel (%p654) target = $region124
        $region123: #{lenet_forward.1} parent=103 // pred_region
          %657 = dma.done [#allocation9], 64
        $region124: #{lenet_forward.1} parent=103 // pred_fallthru
          _
        %p658 = scmp.lt.s32.totalorder %s38, 1
        %s659 = scalar_select %p658, %s38, 1
        %s660 = smul.addr %s659, 8
        %s661 = scalar_lea.vmem %s0, %s660
        %p662 = pneg %p59
        %p663 = pneg %p56
        %p664 = pneg %p80
        %p665 = pneg %p77
        %p666 = pneg %p101
        %p667 = pneg %p98
        %p668 = pneg %p122
        %p669 = pneg %p119
        %p670 = pneg %p143
        %p671 = pneg %p140
        %p672 = pneg %p164
        %p673 = pneg %p161
        %p674 = pneg %p185
        %p675 = pneg %p182
        %p676 = pneg %p206
        %p677 = pneg %p203
        %p678 = pneg %p227
        %p679 = pneg %p224
        %p680 = pneg %p248
        %p681 = pneg %p245
        %p682 = pneg %p269
        %p683 = pneg %p266
        %p684 = pneg %p290
        %p685 = pneg %p287
        %p686 = pneg %p311
        %p687 = pneg %p308
        %p688 = pneg %p332
        %p689 = pneg %p329
        %p690 = pneg %p353
        %p691 = pneg %p350
        %p692 = pneg %p374
        %p693 = pneg %p371
        %p694 = pneg %p395
        %p695 = pneg %p392
        %p696 = pneg %p416
        %p697 = pneg %p413
        %p698 = pneg %p437
        %p699 = pneg %p434
        %p700 = pneg %p458
        %p701 = pneg %p455
        %p702 = pneg %p479
        %p703 = pneg %p476
        %p704 = pneg %p505
        %p705 = pneg %p502
        %s706 = sand.u32 %s492, 1
        %s707 = scalar_lea.sflag [#allocation4], %s706
        %s708 = sand.u32 %s492, 1
        %s709 = scalar_lea.vmem [#allocation11], %s708
        %p710 = scmp.lt.s32.totalorder %s38, 1
        %s711 = scalar_select %p710, %s38, 1
        %s712 = smul.addr %s711, 8
        %s713 = scalar_lea.vmem %s0, %s712
        %v715 = vld [vmem:[%s713] sm:$0xff]
        %v716 = vld [vmem:[#allocation2] sm:$0xff]
        %v718 = vlaneseq
        %v719 = vshrl.u32 %v718, 7
        %v720 = vsub.s32 0, %v719
        %v721 = vrot.slane %v715, %v720
        %v722 = vlaneseq
        %v723 = vshrl.u32 %v722, 7
        %v724 = vsub.s32 1, %v723
        %v725 = vrot.slane %v715, %v724
        %v726 = vlaneseq
        %v727 = vshrl.u32 %v726, 7
        %v728 = vsub.s32 2, %v727
        %v729 = vrot.slane %v715, %v728
        %v730 = vlaneseq
        %v731 = vshrl.u32 %v730, 7
        %v732 = vsub.s32 3, %v731
        %v733 = vrot.slane %v715, %v732
        %v734 = vlaneseq
        %v735 = vshrl.u32 %v734, 7
        %v736 = vsub.s32 4, %v735
        %v737 = vrot.slane %v715, %v736
        %v738 = vlaneseq
        %v739 = vshrl.u32 %v738, 7
        %v740 = vsub.s32 5, %v739
        %v741 = vrot.slane %v715, %v740
        %v742 = vlaneseq
        %v743 = vshrl.u32 %v742, 7
        %v744 = vsub.s32 6, %v743
        %v745 = vrot.slane %v715, %v744
        %v746 = vlaneseq
        %v747 = vshrl.u32 %v746, 7
        %v748 = vsub.s32 7, %v747
        %v749 = vrot.slane %v715, %v748
        %vm758 = vcmask 1047584
        %759 = vrot.lane.b32.xlu0 %v721, 4
        %v760 = vpop.permute.xlu0 %759
        %761 = vrot.lane.b32.xlu0 %v725, 4
        %v762 = vpop.permute.xlu0 %761
        %763 = vrot.lane.b32.xlu0 %v729, 4
        %v764 = vpop.permute.xlu0 %763
        %765 = vrot.lane.b32.xlu0 %v733, 4
        %v766 = vpop.permute.xlu0 %765
        %767 = vrot.lane.b32.xlu0 %v737, 4
        %v768 = vpop.permute.xlu0 %767
        %769 = vrot.lane.b32.xlu0 %v741, 4
        %v770 = vpop.permute.xlu0 %769
        %771 = vrot.lane.b32.xlu0 %v745, 4
        %v772 = vpop.permute.xlu0 %771
        %v773 = vsel %vm758, %v760, %v749
        %v774 = vsel %vm758, %v762, %v760
        %v775 = vsel %vm758, %v764, %v762
        %v776 = vsel %vm758, %v766, %v764
        %v777 = vsel %vm758, %v768, %v766
        %v778 = vsel %vm758, %v770, %v768
        %v779 = vsel %vm758, %v772, %v770
        %781 = vset.pattern.permute.xlu0 0
        %782 = vperm.xlu0 %781, %v716
        %v783 = vpop.permute.xlu0 %782
        %v785 = vlaneseq
        %v786 = vshrl.u32 %v785, 7
        %v787 = vsub.s32 0, %v786
        %v788 = vrot.slane %v745, %v787
        %v789 = vlaneseq
        %v790 = vshrl.u32 %v789, 7
        %v791 = vsub.s32 0, %v790
        %v792 = vrot.slane %v773, %v791
        %v793 = vlaneseq
        %v794 = vshrl.u32 %v793, 7
        %v795 = vsub.s32 0, %v794
        %v796 = vrot.slane %v774, %v795
        %v797 = vlaneseq
        %v798 = vshrl.u32 %v797, 7
        %v799 = vsub.s32 0, %v798
        %v800 = vrot.slane %v775, %v799
        %v801 = vlaneseq
        %v802 = vshrl.u32 %v801, 7
        %v803 = vsub.s32 0, %v802
        %v804 = vrot.slane %v776, %v803
        %v805 = vlaneseq
        %v806 = vshrl.u32 %v805, 7
        %v807 = vsub.s32 0, %v806
        %v808 = vrot.slane %v777, %v807
        %v809 = vlaneseq
        %v810 = vshrl.u32 %v809, 7
        %v811 = vsub.s32 0, %v810
        %v812 = vrot.slane %v778, %v811
        %v813 = vlaneseq
        %v814 = vshrl.u32 %v813, 7
        %v815 = vsub.s32 0, %v814
        %v816 = vrot.slane %v779, %v815
        %v817 = vmul.f32 %v783, %v788
        %v818 = vmul.f32 %v783, %v792
        %v819 = vmul.f32 %v783, %v796
        %v820 = vmul.f32 %v783, %v800
        %v821 = vmul.f32 %v783, %v804
        %v822 = vmul.f32 %v783, %v808
        %v823 = vmul.f32 %v783, %v812
        %v824 = vmul.f32 %v783, %v816
        %825 = vset.pattern.permute.xlu0 1
        %826 = vperm.xlu0 %825, %v716
        %v827 = vpop.permute.xlu0 %826
        %v829 = vmul.f32 %v827, %v788
        %v830 = vmul.f32 %v827, %v792
        %v831 = vmul.f32 %v827, %v796
        %v832 = vmul.f32 %v827, %v800
        %v833 = vmul.f32 %v827, %v804
        %v834 = vmul.f32 %v827, %v808
        %v835 = vmul.f32 %v827, %v812
        %v836 = vmul.f32 %v827, %v816
        %845 = vrot.lane.b32.xlu0 %v829, 127
        %v846 = vpop.permute.xlu0 %845
        %847 = vrot.lane.b32.xlu0 %v830, 127
        %v848 = vpop.permute.xlu0 %847
        %849 = vrot.lane.b32.xlu0 %v831, 127
        %v850 = vpop.permute.xlu0 %849
        %851 = vrot.lane.b32.xlu0 %v832, 127
        %v852 = vpop.permute.xlu0 %851
        %853 = vrot.lane.b32.xlu0 %v833, 127
        %v854 = vpop.permute.xlu0 %853
        %855 = vrot.lane.b32.xlu0 %v834, 127
        %v856 = vpop.permute.xlu0 %855
        %857 = vrot.lane.b32.xlu0 %v835, 127
        %v858 = vpop.permute.xlu0 %857
        %859 = vrot.lane.b32.xlu0 %v836, 127
        %v860 = vpop.permute.xlu0 %859
        %vm861 = vcmask 1039360
        %v862 = vsel %vm861, %v846, %v848
        %v863 = vsel %vm861, %v848, %v850
        %v864 = vsel %vm861, %v850, %v852
        %v865 = vsel %vm861, %v852, %v854
        %v866 = vsel %vm861, %v854, %v856
        %v867 = vsel %vm861, %v856, %v858
        %v868 = vsel %vm861, %v858, %v860
        %v877 = vadd.f32 %v817, %v862
        %v878 = vadd.f32 %v818, %v863
        %v879 = vadd.f32 %v819, %v864
        %v880 = vadd.f32 %v820, %v865
        %v881 = vadd.f32 %v821, %v866
        %v882 = vadd.f32 %v822, %v867
        %v883 = vadd.f32 %v823, %v868
        %v884 = vadd.f32 %v824, %v860
        %885 = vset.pattern.permute.xlu0 2
        %886 = vperm.xlu0 %885, %v716
        %v887 = vpop.permute.xlu0 %886
        %v889 = vmul.f32 %v887, %v788
        %v890 = vmul.f32 %v887, %v792
        %v891 = vmul.f32 %v887, %v796
        %v892 = vmul.f32 %v887, %v800
        %v893 = vmul.f32 %v887, %v804
        %v894 = vmul.f32 %v887, %v808
        %v895 = vmul.f32 %v887, %v812
        %v896 = vmul.f32 %v887, %v816
        %905 = vrot.lane.b32.xlu0 %v889, 126
        %v906 = vpop.permute.xlu0 %905
        %907 = vrot.lane.b32.xlu0 %v890, 126
        %v908 = vpop.permute.xlu0 %907
        %909 = vrot.lane.b32.xlu0 %v891, 126
        %v910 = vpop.permute.xlu0 %909
        %911 = vrot.lane.b32.xlu0 %v892, 126
        %v912 = vpop.permute.xlu0 %911
        %913 = vrot.lane.b32.xlu0 %v893, 126
        %v914 = vpop.permute.xlu0 %913
        %915 = vrot.lane.b32.xlu0 %v894, 126
        %v916 = vpop.permute.xlu0 %915
        %917 = vrot.lane.b32.xlu0 %v895, 126
        %v918 = vpop.permute.xlu0 %917
        %919 = vrot.lane.b32.xlu0 %v896, 126
        %v920 = vpop.permute.xlu0 %919
        %vm921 = vcmask 1031168
        %v922 = vsel %vm921, %v906, %v908
        %v923 = vsel %vm921, %v908, %v910
        %v924 = vsel %vm921, %v910, %v912
        %v925 = vsel %vm921, %v912, %v914
        %v926 = vsel %vm921, %v914, %v916
        %v927 = vsel %vm921, %v916, %v918
        %v928 = vsel %vm921, %v918, %v920
        %v937 = vadd.f32 %v877, %v922
        %v938 = vadd.f32 %v878, %v923
        %v939 = vadd.f32 %v879, %v924
        %v940 = vadd.f32 %v880, %v925
        %v941 = vadd.f32 %v881, %v926
        %v942 = vadd.f32 %v882, %v927
        %v943 = vadd.f32 %v883, %v928
        %v944 = vadd.f32 %v884, %v920
        %945 = vrot.lane.b32.xlu0 %v773, 4
        %v946 = vpop.permute.xlu0 %945
        %v947 = vsel %vm758, %v946, %v772
        %948 = vset.pattern.permute.xlu0 3
        %949 = vperm.xlu0 %948, %v716
        %v950 = vpop.permute.xlu0 %949
        %v952 = vlaneseq
        %v953 = vshrl.u32 %v952, 7
        %v954 = vsub.s32 0, %v953
        %v955 = vrot.slane %v947, %v954
        %v956 = vmul.f32 %v950, %v792
        %v957 = vmul.f32 %v950, %v796
        %v958 = vmul.f32 %v950, %v800
        %v959 = vmul.f32 %v950, %v804
        %v960 = vmul.f32 %v950, %v808
        %v961 = vmul.f32 %v950, %v812
        %v962 = vmul.f32 %v950, %v816
        %v963 = vmul.f32 %v950, %v955
        %972 = vrot.lane.b32.xlu0 %v956, 98
        %v973 = vpop.permute.xlu0 %972
        %974 = vrot.lane.b32.xlu0 %v957, 98
        %v975 = vpop.permute.xlu0 %974
        %976 = vrot.lane.b32.xlu0 %v958, 98
        %v977 = vpop.permute.xlu0 %976
        %978 = vrot.lane.b32.xlu0 %v959, 98
        %v979 = vpop.permute.xlu0 %978
        %980 = vrot.lane.b32.xlu0 %v960, 98
        %v981 = vpop.permute.xlu0 %980
        %982 = vrot.lane.b32.xlu0 %v961, 98
        %v983 = vpop.permute.xlu0 %982
        %984 = vrot.lane.b32.xlu0 %v962, 98
        %v985 = vpop.permute.xlu0 %984
        %986 = vrot.lane.b32.xlu0 %v963, 98
        %v987 = vpop.permute.xlu0 %986
        %vm988 = vcmask 801792
        %v989 = vsel %vm988, %v973, %v975
        %v990 = vsel %vm988, %v975, %v977
        %v991 = vsel %vm988, %v977, %v979
        %v992 = vsel %vm988, %v979, %v981
        %v993 = vsel %vm988, %v981, %v983
        %v994 = vsel %vm988, %v983, %v985
        %v995 = vsel %vm988, %v985, %v987
        %v1004 = vadd.f32 %v937, %v973
        %v1005 = vadd.f32 %v938, %v989
        %v1006 = vadd.f32 %v939, %v990
        %v1007 = vadd.f32 %v940, %v991
        %v1008 = vadd.f32 %v941, %v992
        %v1009 = vadd.f32 %v942, %v993
        %v1010 = vadd.f32 %v943, %v994
        %v1011 = vadd.f32 %v944, %v995
        %1012 = vset.pattern.permute.xlu0 4
        %1013 = vperm.xlu0 %1012, %v716
        %v1014 = vpop.permute.xlu0 %1013
        %v1016 = vmul.f32 %v1014, %v721
        %v1017 = vmul.f32 %v1014, %v725
        %v1018 = vmul.f32 %v1014, %v729
        %v1019 = vmul.f32 %v1014, %v733
        %v1020 = vmul.f32 %v1014, %v737
        %v1021 = vmul.f32 %v1014, %v741
        %v1022 = vmul.f32 %v1014, %v745
        %v1023 = vmul.f32 %v1014, %v749
        %1032 = vrot.lane.b32.xlu0 %v1016, 101
        %v1033 = vpop.permute.xlu0 %1032
        %1034 = vrot.lane.b32.xlu0 %v1017, 101
        %v1035 = vpop.permute.xlu0 %1034
        %1036 = vrot.lane.b32.xlu0 %v1018, 101
        %v1037 = vpop.permute.xlu0 %1036
        %1038 = vrot.lane.b32.xlu0 %v1019, 101
        %v1039 = vpop.permute.xlu0 %1038
        %1040 = vrot.lane.b32.xlu0 %v1020, 101
        %v1041 = vpop.permute.xlu0 %1040
        %1042 = vrot.lane.b32.xlu0 %v1021, 101
        %v1043 = vpop.permute.xlu0 %1042
        %1044 = vrot.lane.b32.xlu0 %v1022, 101
        %v1045 = vpop.permute.xlu0 %1044
        %1046 = vrot.lane.b32.xlu0 %v1023, 101
        %v1047 = vpop.permute.xlu0 %1046
        %vm1048 = vcmask 826368
        %v1049 = vsel %vm1048, %v1033, %v1035
        %v1050 = vsel %vm1048, %v1035, %v1037
        %v1051 = vsel %vm1048, %v1037, %v1039
        %v1052 = vsel %vm1048, %v1039, %v1041
        %v1053 = vsel %vm1048, %v1041, %v1043
        %v1054 = vsel %vm1048, %v1043, %v1045
        %v1055 = vsel %vm1048, %v1045, %v1047
        %v1064 = vadd.f32 %v1004, %v1033
        %v1065 = vadd.f32 %v1005, %v1049
        %v1066 = vadd.f32 %v1006, %v1050
        %v1067 = vadd.f32 %v1007, %v1051
        %v1068 = vadd.f32 %v1008, %v1052
        %v1069 = vadd.f32 %v1009, %v1053
        %v1070 = vadd.f32 %v1010, %v1054
        %v1071 = vadd.f32 %v1011, %v1055
        %1072 = vset.pattern.permute.xlu0 5
        %1073 = vperm.xlu0 %1072, %v716
        %v1074 = vpop.permute.xlu0 %1073
        %v1076 = vlaneseq
        %v1077 = vshrl.u32 %v1076, 7
        %v1078 = vsub.s32 0, %v1077
        %v1079 = vrot.slane %v721, %v1078
        %v1080 = vlaneseq
        %v1081 = vshrl.u32 %v1080, 7
        %v1082 = vsub.s32 0, %v1081
        %v1083 = vrot.slane %v725, %v1082
        %v1084 = vlaneseq
        %v1085 = vshrl.u32 %v1084, 7
        %v1086 = vsub.s32 0, %v1085
        %v1087 = vrot.slane %v729, %v1086
        %v1088 = vlaneseq
        %v1089 = vshrl.u32 %v1088, 7
        %v1090 = vsub.s32 0, %v1089
        %v1091 = vrot.slane %v733, %v1090
        %v1092 = vlaneseq
        %v1093 = vshrl.u32 %v1092, 7
        %v1094 = vsub.s32 0, %v1093
        %v1095 = vrot.slane %v737, %v1094
        %v1096 = vlaneseq
        %v1097 = vshrl.u32 %v1096, 7
        %v1098 = vsub.s32 0, %v1097
        %v1099 = vrot.slane %v741, %v1098
        %v1100 = vmul.f32 %v1074, %v1079
        %v1101 = vmul.f32 %v1074, %v1083
        %v1102 = vmul.f32 %v1074, %v1087
        %v1103 = vmul.f32 %v1074, %v1091
        %v1104 = vmul.f32 %v1074, %v1095
        %v1105 = vmul.f32 %v1074, %v1099
        %v1106 = vmul.f32 %v1074, %v788
        %v1107 = vmul.f32 %v1074, %v792
        %1116 = vrot.lane.b32.xlu0 %v1100, 100
        %v1117 = vpop.permute.xlu0 %1116
        %1118 = vrot.lane.b32.xlu0 %v1101, 100
        %v1119 = vpop.permute.xlu0 %1118
        %1120 = vrot.lane.b32.xlu0 %v1102, 100
        %v1121 = vpop.permute.xlu0 %1120
        %1122 = vrot.lane.b32.xlu0 %v1103, 100
        %v1123 = vpop.permute.xlu0 %1122
        %1124 = vrot.lane.b32.xlu0 %v1104, 100
        %v1125 = vpop.permute.xlu0 %1124
        %1126 = vrot.lane.b32.xlu0 %v1105, 100
        %v1127 = vpop.permute.xlu0 %1126
        %1128 = vrot.lane.b32.xlu0 %v1106, 100
        %v1129 = vpop.permute.xlu0 %1128
        %1130 = vrot.lane.b32.xlu0 %v1107, 100
        %v1131 = vpop.permute.xlu0 %1130
        %vm1132 = vcmask 818176
        %v1133 = vsel %vm1132, %v1117, %v1119
        %v1134 = vsel %vm1132, %v1119, %v1121
        %v1135 = vsel %vm1132, %v1121, %v1123
        %v1136 = vsel %vm1132, %v1123, %v1125
        %v1137 = vsel %vm1132, %v1125, %v1127
        %v1138 = vsel %vm1132, %v1127, %v1129
        %v1139 = vsel %vm1132, %v1129, %v1131
        %v1148 = vadd.f32 %v1064, %v1117
        %v1149 = vadd.f32 %v1065, %v1133
        %v1150 = vadd.f32 %v1066, %v1134
        %v1151 = vadd.f32 %v1067, %v1135
        %v1152 = vadd.f32 %v1068, %v1136
        %v1153 = vadd.f32 %v1069, %v1137
        %v1154 = vadd.f32 %v1070, %v1138
        %v1155 = vadd.f32 %v1071, %v1139
        %1156 = vset.pattern.permute.xlu0 6
        %1157 = vperm.xlu0 %1156, %v716
        %v1158 = vpop.permute.xlu0 %1157
        %v1160 = vmul.f32 %v1158, %v1079
        %v1161 = vmul.f32 %v1158, %v1083
        %v1162 = vmul.f32 %v1158, %v1087
        %v1163 = vmul.f32 %v1158, %v1091
        %v1164 = vmul.f32 %v1158, %v1095
        %v1165 = vmul.f32 %v1158, %v1099
        %v1166 = vmul.f32 %v1158, %v788
        %v1167 = vmul.f32 %v1158, %v792
        %1176 = vrot.lane.b32.xlu0 %v1160, 72
        %v1177 = vpop.permute.xlu0 %1176
        %1178 = vrot.lane.b32.xlu0 %v1161, 72
        %v1179 = vpop.permute.xlu0 %1178
        %1180 = vrot.lane.b32.xlu0 %v1162, 72
        %v1181 = vpop.permute.xlu0 %1180
        %1182 = vrot.lane.b32.xlu0 %v1163, 72
        %v1183 = vpop.permute.xlu0 %1182
        %1184 = vrot.lane.b32.xlu0 %v1164, 72
        %v1185 = vpop.permute.xlu0 %1184
        %1186 = vrot.lane.b32.xlu0 %v1165, 72
        %v1187 = vpop.permute.xlu0 %1186
        %1188 = vrot.lane.b32.xlu0 %v1166, 72
        %v1189 = vpop.permute.xlu0 %1188
        %1190 = vrot.lane.b32.xlu0 %v1167, 72
        %v1191 = vpop.permute.xlu0 %1190
        %vm1192 = vcmask 588800
        %v1193 = vsel %vm1192, %v1177, %v1179
        %v1194 = vsel %vm1192, %v1179, %v1181
        %v1195 = vsel %vm1192, %v1181, %v1183
        %v1196 = vsel %vm1192, %v1183, %v1185
        %v1197 = vsel %vm1192, %v1185, %v1187
        %v1198 = vsel %vm1192, %v1187, %v1189
        %v1199 = vsel %vm1192, %v1189, %v1191
        %v1208 = vadd.f32 %v1148, %v1177
        %v1209 = vadd.f32 %v1149, %v1193
        %v1210 = vadd.f32 %v1150, %v1194
        %v1211 = vadd.f32 %v1151, %v1195
        %v1212 = vadd.f32 %v1152, %v1196
        %v1213 = vadd.f32 %v1153, %v1197
        %v1214 = vadd.f32 %v1154, %v1198
        %v1215 = vadd.f32 %v1155, %v1199
        %1216 = vset.pattern.permute.xlu0 7
        %1217 = vperm.xlu0 %1216, %v716
        %v1218 = vpop.permute.xlu0 %1217
        %v1220 = vmul.f32 %v1218, %v1079
        %v1221 = vmul.f32 %v1218, %v1083
        %v1222 = vmul.f32 %v1218, %v1087
        %v1223 = vmul.f32 %v1218, %v1091
        %v1224 = vmul.f32 %v1218, %v1095
        %v1225 = vmul.f32 %v1218, %v1099
        %v1226 = vmul.f32 %v1218, %v788
        %v1227 = vmul.f32 %v1218, %v792
        %1236 = vrot.lane.b32.xlu0 %v1220, 71
        %v1237 = vpop.permute.xlu0 %1236
        %1238 = vrot.lane.b32.xlu0 %v1221, 71
        %v1239 = vpop.permute.xlu0 %1238
        %1240 = vrot.lane.b32.xlu0 %v1222, 71
        %v1241 = vpop.permute.xlu0 %1240
        %1242 = vrot.lane.b32.xlu0 %v1223, 71
        %v1243 = vpop.permute.xlu0 %1242
        %1244 = vrot.lane.b32.xlu0 %v1224, 71
        %v1245 = vpop.permute.xlu0 %1244
        %1246 = vrot.lane.b32.xlu0 %v1225, 71
        %v1247 = vpop.permute.xlu0 %1246
        %1248 = vrot.lane.b32.xlu0 %v1226, 71
        %v1249 = vpop.permute.xlu0 %1248
        %1250 = vrot.lane.b32.xlu0 %v1227, 71
        %v1251 = vpop.permute.xlu0 %1250
        %vm1252 = vcmask 580608
        %v1253 = vsel %vm1252, %v1237, %v1239
        %v1254 = vsel %vm1252, %v1239, %v1241
        %v1255 = vsel %vm1252, %v1241, %v1243
        %v1256 = vsel %vm1252, %v1243, %v1245
        %v1257 = vsel %vm1252, %v1245, %v1247
        %v1258 = vsel %vm1252, %v1247, %v1249
        %v1259 = vsel %vm1252, %v1249, %v1251
        %v1268 = vadd.f32 %v1208, %v1237
        %v1269 = vadd.f32 %v1209, %v1253
        %v1270 = vadd.f32 %v1210, %v1254
        %v1271 = vadd.f32 %v1211, %v1255
        %v1272 = vadd.f32 %v1212, %v1256
        %v1273 = vadd.f32 %v1213, %v1257
        %v1274 = vadd.f32 %v1214, %v1258
        %v1275 = vadd.f32 %v1215, %v1259
        %1276 = vset.pattern.permute.xlu0 8
        %1277 = vperm.xlu0 %1276, %v716
        %v1278 = vpop.permute.xlu0 %1277
        %v1280 = vmul.f32 %v1278, %v1079
        %v1281 = vmul.f32 %v1278, %v1083
        %v1282 = vmul.f32 %v1278, %v1087
        %v1283 = vmul.f32 %v1278, %v1091
        %v1284 = vmul.f32 %v1278, %v1095
        %v1285 = vmul.f32 %v1278, %v1099
        %v1286 = vmul.f32 %v1278, %v788
        %v1287 = vmul.f32 %v1278, %v792
        %1296 = vrot.lane.b32.xlu0 %v1280, 70
        %v1297 = vpop.permute.xlu0 %1296
        %1298 = vrot.lane.b32.xlu0 %v1281, 70
        %v1299 = vpop.permute.xlu0 %1298
        %1300 = vrot.lane.b32.xlu0 %v1282, 70
        %v1301 = vpop.permute.xlu0 %1300
        %1302 = vrot.lane.b32.xlu0 %v1283, 70
        %v1303 = vpop.permute.xlu0 %1302
        %1304 = vrot.lane.b32.xlu0 %v1284, 70
        %v1305 = vpop.permute.xlu0 %1304
        %1306 = vrot.lane.b32.xlu0 %v1285, 70
        %v1307 = vpop.permute.xlu0 %1306
        %1308 = vrot.lane.b32.xlu0 %v1286, 70
        %v1309 = vpop.permute.xlu0 %1308
        %1310 = vrot.lane.b32.xlu0 %v1287, 70
        %v1311 = vpop.permute.xlu0 %1310
        %vm1312 = vcmask 572416
        %v1313 = vsel %vm1312, %v1297, %v1299
        %v1314 = vsel %vm1312, %v1299, %v1301
        %v1315 = vsel %vm1312, %v1301, %v1303
        %v1316 = vsel %vm1312, %v1303, %v1305
        %v1317 = vsel %vm1312, %v1305, %v1307
        %v1318 = vsel %vm1312, %v1307, %v1309
        %v1319 = vsel %vm1312, %v1309, %v1311
        %v1328 = vadd.f32 %v1268, %v1297
        %v1329 = vadd.f32 %v1269, %v1313
        %v1330 = vadd.f32 %v1270, %v1314
        %v1331 = vadd.f32 %v1271, %v1315
        %v1332 = vadd.f32 %v1272, %v1316
        %v1333 = vadd.f32 %v1273, %v1317
        %v1334 = vadd.f32 %v1274, %v1318
        %v1335 = vadd.f32 %v1275, %v1319
        %v1336 = vld [vmem:[%s2] sm:$0xff]
        %1338 = vset.pattern.permute.xlu0 0
        %1339 = vperm.xlu0 %1338, %v1336
        %v1340 = vpop.permute.xlu0 %1339
        %v1342 = vmul.f32 %v1328, %v1340
        %v1343 = vmul.f32 %v1329, %v1340
        %v1344 = vmul.f32 %v1330, %v1340
        %v1345 = vmul.f32 %v1331, %v1340
        %v1346 = vmul.f32 %v1332, %v1340
        %v1347 = vmul.f32 %v1333, %v1340
        %v1348 = vmul.f32 %v1334, %v1340
        %v1349 = vmul.f32 %v1335, %v1340
        %v1350 = vld [vmem:[%s3] sm:$0xff]
        %1352 = vset.pattern.permute.xlu0 0
        %1353 = vperm.xlu0 %1352, %v1350
        %v1354 = vpop.permute.xlu0 %1353
        %v1356 = vadd.f32 %v1342, %v1354
        %v1357 = vadd.f32 %v1343, %v1354
        %v1358 = vadd.f32 %v1344, %v1354
        %v1359 = vadd.f32 %v1345, %v1354
        %v1360 = vadd.f32 %v1346, %v1354
        %v1361 = vadd.f32 %v1347, %v1354
        %v1362 = vadd.f32 %v1348, %v1354
        %v1363 = vadd.f32 %v1349, %v1354
        %v1364 = vmax.f32 %v1356, 0.0
        %v1365 = vmax.f32 %v1357, 0.0
        %v1366 = vmax.f32 %v1358, 0.0
        %v1367 = vmax.f32 %v1359, 0.0
        %v1368 = vmax.f32 %v1360, 0.0
        %v1369 = vmax.f32 %v1361, 0.0
        %v1370 = vmax.f32 %v1362, 0.0
        %v1371 = vmax.f32 %v1363, 0.0
        %v1372 = vld [vmem:[#allocation5] sm:$0xff]
        %v1374 = vlaneseq
        %v1375 = vshrl.u32 %v1374, 7
        %v1376 = vsub.s32 0, %v1375
        %v1377 = vrot.slane %v1372, %v1376
        %v1378 = vlaneseq
        %v1379 = vshrl.u32 %v1378, 7
        %v1380 = vsub.s32 1, %v1379
        %v1381 = vrot.slane %v1372, %v1380
        %v1382 = vlaneseq
        %v1383 = vshrl.u32 %v1382, 7
        %v1384 = vsub.s32 2, %v1383
        %v1385 = vrot.slane %v1372, %v1384
        %v1386 = vlaneseq
        %v1387 = vshrl.u32 %v1386, 7
        %v1388 = vsub.s32 3, %v1387
        %v1389 = vrot.slane %v1372, %v1388
        %v1390 = vlaneseq
        %v1391 = vshrl.u32 %v1390, 7
        %v1392 = vsub.s32 4, %v1391
        %v1393 = vrot.slane %v1372, %v1392
        %v1394 = vlaneseq
        %v1395 = vshrl.u32 %v1394, 7
        %v1396 = vsub.s32 5, %v1395
        %v1397 = vrot.slane %v1372, %v1396
        %v1398 = vlaneseq
        %v1399 = vshrl.u32 %v1398, 7
        %v1400 = vsub.s32 6, %v1399
        %v1401 = vrot.slane %v1372, %v1400
        %v1402 = vlaneseq
        %v1403 = vshrl.u32 %v1402, 7
        %v1404 = vsub.s32 7, %v1403
        %v1405 = vrot.slane %v1372, %v1404
        %1406 = vrot.lane.b32.xlu0 %v1377, 101
        %v1407 = vpop.permute.xlu0 %1406
        %1408 = vrot.lane.b32.xlu0 %v1381, 101
        %v1409 = vpop.permute.xlu0 %1408
        %1410 = vrot.lane.b32.xlu0 %v1385, 101
        %v1411 = vpop.permute.xlu0 %1410
        %1412 = vrot.lane.b32.xlu0 %v1389, 101
        %v1413 = vpop.permute.xlu0 %1412
        %1414 = vrot.lane.b32.xlu0 %v1393, 101
        %v1415 = vpop.permute.xlu0 %1414
        %1416 = vrot.lane.b32.xlu0 %v1397, 101
        %v1417 = vpop.permute.xlu0 %1416
        %1418 = vrot.lane.b32.xlu0 %v1401, 101
        %v1419 = vpop.permute.xlu0 %1418
        %1420 = vrot.lane.b32.xlu0 %v1405, 101
        %v1421 = vpop.permute.xlu0 %1420
        %v1422 = vsel %vm1048, %v1407, %v1409
        %v1423 = vsel %vm1048, %v1409, %v1411
        %v1424 = vsel %vm1048, %v1411, %v1413
        %v1425 = vsel %vm1048, %v1413, %v1415
        %v1426 = vsel %vm1048, %v1415, %v1417
        %v1427 = vsel %vm1048, %v1417, %v1419
        %v1428 = vsel %vm1048, %v1419, %v1421
        %v1437 = vadd.f32 %v1364, %v1407
        %v1438 = vadd.f32 %v1365, %v1422
        %v1439 = vadd.f32 %v1366, %v1423
        %v1440 = vadd.f32 %v1367, %v1424
        %v1441 = vadd.f32 %v1368, %v1425
        %v1442 = vadd.f32 %v1369, %v1426
        %v1443 = vadd.f32 %v1370, %v1427
        %v1444 = vadd.f32 %v1371, %v1428
        %1453 = vrot.lane.b32.xlu0 %v1437, 27
        %v1454 = vpop.permute.xlu0 %1453
        %1455 = vrot.lane.b32.xlu0 %v1438, 27
        %v1456 = vpop.permute.xlu0 %1455
        %1457 = vrot.lane.b32.xlu0 %v1439, 27
        %v1458 = vpop.permute.xlu0 %1457
        %1459 = vrot.lane.b32.xlu0 %v1440, 27
        %v1460 = vpop.permute.xlu0 %1459
        %1461 = vrot.lane.b32.xlu0 %v1441, 27
        %v1462 = vpop.permute.xlu0 %1461
        %1463 = vrot.lane.b32.xlu0 %v1442, 27
        %v1464 = vpop.permute.xlu0 %1463
        %1465 = vrot.lane.b32.xlu0 %v1443, 27
        %v1466 = vpop.permute.xlu0 %1465
        %1467 = vrot.lane.b32.xlu0 %v1444, 27
        %v1468 = vpop.permute.xlu0 %1467
        %vm1469 = vcmask 220160
        %v1470 = vsel %vm1469, %v1454, %v1456
        %v1471 = vsel %vm1469, %v1456, %v1458
        %v1472 = vsel %vm1469, %v1458, %v1460
        %v1473 = vsel %vm1469, %v1460, %v1462
        %v1474 = vsel %vm1469, %v1462, %v1464
        %v1475 = vsel %vm1469, %v1464, %v1466
        %v1476 = vsel %vm1469, %v1466, %v1468
        %1485 = vrot.lane.b32.xlu0 %v1470, 4
        %v1486 = vpop.permute.xlu0 %1485
        %1487 = vrot.lane.b32.xlu0 %v1471, 4
        %v1488 = vpop.permute.xlu0 %1487
        %1489 = vrot.lane.b32.xlu0 %v1472, 4
        %v1490 = vpop.permute.xlu0 %1489
        %1491 = vrot.lane.b32.xlu0 %v1473, 4
        %v1492 = vpop.permute.xlu0 %1491
        %1493 = vrot.lane.b32.xlu0 %v1474, 4
        %v1494 = vpop.permute.xlu0 %1493
        %1495 = vrot.lane.b32.xlu0 %v1475, 4
        %v1496 = vpop.permute.xlu0 %1495
        %1497 = vrot.lane.b32.xlu0 %v1476, 4
        %v1498 = vpop.permute.xlu0 %1497
        %v1499 = vsel %vm758, %v1486, %v1468
        %v1500 = vsel %vm758, %v1488, %v1486
        %v1501 = vsel %vm758, %v1490, %v1488
        %v1502 = vsel %vm758, %v1492, %v1490
        %v1503 = vsel %vm758, %v1494, %v1492
        %v1504 = vsel %vm758, %v1496, %v1494
        %v1505 = vsel %vm758, %v1498, %v1496
        %1506 = vrot.lane.b32.xlu0 %v1437, 1
        %v1507 = vpop.permute.xlu0 %1506
        %1508 = vrot.lane.b32.xlu0 %v1438, 1
        %v1509 = vpop.permute.xlu0 %1508
        %1510 = vrot.lane.b32.xlu0 %v1439, 1
        %v1511 = vpop.permute.xlu0 %1510
        %1512 = vrot.lane.b32.xlu0 %v1440, 1
        %v1513 = vpop.permute.xlu0 %1512
        %1514 = vrot.lane.b32.xlu0 %v1441, 1
        %v1515 = vpop.permute.xlu0 %1514
        %1516 = vrot.lane.b32.xlu0 %v1442, 1
        %v1517 = vpop.permute.xlu0 %1516
        %1518 = vrot.lane.b32.xlu0 %v1443, 1
        %v1519 = vpop.permute.xlu0 %1518
        %1520 = vrot.lane.b32.xlu0 %v1444, 1
        %v1521 = vpop.permute.xlu0 %1520
        %vm1522 = vcmask 7168
        %v1523 = vsel %vm1522, %v1507, %v1509
        %v1524 = vsel %vm1522, %v1509, %v1511
        %v1525 = vsel %vm1522, %v1511, %v1513
        %v1526 = vsel %vm1522, %v1513, %v1515
        %v1527 = vsel %vm1522, %v1515, %v1517
        %v1528 = vsel %vm1522, %v1517, %v1519
        %v1529 = vsel %vm1522, %v1519, %v1521
        %v1538 = vmax.f32 %v1476, %v1507
        %v1539 = vmax.f32 %v1499, %v1523
        %v1540 = vmax.f32 %v1500, %v1524
        %v1541 = vmax.f32 %v1501, %v1525
        %v1542 = vmax.f32 %v1502, %v1526
        %v1543 = vmax.f32 %v1503, %v1527
        %v1544 = vmax.f32 %v1504, %v1528
        %v1545 = vmax.f32 %v1505, %v1529
        %1547 = vrot.lane.b32.xlu0 %v1470, 72
        %v1548 = vpop.permute.xlu0 %1547
        %1549 = vrot.lane.b32.xlu0 %v1471, 72
        %v1550 = vpop.permute.xlu0 %1549
        %1551 = vrot.lane.b32.xlu0 %v1472, 72
        %v1552 = vpop.permute.xlu0 %1551
        %1553 = vrot.lane.b32.xlu0 %v1473, 72
        %v1554 = vpop.permute.xlu0 %1553
        %1555 = vrot.lane.b32.xlu0 %v1474, 72
        %v1556 = vpop.permute.xlu0 %1555
        %1557 = vrot.lane.b32.xlu0 %v1475, 72
        %v1558 = vpop.permute.xlu0 %1557
        %1559 = vrot.lane.b32.xlu0 %v1476, 72
        %v1560 = vpop.permute.xlu0 %1559
        %1561 = vrot.lane.b32.xlu0 %v1499, 72
        %v1562 = vpop.permute.xlu0 %1561
        %v1563 = vsel %vm1192, %v1548, %v1550
        %v1564 = vsel %vm1192, %v1550, %v1552
        %v1565 = vsel %vm1192, %v1552, %v1554
        %v1566 = vsel %vm1192, %v1554, %v1556
        %v1567 = vsel %vm1192, %v1556, %v1558
        %v1568 = vsel %vm1192, %v1558, %v1560
        %v1569 = vsel %vm1192, %v1560, %v1562
        %v1578 = vmax.f32 %v1538, %v1548
        %v1579 = vmax.f32 %v1539, %v1563
        %v1580 = vmax.f32 %v1540, %v1564
        %v1581 = vmax.f32 %v1541, %v1565
        %v1582 = vmax.f32 %v1542, %v1566
        %v1583 = vmax.f32 %v1543, %v1567
        %v1584 = vmax.f32 %v1544, %v1568
        %v1585 = vmax.f32 %v1545, %v1569
        %1594 = vrot.lane.b32.xlu0 %v1578, 26
        %v1595 = vpop.permute.xlu0 %1594
        %1596 = vrot.lane.b32.xlu0 %v1579, 26
        %v1597 = vpop.permute.xlu0 %1596
        %1598 = vrot.lane.b32.xlu0 %v1580, 26
        %v1599 = vpop.permute.xlu0 %1598
        %1600 = vrot.lane.b32.xlu0 %v1581, 26
        %v1601 = vpop.permute.xlu0 %1600
        %1602 = vrot.lane.b32.xlu0 %v1582, 26
        %v1603 = vpop.permute.xlu0 %1602
        %1604 = vrot.lane.b32.xlu0 %v1583, 26
        %v1605 = vpop.permute.xlu0 %1604
        %1606 = vrot.lane.b32.xlu0 %v1584, 26
        %v1607 = vpop.permute.xlu0 %1606
        %1608 = vrot.lane.b32.xlu0 %v1585, 26
        %v1609 = vpop.permute.xlu0 %1608
        %vm1610 = vcmask 211968
        %v1611 = vsel %vm1610, %v1595, %v1597
        %v1612 = vsel %vm1610, %v1597, %v1599
        %v1613 = vsel %vm1610, %v1599, %v1601
        %v1614 = vsel %vm1610, %v1601, %v1603
        %v1615 = vsel %vm1610, %v1603, %v1605
        %v1616 = vsel %vm1610, %v1605, %v1607
        %v1617 = vsel %vm1610, %v1607, %v1609
        %1626 = vrot.lane.b32.xlu0 %v1611, 4
        %v1627 = vpop.permute.xlu0 %1626
        %v1628 = vsel %vm758, %v1627, %v1609
        %1629 = vrot.lane.b32.xlu0 %v1612, 4
        %v1630 = vpop.permute.xlu0 %1629
        %1631 = vrot.lane.b32.xlu0 %v1613, 4
        %v1632 = vpop.permute.xlu0 %1631
        %1633 = vrot.lane.b32.xlu0 %v1614, 4
        %v1634 = vpop.permute.xlu0 %1633
        %1635 = vrot.lane.b32.xlu0 %v1615, 4
        %v1636 = vpop.permute.xlu0 %1635
        %1637 = vrot.lane.b32.xlu0 %v1616, 4
        %v1638 = vpop.permute.xlu0 %1637
        %1639 = vrot.lane.b32.xlu0 %v1617, 4
        %v1640 = vpop.permute.xlu0 %1639
        %1641 = vrot.lane.b32.xlu0 %v1628, 4
        %v1642 = vpop.permute.xlu0 %1641
        %v1643 = vsel %vm758, %v1630, %v1627
        %v1644 = vsel %vm758, %v1632, %v1630
        %v1645 = vsel %vm758, %v1634, %v1632
        %v1646 = vsel %vm758, %v1636, %v1634
        %v1647 = vsel %vm758, %v1638, %v1636
        %v1648 = vsel %vm758, %v1640, %v1638
        %v1649 = vsel %vm758, %v1642, %v1640
        %1650 = vrot.lane.b32.xlu0 %v1578, 29
        %v1651 = vpop.permute.xlu0 %1650
        %1652 = vrot.lane.b32.xlu0 %v1579, 29
        %v1653 = vpop.permute.xlu0 %1652
        %1654 = vrot.lane.b32.xlu0 %v1580, 29
        %v1655 = vpop.permute.xlu0 %1654
        %1656 = vrot.lane.b32.xlu0 %v1581, 29
        %v1657 = vpop.permute.xlu0 %1656
        %1658 = vrot.lane.b32.xlu0 %v1582, 29
        %v1659 = vpop.permute.xlu0 %1658
        %1660 = vrot.lane.b32.xlu0 %v1583, 29
        %v1661 = vpop.permute.xlu0 %1660
        %1662 = vrot.lane.b32.xlu0 %v1584, 29
        %v1663 = vpop.permute.xlu0 %1662
        %1664 = vrot.lane.b32.xlu0 %v1585, 29
        %v1665 = vpop.permute.xlu0 %1664
        %vm1666 = vcmask 236544
        %v1667 = vsel %vm1666, %v1651, %v1653
        %v1668 = vsel %vm1666, %v1653, %v1655
        %v1669 = vsel %vm1666, %v1655, %v1657
        %v1670 = vsel %vm1666, %v1657, %v1659
        %v1671 = vsel %vm1666, %v1659, %v1661
        %v1672 = vsel %vm1666, %v1661, %v1663
        %v1673 = vsel %vm1666, %v1663, %v1665
        %v1682 = vmax.f32 %v1628, %v1667
        %v1683 = vmax.f32 %v1643, %v1668
        %v1684 = vmax.f32 %v1644, %v1669
        %v1685 = vmax.f32 %v1645, %v1670
        %v1686 = vmax.f32 %v1646, %v1671
        %v1687 = vmax.f32 %v1647, %v1672
        %v1688 = vmax.f32 %v1648, %v1673
        %v1689 = vmax.f32 %v1649, %v1665
        %1691 = vrot.lane.b32.xlu0 %v1611, 2
        %v1692 = vpop.permute.xlu0 %1691
        %1693 = vrot.lane.b32.xlu0 %v1612, 2
        %v1694 = vpop.permute.xlu0 %1693
        %1695 = vrot.lane.b32.xlu0 %v1613, 2
        %v1696 = vpop.permute.xlu0 %1695
        %1697 = vrot.lane.b32.xlu0 %v1614, 2
        %v1698 = vpop.permute.xlu0 %1697
        %1699 = vrot.lane.b32.xlu0 %v1615, 2
        %v1700 = vpop.permute.xlu0 %1699
        %1701 = vrot.lane.b32.xlu0 %v1616, 2
        %v1702 = vpop.permute.xlu0 %1701
        %1703 = vrot.lane.b32.xlu0 %v1617, 2
        %v1704 = vpop.permute.xlu0 %1703
        %1705 = vrot.lane.b32.xlu0 %v1628, 2
        %v1706 = vpop.permute.xlu0 %1705
        %vm1707 = vcmask 15360
        %v1708 = vsel %vm1707, %v1692, %v1694
        %v1709 = vsel %vm1707, %v1694, %v1696
        %v1710 = vsel %vm1707, %v1696, %v1698
        %v1711 = vsel %vm1707, %v1698, %v1700
        %v1712 = vsel %vm1707, %v1700, %v1702
        %v1713 = vsel %vm1707, %v1702, %v1704
        %v1714 = vsel %vm1707, %v1704, %v1706
        %v1723 = vmax.f32 %v1682, %v1692
        %v1724 = vmax.f32 %v1683, %v1708
        %v1725 = vmax.f32 %v1684, %v1709
        %v1726 = vmax.f32 %v1685, %v1710
        %v1727 = vmax.f32 %v1686, %v1711
        %v1728 = vmax.f32 %v1687, %v1712
        %v1729 = vmax.f32 %v1688, %v1713
        %v1730 = vmax.f32 %v1689, %v1714
        %v1731 = vpack.c.bf16 %v1723, %v1723
        %v1732 = vpack.c.bf16 %v1724, %v1724
        %v1733 = vpack.c.bf16 %v1725, %v1725
        %v1734 = vpack.c.bf16 %v1726, %v1726
        %v1735 = vpack.c.bf16 %v1727, %v1727
        %v1736 = vpack.c.bf16 %v1728, %v1728
        %v1737 = vpack.c.bf16 %v1729, %v1729
        %v1738 = vpack.c.bf16 %v1730, %v1730
        %v1739 = vld [vmem:[%s5] sm:$0xff]
        %v1740 = vld [vmem:[%s5 + $0x8] sm:$0xff]
        %v1741 = vld [vmem:[%s5 + $0x10] sm:$0xff]
        %v1742 = vld [vmem:[%s5 + $0x18] sm:$0xff]
        %v1743 = vld [vmem:[%s5 + $0x20] sm:$0xff]
        %v1744 = vld [vmem:[%s5 + $0x28] sm:$0xff]
        %v1745 = vld [vmem:[%s5 + $0x30] sm:$0xff]
        %v1746 = vld [vmem:[%s5 + $0x38] sm:$0xff]
        %v1747 = vld [vmem:[%s5 + $0x40] sm:$0xff]
        %v1748 = vld [vmem:[%s5 + $0x48] sm:$0xff]
        %v1749 = vld [vmem:[%s5 + $0x50] sm:$0xff]
        %v1750 = vld [vmem:[%s5 + $0x58] sm:$0xff]
        %v1751 = vld [vmem:[%s5 + $0x60] sm:$0xff]
        %v1752 = vld [vmem:[%s5 + $0x68] sm:$0xff]
        %v1753 = vld [vmem:[%s5 + $0x70] sm:$0xff]
        %v1754 = vld [vmem:[%s5 + $0x78] sm:$0xff]
        %v1755 = vld [vmem:[%s5 + $0x80] sm:$0xff]
        %v1756 = vld [vmem:[%s5 + $0x88] sm:$0xff]
        %v1757 = vld [vmem:[%s5 + $0x90] sm:$0xff]
        %v1758 = vld [vmem:[%s5 + $0x98] sm:$0xff]
        %v1759 = vld [vmem:[%s5 + $0xa0] sm:$0xff]
        %v1760 = vld [vmem:[%s5 + $0xa8] sm:$0xff]
        %v1761 = vld [vmem:[%s5 + $0xb0] sm:$0xff]
        %v1762 = vld [vmem:[%s5 + $0xb8] sm:$0xff]
        %v1763 = vld [vmem:[%s5 + $0xc0] sm:$0xff]
        %v1764 = vld [vmem:[%s5 + $0xc8] sm:$0xff]
        %v1765 = vld [vmem:[%s5 + $0xd0] sm:$0xff]
        %v1766 = vld [vmem:[%s5 + $0xd8] sm:$0xff]
        %v1767 = vld [vmem:[%s5 + $0xe0] sm:$0xff]
        %v1768 = vld [vmem:[%s5 + $0xe8] sm:$0xff]
        %v1769 = vld [vmem:[%s5 + $0xf0] sm:$0xff]
        %v1770 = vld [vmem:[%s5 + $0xf8] sm:$0xff]
        %v1771 = vld [vmem:[%s5 + $0x100] sm:$0xff]
        %v1772 = vld [vmem:[%s5 + $0x108] sm:$0xff]
        %v1773 = vld [vmem:[%s5 + $0x110] sm:$0xff]
        %v1774 = vld [vmem:[%s5 + $0x118] sm:$0xff]
        %v1775 = vld [vmem:[%s5 + $0x120] sm:$0xff]
        %v1776 = vld [vmem:[%s5 + $0x128] sm:$0xff]
        %v1777 = vld [vmem:[%s5 + $0x130] sm:$0xff]
        %v1778 = vld [vmem:[%s5 + $0x138] sm:$0xff]
        %v1779 = vld [vmem:[%s5 + $0x140] sm:$0xff]
        %v1780 = vld [vmem:[%s5 + $0x148] sm:$0xff]
        %v1781 = vld [vmem:[%s5 + $0x150] sm:$0xff]
        %v1782 = vld [vmem:[%s5 + $0x158] sm:$0xff]
        %v1783 = vld [vmem:[%s5 + $0x160] sm:$0xff]
        %v1784 = vld [vmem:[%s5 + $0x168] sm:$0xff]
        %v1785 = vld [vmem:[%s5 + $0x170] sm:$0xff]
        %v1786 = vld [vmem:[%s5 + $0x178] sm:$0xff]
        %v1787 = vld [vmem:[%s5 + $0x180] sm:$0xff]
        %v1788 = vld [vmem:[%s5 + $0x188] sm:$0xff]
        %v1789 = vld [vmem:[%s5 + $0x190] sm:$0xff]
        %v1790 = vld [vmem:[%s5 + $0x198] sm:$0xff]
        %v1791 = vld [vmem:[%s5 + $0x1a0] sm:$0xff]
        %v1792 = vld [vmem:[%s5 + $0x1a8] sm:$0xff]
        %v1793 = vld [vmem:[%s5 + $0x1b0] sm:$0xff]
        %v1794 = vld [vmem:[%s5 + $0x1b8] sm:$0xff]
        %v1795 = vld [vmem:[%s5 + $0x1c0] sm:$0xff]
        %v1796 = vld [vmem:[%s5 + $0x1c8] sm:$0xff]
        %v1797 = vld [vmem:[%s5 + $0x1d0] sm:$0xff]
        %v1798 = vld [vmem:[%s5 + $0x1d8] sm:$0xff]
        %v1799 = vld [vmem:[%s5 + $0x1e0] sm:$0xff]
        %v1800 = vld [vmem:[%s5 + $0x1e8] sm:$0xff]
        %v1801 = vld [vmem:[%s5 + $0x1f0] sm:$0xff]
        %v1802 = vld [vmem:[%s5 + $0x1f8] sm:$0xff]
        %v1803 = vld [vmem:[%s5 + $0x200] sm:$0xff]
        %v1804 = vld [vmem:[%s5 + $0x208] sm:$0xff]
        %v1805 = vld [vmem:[%s5 + $0x210] sm:$0xff]
        %v1806 = vld [vmem:[%s5 + $0x218] sm:$0xff]
        %v1807 = vld [vmem:[%s5 + $0x220] sm:$0xff]
        %v1808 = vld [vmem:[%s5 + $0x228] sm:$0xff]
        %v1809 = vld [vmem:[%s5 + $0x230] sm:$0xff]
        %v1810 = vld [vmem:[%s5 + $0x238] sm:$0xff]
        %v1811 = vld [vmem:[%s5 + $0x240] sm:$0xff]
        %v1812 = vld [vmem:[%s5 + $0x248] sm:$0xff]
        %v1813 = vld [vmem:[%s5 + $0x250] sm:$0xff]
        %v1814 = vld [vmem:[%s5 + $0x258] sm:$0xff]
        %v1815 = vld [vmem:[%s5 + $0x260] sm:$0xff]
        %v1816 = vld [vmem:[%s5 + $0x268] sm:$0xff]
        %v1817 = vld [vmem:[%s5 + $0x270] sm:$0xff]
        %v1818 = vld [vmem:[%s5 + $0x278] sm:$0xff]
        %v1819 = vld [vmem:[%s5 + $0x280] sm:$0xff]
        %v1820 = vld [vmem:[%s5 + $0x288] sm:$0xff]
        %v1821 = vld [vmem:[%s5 + $0x290] sm:$0xff]
        %v1822 = vld [vmem:[%s5 + $0x298] sm:$0xff]
        %v1823 = vld [vmem:[%s5 + $0x2a0] sm:$0xff]
        %v1824 = vld [vmem:[%s5 + $0x2a8] sm:$0xff]
        %v1825 = vld [vmem:[%s5 + $0x2b0] sm:$0xff]
        %v1826 = vld [vmem:[%s5 + $0x2b8] sm:$0xff]
        %v1827 = vld [vmem:[%s5 + $0x2c0] sm:$0xff]
        %v1828 = vld [vmem:[%s5 + $0x2c8] sm:$0xff]
        %v1829 = vld [vmem:[%s5 + $0x2d0] sm:$0xff]
        %v1830 = vld [vmem:[%s5 + $0x2d8] sm:$0xff]
        %v1831 = vld [vmem:[%s5 + $0x2e0] sm:$0xff]
        %v1832 = vld [vmem:[%s5 + $0x2e8] sm:$0xff]
        %v1833 = vld [vmem:[%s5 + $0x2f0] sm:$0xff]
        %v1834 = vld [vmem:[%s5 + $0x2f8] sm:$0xff]
        %v1835 = vld [vmem:[%s5 + $0x300] sm:$0xff]
        %v1836 = vld [vmem:[%s5 + $0x308] sm:$0xff]
        %v1837 = vld [vmem:[%s5 + $0x310] sm:$0xff]
        %v1838 = vld [vmem:[%s5 + $0x318] sm:$0xff]
        %v1839 = vld [vmem:[%s5 + $0x320] sm:$0xff]
        %v1840 = vld [vmem:[%s5 + $0x328] sm:$0xff]
        %v1841 = vld [vmem:[%s5 + $0x330] sm:$0xff]
        %v1842 = vld [vmem:[%s5 + $0x338] sm:$0xff]
        %v1843 = vld [vmem:[%s5 + $0x340] sm:$0xff]
        %v1844 = vld [vmem:[%s5 + $0x348] sm:$0xff]
        %v1845 = vld [vmem:[%s5 + $0x350] sm:$0xff]
        %v1846 = vld [vmem:[%s5 + $0x358] sm:$0xff]
        %v1847 = vld [vmem:[%s5 + $0x360] sm:$0xff]
        %v1848 = vld [vmem:[%s5 + $0x368] sm:$0xff]
        %v1849 = vld [vmem:[%s5 + $0x370] sm:$0xff]
        %v1850 = vld [vmem:[%s5 + $0x378] sm:$0xff]
        %v1851 = vld [vmem:[%s5 + $0x380] sm:$0x33]
        %1860 = vrot.lane.b32.xlu0 %v1731, 125
        %v1861 = vpop.permute.xlu0 %1860
        %1862 = vrot.lane.b32.xlu0 %v1732, 125
        %v1863 = vpop.permute.xlu0 %1862
        %1864 = vrot.lane.b32.xlu0 %v1733, 125
        %v1865 = vpop.permute.xlu0 %1864
        %1866 = vrot.lane.b32.xlu0 %v1734, 125
        %v1867 = vpop.permute.xlu0 %1866
        %1868 = vrot.lane.b32.xlu0 %v1735, 125
        %v1869 = vpop.permute.xlu0 %1868
        %1870 = vrot.lane.b32.xlu0 %v1736, 125
        %v1871 = vpop.permute.xlu0 %1870
        %1872 = vrot.lane.b32.xlu0 %v1737, 125
        %v1873 = vpop.permute.xlu0 %1872
        %1874 = vrot.lane.b32.xlu0 %v1738, 125
        %v1875 = vpop.permute.xlu0 %1874
        %vm1876 = vcmask 1022976
        %v1877 = vsel %vm1876, %v1861, %v1863
        %v1878 = vsel %vm1876, %v1863, %v1865
        %v1879 = vsel %vm1876, %v1865, %v1867
        %v1880 = vsel %vm1876, %v1867, %v1869
        %v1881 = vsel %vm1876, %v1869, %v1871
        %v1882 = vsel %vm1876, %v1871, %v1873
        %v1883 = vsel %vm1876, %v1873, %v1875
        %v2004 = vunpack.c.l.b16 %v1739
        %v2005 = vunpack.c.h.b16 %v1739
        %v2006 = vunpack.c.l.b16 %v1740
        %v2007 = vunpack.c.h.b16 %v1740
        %v2008 = vunpack.c.l.b16 %v1741
        %v2009 = vunpack.c.h.b16 %v1741
        %v2010 = vunpack.c.l.b16 %v1742
        %v2011 = vunpack.c.h.b16 %v1742
        %v2012 = vunpack.c.l.b16 %v1743
        %v2013 = vunpack.c.h.b16 %v1743
        %v2014 = vunpack.c.l.b16 %v1744
        %v2015 = vunpack.c.h.b16 %v1744
        %v2016 = vunpack.c.l.b16 %v1745
        %v2017 = vunpack.c.h.b16 %v1745
        %v2018 = vunpack.c.l.b16 %v1746
        %v2019 = vunpack.c.h.b16 %v1746
        %v2020 = vunpack.c.l.b16 %v1747
        %v2021 = vunpack.c.h.b16 %v1747
        %v2022 = vunpack.c.l.b16 %v1748
        %v2023 = vunpack.c.h.b16 %v1748
        %v2024 = vunpack.c.l.b16 %v1749
        %v2025 = vunpack.c.h.b16 %v1749
        %v2026 = vunpack.c.l.b16 %v1750
        %v2027 = vunpack.c.h.b16 %v1750
        %v2028 = vunpack.c.l.b16 %v1751
        %v2029 = vunpack.c.h.b16 %v1751
        %v2030 = vunpack.c.l.b16 %v1752
        %v2031 = vunpack.c.h.b16 %v1752
        %v2032 = vunpack.c.l.b16 %v1753
        %v2033 = vunpack.c.h.b16 %v1753
        %v2034 = vunpack.c.l.b16 %v1754
        %v2035 = vunpack.c.h.b16 %v1754
        %v2036 = vunpack.c.l.b16 %v1755
        %v2037 = vunpack.c.h.b16 %v1755
        %v2038 = vunpack.c.l.b16 %v1756
        %v2039 = vunpack.c.h.b16 %v1756
        %v2040 = vunpack.c.l.b16 %v1757
        %v2041 = vunpack.c.h.b16 %v1757
        %v2042 = vunpack.c.l.b16 %v1758
        %v2043 = vunpack.c.h.b16 %v1758
        %v2044 = vunpack.c.l.b16 %v1759
        %v2045 = vunpack.c.h.b16 %v1759
        %v2046 = vunpack.c.l.b16 %v1760
        %v2047 = vunpack.c.h.b16 %v1760
        %v2048 = vunpack.c.l.b16 %v1761
        %v2049 = vunpack.c.h.b16 %v1761
        %v2050 = vunpack.c.l.b16 %v1762
        %v2051 = vunpack.c.h.b16 %v1762
        %v2052 = vunpack.c.l.b16 %v1763
        %v2053 = vunpack.c.h.b16 %v1763
        %v2054 = vunpack.c.l.b16 %v1764
        %v2055 = vunpack.c.h.b16 %v1764
        %v2056 = vunpack.c.l.b16 %v1765
        %v2057 = vunpack.c.h.b16 %v1765
        %v2058 = vunpack.c.l.b16 %v1766
        %v2059 = vunpack.c.h.b16 %v1766
        %v2060 = vunpack.c.l.b16 %v1767
        %v2061 = vunpack.c.h.b16 %v1767
        %v2062 = vunpack.c.l.b16 %v1768
        %v2063 = vunpack.c.h.b16 %v1768
        %v2064 = vunpack.c.l.b16 %v1769
        %v2065 = vunpack.c.h.b16 %v1769
        %v2066 = vunpack.c.l.b16 %v1770
        %v2067 = vunpack.c.h.b16 %v1770
        %v2068 = vunpack.c.l.b16 %v1771
        %v2069 = vunpack.c.h.b16 %v1771
        %v2070 = vunpack.c.l.b16 %v1772
        %v2071 = vunpack.c.h.b16 %v1772
        %v2072 = vunpack.c.l.b16 %v1773
        %v2073 = vunpack.c.h.b16 %v1773
        %v2074 = vunpack.c.l.b16 %v1774
        %v2075 = vunpack.c.h.b16 %v1774
        %v2076 = vunpack.c.l.b16 %v1775
        %v2077 = vunpack.c.h.b16 %v1775
        %v2078 = vunpack.c.l.b16 %v1776
        %v2079 = vunpack.c.h.b16 %v1776
        %v2080 = vunpack.c.l.b16 %v1777
        %v2081 = vunpack.c.h.b16 %v1777
        %v2082 = vunpack.c.l.b16 %v1778
        %v2083 = vunpack.c.h.b16 %v1778
        %v2084 = vunpack.c.l.b16 %v1779
        %v2085 = vunpack.c.h.b16 %v1779
        %v2086 = vunpack.c.l.b16 %v1780
        %v2087 = vunpack.c.h.b16 %v1780
        %v2088 = vunpack.c.l.b16 %v1781
        %v2089 = vunpack.c.h.b16 %v1781
        %v2090 = vunpack.c.l.b16 %v1782
        %v2091 = vunpack.c.h.b16 %v1782
        %v2092 = vunpack.c.l.b16 %v1783
        %v2093 = vunpack.c.h.b16 %v1783
        %v2094 = vunpack.c.l.b16 %v1784
        %v2095 = vunpack.c.h.b16 %v1784
        %v2096 = vunpack.c.l.b16 %v1785
        %v2097 = vunpack.c.h.b16 %v1785
        %v2098 = vunpack.c.l.b16 %v1786
        %v2099 = vunpack.c.h.b16 %v1786
        %v2100 = vunpack.c.l.b16 %v1787
        %v2101 = vunpack.c.h.b16 %v1787
        %v2102 = vunpack.c.l.b16 %v1788
        %v2103 = vunpack.c.h.b16 %v1788
        %v2104 = vunpack.c.l.b16 %v1789
        %v2105 = vunpack.c.h.b16 %v1789
        %v2106 = vunpack.c.l.b16 %v1790
        %v2107 = vunpack.c.h.b16 %v1790
        %v2108 = vunpack.c.l.b16 %v1791
        %v2109 = vunpack.c.h.b16 %v1791
        %v2110 = vunpack.c.l.b16 %v1792
        %v2111 = vunpack.c.h.b16 %v1792
        %v2112 = vunpack.c.l.b16 %v1793
        %v2113 = vunpack.c.h.b16 %v1793
        %v2114 = vunpack.c.l.b16 %v1794
        %v2115 = vunpack.c.h.b16 %v1794
        %v2116 = vunpack.c.l.b16 %v1795
        %v2117 = vunpack.c.h.b16 %v1795
        %v2118 = vunpack.c.l.b16 %v1796
        %v2119 = vunpack.c.h.b16 %v1796
        %v2120 = vunpack.c.l.b16 %v1797
        %v2121 = vunpack.c.h.b16 %v1797
        %v2122 = vunpack.c.l.b16 %v1798
        %v2123 = vunpack.c.h.b16 %v1798
        %v2124 = vunpack.c.l.b16 %v1799
        %v2125 = vunpack.c.h.b16 %v1799
        %v2126 = vunpack.c.l.b16 %v1800
        %v2127 = vunpack.c.h.b16 %v1800
        %v2128 = vunpack.c.l.b16 %v1801
        %v2129 = vunpack.c.h.b16 %v1801
        %v2130 = vunpack.c.l.b16 %v1802
        %v2131 = vunpack.c.h.b16 %v1802
        %v2132 = vunpack.c.l.b16 %v1803
        %v2133 = vunpack.c.h.b16 %v1803
        %v2134 = vunpack.c.l.b16 %v1804
        %v2135 = vunpack.c.h.b16 %v1804
        %v2136 = vunpack.c.l.b16 %v1805
        %v2137 = vunpack.c.h.b16 %v1805
        %v2138 = vunpack.c.l.b16 %v1806
        %v2139 = vunpack.c.h.b16 %v1806
        %v2140 = vunpack.c.l.b16 %v1807
        %v2141 = vunpack.c.h.b16 %v1807
        %v2142 = vunpack.c.l.b16 %v1808
        %v2143 = vunpack.c.h.b16 %v1808
        %v2144 = vunpack.c.l.b16 %v1809
        %v2145 = vunpack.c.h.b16 %v1809
        %v2146 = vunpack.c.l.b16 %v1810
        %v2147 = vunpack.c.h.b16 %v1810
        %v2148 = vunpack.c.l.b16 %v1811
        %v2149 = vunpack.c.h.b16 %v1811
        %v2150 = vunpack.c.l.b16 %v1812
        %v2151 = vunpack.c.h.b16 %v1812
        %v2152 = vunpack.c.l.b16 %v1813
        %v2153 = vunpack.c.h.b16 %v1813
        %v2154 = vunpack.c.l.b16 %v1814
        %v2155 = vunpack.c.h.b16 %v1814
        %v2156 = vunpack.c.l.b16 %v1815
        %v2157 = vunpack.c.h.b16 %v1815
        %v2158 = vunpack.c.l.b16 %v1816
        %v2159 = vunpack.c.h.b16 %v1816
        %v2160 = vunpack.c.l.b16 %v1817
        %v2161 = vunpack.c.h.b16 %v1817
        %v2162 = vunpack.c.l.b16 %v1818
        %v2163 = vunpack.c.h.b16 %v1818
        %v2164 = vunpack.c.l.b16 %v1819
        %v2165 = vunpack.c.h.b16 %v1819
        %v2166 = vunpack.c.l.b16 %v1820
        %v2167 = vunpack.c.h.b16 %v1820
        %v2168 = vunpack.c.l.b16 %v1821
        %v2169 = vunpack.c.h.b16 %v1821
        %v2170 = vunpack.c.l.b16 %v1822
        %v2171 = vunpack.c.h.b16 %v1822
        %v2172 = vunpack.c.l.b16 %v1823
        %v2173 = vunpack.c.h.b16 %v1823
        %v2174 = vunpack.c.l.b16 %v1824
        %v2175 = vunpack.c.h.b16 %v1824
        %v2176 = vunpack.c.l.b16 %v1825
        %v2177 = vunpack.c.h.b16 %v1825
        %v2178 = vunpack.c.l.b16 %v1826
        %v2179 = vunpack.c.h.b16 %v1826
        %v2180 = vunpack.c.l.b16 %v1827
        %v2181 = vunpack.c.h.b16 %v1827
        %v2182 = vunpack.c.l.b16 %v1828
        %v2183 = vunpack.c.h.b16 %v1828
        %v2184 = vunpack.c.l.b16 %v1829
        %v2185 = vunpack.c.h.b16 %v1829
        %v2186 = vunpack.c.l.b16 %v1830
        %v2187 = vunpack.c.h.b16 %v1830
        %v2188 = vunpack.c.l.b16 %v1831
        %v2189 = vunpack.c.h.b16 %v1831
        %v2190 = vunpack.c.l.b16 %v1832
        %v2191 = vunpack.c.h.b16 %v1832
        %v2192 = vunpack.c.l.b16 %v1833
        %v2193 = vunpack.c.h.b16 %v1833
        %v2194 = vunpack.c.l.b16 %v1834
        %v2195 = vunpack.c.h.b16 %v1834
        %v2196 = vunpack.c.l.b16 %v1835
        %v2197 = vunpack.c.h.b16 %v1835
        %v2198 = vunpack.c.l.b16 %v1836
        %v2199 = vunpack.c.h.b16 %v1836
        %v2200 = vunpack.c.l.b16 %v1837
        %v2201 = vunpack.c.h.b16 %v1837
        %v2202 = vunpack.c.l.b16 %v1838
        %v2203 = vunpack.c.h.b16 %v1838
        %v2204 = vunpack.c.l.b16 %v1839
        %v2205 = vunpack.c.h.b16 %v1839
        %v2206 = vunpack.c.l.b16 %v1840
        %v2207 = vunpack.c.h.b16 %v1840
        %v2208 = vunpack.c.l.b16 %v1841
        %v2209 = vunpack.c.h.b16 %v1841
        %v2210 = vunpack.c.l.b16 %v1842
        %v2211 = vunpack.c.h.b16 %v1842
        %v2212 = vunpack.c.l.b16 %v1843
        %v2213 = vunpack.c.h.b16 %v1843
        %v2214 = vunpack.c.l.b16 %v1844
        %v2215 = vunpack.c.h.b16 %v1844
        %v2216 = vunpack.c.l.b16 %v1845
        %v2217 = vunpack.c.h.b16 %v1845
        %v2218 = vunpack.c.l.b16 %v1846
        %v2219 = vunpack.c.h.b16 %v1846
        %v2220 = vunpack.c.l.b16 %v1847
        %v2221 = vunpack.c.h.b16 %v1847
        %v2222 = vunpack.c.l.b16 %v1848
        %v2223 = vunpack.c.h.b16 %v1848
        %v2224 = vunpack.c.l.b16 %v1849
        %v2225 = vunpack.c.h.b16 %v1849
        %v2226 = vunpack.c.l.b16 %v1850
        %v2227 = vunpack.c.h.b16 %v1850
        %v2228 = vunpack.c.l.b16 %v1851
        %v2229 = vunpack.c.h.b16 %v1851
        %v2230 = vpack.c.b16 %v2006, %v2004
        %v2231 = vpack.c.b16 %v2007, %v2005
        %v2232 = vpack.c.b16 %v2010, %v2008
        %v2233 = vpack.c.b16 %v2011, %v2009
        %v2234 = vpack.c.b16 %v2014, %v2012
        %v2235 = vpack.c.b16 %v2015, %v2013
        %v2236 = vpack.c.b16 %v2018, %v2016
        %v2237 = vpack.c.b16 %v2019, %v2017
        %v2238 = vpack.c.b16 %v2022, %v2020
        %v2239 = vpack.c.b16 %v2023, %v2021
        %v2240 = vpack.c.b16 %v2026, %v2024
        %v2241 = vpack.c.b16 %v2027, %v2025
        %v2242 = vpack.c.b16 %v2030, %v2028
        %v2243 = vpack.c.b16 %v2031, %v2029
        %v2244 = vpack.c.b16 %v2034, %v2032
        %v2245 = vpack.c.b16 %v2035, %v2033
        %v2246 = vpack.c.b16 %v2038, %v2036
        %v2247 = vpack.c.b16 %v2039, %v2037
        %v2248 = vpack.c.b16 %v2042, %v2040
        %v2249 = vpack.c.b16 %v2043, %v2041
        %v2250 = vpack.c.b16 %v2046, %v2044
        %v2251 = vpack.c.b16 %v2047, %v2045
        %v2252 = vpack.c.b16 %v2050, %v2048
        %v2253 = vpack.c.b16 %v2051, %v2049
        %v2254 = vpack.c.b16 %v2054, %v2052
        %v2255 = vpack.c.b16 %v2055, %v2053
        %v2256 = vpack.c.b16 %v2058, %v2056
        %v2257 = vpack.c.b16 %v2059, %v2057
        %v2258 = vpack.c.b16 %v2062, %v2060
        %v2259 = vpack.c.b16 %v2063, %v2061
        %v2260 = vpack.c.b16 %v2066, %v2064
        %v2261 = vpack.c.b16 %v2067, %v2065
        %v2262 = vpack.c.b16 %v2070, %v2068
        %v2263 = vpack.c.b16 %v2071, %v2069
        %v2264 = vpack.c.b16 %v2074, %v2072
        %v2265 = vpack.c.b16 %v2075, %v2073
        %v2266 = vpack.c.b16 %v2078, %v2076
        %v2267 = vpack.c.b16 %v2079, %v2077
        %v2268 = vpack.c.b16 %v2082, %v2080
        %v2269 = vpack.c.b16 %v2083, %v2081
        %v2270 = vpack.c.b16 %v2086, %v2084
        %v2271 = vpack.c.b16 %v2087, %v2085
        %v2272 = vpack.c.b16 %v2090, %v2088
        %v2273 = vpack.c.b16 %v2091, %v2089
        %v2274 = vpack.c.b16 %v2094, %v2092
        %v2275 = vpack.c.b16 %v2095, %v2093
        %v2276 = vpack.c.b16 %v2098, %v2096
        %v2277 = vpack.c.b16 %v2099, %v2097
        %v2278 = vpack.c.b16 %v2102, %v2100
        %v2279 = vpack.c.b16 %v2103, %v2101
        %v2280 = vpack.c.b16 %v2106, %v2104
        %v2281 = vpack.c.b16 %v2107, %v2105
        %v2282 = vpack.c.b16 %v2110, %v2108
        %v2283 = vpack.c.b16 %v2111, %v2109
        %v2284 = vpack.c.b16 %v2114, %v2112
        %v2285 = vpack.c.b16 %v2115, %v2113
        %v2286 = vpack.c.b16 %v2118, %v2116
        %v2287 = vpack.c.b16 %v2119, %v2117
        %v2288 = vpack.c.b16 %v2122, %v2120
        %v2289 = vpack.c.b16 %v2123, %v2121
        %v2290 = vpack.c.b16 %v2126, %v2124
        %v2291 = vpack.c.b16 %v2127, %v2125
        %v2292 = vpack.c.b16 %v2130, %v2128
        %v2293 = vpack.c.b16 %v2131, %v2129
        %v2294 = vpack.c.b16 %v2134, %v2132
        %v2295 = vpack.c.b16 %v2135, %v2133
        %v2296 = vpack.c.b16 %v2138, %v2136
        %v2297 = vpack.c.b16 %v2139, %v2137
        %v2298 = vpack.c.b16 %v2142, %v2140
        %v2299 = vpack.c.b16 %v2143, %v2141
        %v2300 = vpack.c.b16 %v2146, %v2144
        %v2301 = vpack.c.b16 %v2147, %v2145
        %v2302 = vpack.c.b16 %v2150, %v2148
        %v2303 = vpack.c.b16 %v2151, %v2149
        %v2304 = vpack.c.b16 %v2154, %v2152
        %v2305 = vpack.c.b16 %v2155, %v2153
        %v2306 = vpack.c.b16 %v2158, %v2156
        %v2307 = vpack.c.b16 %v2159, %v2157
        %v2308 = vpack.c.b16 %v2162, %v2160
        %v2309 = vpack.c.b16 %v2163, %v2161
        %v2310 = vpack.c.b16 %v2166, %v2164
        %v2311 = vpack.c.b16 %v2167, %v2165
        %v2312 = vpack.c.b16 %v2170, %v2168
        %v2313 = vpack.c.b16 %v2171, %v2169
        %v2314 = vpack.c.b16 %v2174, %v2172
        %v2315 = vpack.c.b16 %v2175, %v2173
        %v2316 = vpack.c.b16 %v2178, %v2176
        %v2317 = vpack.c.b16 %v2179, %v2177
        %v2318 = vpack.c.b16 %v2182, %v2180
        %v2319 = vpack.c.b16 %v2183, %v2181
        %v2320 = vpack.c.b16 %v2186, %v2184
        %v2321 = vpack.c.b16 %v2187, %v2185
        %v2322 = vpack.c.b16 %v2190, %v2188
        %v2323 = vpack.c.b16 %v2191, %v2189
        %v2324 = vpack.c.b16 %v2194, %v2192
        %v2325 = vpack.c.b16 %v2195, %v2193
        %v2326 = vpack.c.b16 %v2198, %v2196
        %v2327 = vpack.c.b16 %v2199, %v2197
        %v2328 = vpack.c.b16 %v2202, %v2200
        %v2329 = vpack.c.b16 %v2203, %v2201
        %v2330 = vpack.c.b16 %v2206, %v2204
        %v2331 = vpack.c.b16 %v2207, %v2205
        %v2332 = vpack.c.b16 %v2210, %v2208
        %v2333 = vpack.c.b16 %v2211, %v2209
        %v2334 = vpack.c.b16 %v2214, %v2212
        %v2335 = vpack.c.b16 %v2215, %v2213
        %v2336 = vpack.c.b16 %v2218, %v2216
        %v2337 = vpack.c.b16 %v2219, %v2217
        %v2338 = vpack.c.b16 %v2222, %v2220
        %v2339 = vpack.c.b16 %v2223, %v2221
        %v2340 = vpack.c.b16 %v2226, %v2224
        %v2341 = vpack.c.b16 %v2227, %v2225
        %v2342 = vpack.c.b16 %v2228, %v2228
        %v2343 = vpack.c.b16 %v2229, %v2229
        %vm2456 = vcmask 31744
        %v2458 = vsel %vm2456, %v1875, 0
        %vm2460 = vcmask 1041408
        %v2462 = vsel %vm2460, %v2342, 0
        %v2465 = vsel %vm2460, %v2343, 0
        %2467 = vmatprep.subr.bf16.mxu0 %v2231
        %2468 = vmatpush1.bf16.msra.mxu0 %v2230
        %2469 = vmatprep.subr.bf16.mxu0 %v2233
        %2470 = vmatpush1.bf16.msra.mxu0 %v2232
        %2471 = vmatprep.subr.bf16.mxu0 %v2235
        %2472 = vmatpush1.bf16.msra.mxu0 %v2234
        %2473 = vmatprep.subr.bf16.mxu0 %v2237
        %2474 = vmatpush1.bf16.msra.mxu0 %v2236
        %2475 = vmatprep.subr.bf16.mxu0 %v2239
        %2476 = vmatpush1.bf16.msra.mxu0 %v2238
        %2477 = vmatprep.subr.bf16.mxu0 %v2241
        %2478 = vmatpush1.bf16.msra.mxu0 %v2240
        %2479 = vmatprep.subr.bf16.mxu0 %v2243
        %2480 = vmatpush1.bf16.msra.mxu0 %v2242
        %2481 = vmatprep.subr.bf16.mxu0 %v2245
        %2482 = vmatpush1.bf16.msra.mxu0 %v2244
        %2483 = vmatprep.subr.bf16.mxu0 %v2247
        %2484 = vmatpush1.bf16.msra.mxu0 %v2246
        %2485 = vmatprep.subr.bf16.mxu0 %v2249
        %2486 = vmatpush1.bf16.msra.mxu0 %v2248
        %2487 = vmatprep.subr.bf16.mxu0 %v2251
        %2488 = vmatpush1.bf16.msra.mxu0 %v2250
        %2489 = vmatprep.subr.bf16.mxu0 %v2253
        %2490 = vmatpush1.bf16.msra.mxu0 %v2252
        %2491 = vmatprep.subr.bf16.mxu0 %v2255
        %2492 = vmatpush1.bf16.msra.mxu0 %v2254
        %2493 = vmatprep.subr.bf16.mxu0 %v2257
        %2494 = vmatpush1.bf16.msra.mxu0 %v2256
        %2495 = vmatprep.subr.bf16.mxu0 %v2259
        %2496 = vmatpush1.bf16.msra.mxu0 %v2258
        %2497 = vmatprep.subr.bf16.mxu0 %v2261
        %2498 = vmatpush1.bf16.msra.mxu0 %v2260
        %2499 = vmatprep.mubr.bf16.mxu0 %v1878
        %2500 = vmatmul.mubr.bf16.gmra.mrb[0].mxu0 %v1877
        %v2501 = vpop.f32.mrb[0].mxu0
        %v2502 = vadd.f32 0.0, %v2501
        %v2503 = vpop.f32.mrb[0].mxu0
        %v2504 = vadd.f32 0.0, %v2503
        %v2505 = vpop.f32.mrb[0].mxu0
        %v2506 = vpop.f32.mrb[0].mxu0
        %2507 = vdwg.mxu0
        %2508 = vmatprep.subr.bf16.mxu0 %v2263
        %2509 = vmatpush1.bf16.msra.mxu0 %v2262
        %2510 = vmatprep.subr.bf16.mxu0 %v2265
        %2511 = vmatpush1.bf16.msra.mxu0 %v2264
        %2512 = vmatprep.subr.bf16.mxu0 %v2267
        %2513 = vmatpush1.bf16.msra.mxu0 %v2266
        %2514 = vmatprep.subr.bf16.mxu0 %v2269
        %2515 = vmatpush1.bf16.msra.mxu0 %v2268
        %2516 = vmatprep.subr.bf16.mxu0 %v2271
        %2517 = vmatpush1.bf16.msra.mxu0 %v2270
        %2518 = vmatprep.subr.bf16.mxu0 %v2273
        %2519 = vmatpush1.bf16.msra.mxu0 %v2272
        %2520 = vmatprep.subr.bf16.mxu0 %v2275
        %2521 = vmatpush1.bf16.msra.mxu0 %v2274
        %2522 = vmatprep.subr.bf16.mxu0 %v2277
        %2523 = vmatpush1.bf16.msra.mxu0 %v2276
        %2524 = vmatprep.subr.bf16.mxu0 %v2279
        %2525 = vmatpush1.bf16.msra.mxu0 %v2278
        %2526 = vmatprep.subr.bf16.mxu0 %v2281
        %2527 = vmatpush1.bf16.msra.mxu0 %v2280
        %2528 = vmatprep.subr.bf16.mxu0 %v2283
        %2529 = vmatpush1.bf16.msra.mxu0 %v2282
        %2530 = vmatprep.subr.bf16.mxu0 %v2285
        %2531 = vmatpush1.bf16.msra.mxu0 %v2284
        %2532 = vmatprep.subr.bf16.mxu0 %v2287
        %2533 = vmatpush1.bf16.msra.mxu0 %v2286
        %2534 = vmatprep.subr.bf16.mxu0 %v2289
        %2535 = vmatpush1.bf16.msra.mxu0 %v2288
        %2536 = vmatprep.subr.bf16.mxu0 %v2291
        %2537 = vmatpush1.bf16.msra.mxu0 %v2290
        %2538 = vmatprep.subr.bf16.mxu0 %v2293
        %2539 = vmatpush1.bf16.msra.mxu0 %v2292
        %2540 = vmatprep.mubr.bf16.mxu0 %v1880
        %2541 = vmatmul.mubr.bf16.gmra.mrb[0].mxu0 %v1879
        %v2542 = vpop.f32.mrb[0].mxu0
        %v2543 = vadd.f32 %v2502, %v2542
        %v2544 = vpop.f32.mrb[0].mxu0
        %v2545 = vadd.f32 %v2504, %v2544
        %v2546 = vpop.f32.mrb[0].mxu0
        %v2547 = vpop.f32.mrb[0].mxu0
        %2548 = vdwg.mxu0
        %2549 = vmatprep.subr.bf16.mxu0 %v2295
        %2550 = vmatpush1.bf16.msra.mxu0 %v2294
        %2551 = vmatprep.subr.bf16.mxu0 %v2297
        %2552 = vmatpush1.bf16.msra.mxu0 %v2296
        %2553 = vmatprep.subr.bf16.mxu0 %v2299
        %2554 = vmatpush1.bf16.msra.mxu0 %v2298
        %2555 = vmatprep.subr.bf16.mxu0 %v2301
        %2556 = vmatpush1.bf16.msra.mxu0 %v2300
        %2557 = vmatprep.subr.bf16.mxu0 %v2303
        %2558 = vmatpush1.bf16.msra.mxu0 %v2302
        %2559 = vmatprep.subr.bf16.mxu0 %v2305
        %2560 = vmatpush1.bf16.msra.mxu0 %v2304
        %2561 = vmatprep.subr.bf16.mxu0 %v2307
        %2562 = vmatpush1.bf16.msra.mxu0 %v2306
        %2563 = vmatprep.subr.bf16.mxu0 %v2309
        %2564 = vmatpush1.bf16.msra.mxu0 %v2308
        %2565 = vmatprep.subr.bf16.mxu0 %v2311
        %2566 = vmatpush1.bf16.msra.mxu0 %v2310
        %2567 = vmatprep.subr.bf16.mxu0 %v2313
        %2568 = vmatpush1.bf16.msra.mxu0 %v2312
        %2569 = vmatprep.subr.bf16.mxu0 %v2315
        %2570 = vmatpush1.bf16.msra.mxu0 %v2314
        %2571 = vmatprep.subr.bf16.mxu0 %v2317
        %2572 = vmatpush1.bf16.msra.mxu0 %v2316
        %2573 = vmatprep.subr.bf16.mxu0 %v2319
        %2574 = vmatpush1.bf16.msra.mxu0 %v2318
        %2575 = vmatprep.subr.bf16.mxu0 %v2321
        %2576 = vmatpush1.bf16.msra.mxu0 %v2320
        %2577 = vmatprep.subr.bf16.mxu0 %v2323
        %2578 = vmatpush1.bf16.msra.mxu0 %v2322
        %2579 = vmatprep.subr.bf16.mxu0 %v2325
        %2580 = vmatpush1.bf16.msra.mxu0 %v2324
        %2581 = vmatprep.mubr.bf16.mxu0 %v1882
        %2582 = vmatmul.mubr.bf16.gmra.mrb[0].mxu0 %v1881
        %v2583 = vpop.f32.mrb[0].mxu0
        %v2584 = vadd.f32 %v2543, %v2583
        %v2585 = vpop.f32.mrb[0].mxu0
        %v2586 = vadd.f32 %v2545, %v2585
        %v2587 = vpop.f32.mrb[0].mxu0
        %v2588 = vpop.f32.mrb[0].mxu0
        %2589 = vdwg.mxu0
        %2590 = vmatprep.subr.bf16.mxu0 %v2327
        %2591 = vmatpush1.bf16.msra.mxu0 %v2326
        %2592 = vmatprep.subr.bf16.mxu0 %v2329
        %2593 = vmatpush1.bf16.msra.mxu0 %v2328
        %2594 = vmatprep.subr.bf16.mxu0 %v2331
        %2595 = vmatpush1.bf16.msra.mxu0 %v2330
        %2596 = vmatprep.subr.bf16.mxu0 %v2333
        %2597 = vmatpush1.bf16.msra.mxu0 %v2332
        %2598 = vmatprep.subr.bf16.mxu0 %v2335
        %2599 = vmatpush1.bf16.msra.mxu0 %v2334
        %2600 = vmatprep.subr.bf16.mxu0 %v2337
        %2601 = vmatpush1.bf16.msra.mxu0 %v2336
        %2602 = vmatprep.subr.bf16.mxu0 %v2339
        %2603 = vmatpush1.bf16.msra.mxu0 %v2338
        %2604 = vmatprep.subr.bf16.mxu0 %v2341
        %2605 = vmatpush1.bf16.msra.mxu0 %v2340
        %2606 = vmatprep.subr.bf16.mxu0 %v2465
        %2607 = vmatpush1.bf16.msra.mxu0 %v2462
        %2608 = vmatprep.subr.bf16.mxu0 0
        %2609 = vmatpush1.bf16.msra.mxu0 0
        %2610 = vmatprep.subr.bf16.mxu0 0
        %2611 = vmatpush1.bf16.msra.mxu0 0
        %2612 = vmatprep.subr.bf16.mxu0 0
        %2613 = vmatpush1.bf16.msra.mxu0 0
        %2614 = vmatprep.subr.bf16.mxu0 0
        %2615 = vmatpush1.bf16.msra.mxu0 0
        %2616 = vmatprep.subr.bf16.mxu0 0
        %2617 = vmatpush1.bf16.msra.mxu0 0
        %2618 = vmatprep.subr.bf16.mxu0 0
        %2619 = vmatpush1.bf16.msra.mxu0 0
        %2620 = vmatprep.subr.bf16.mxu0 0
        %2621 = vmatpush1.bf16.msra.mxu0 0
        %2622 = vmatprep.mubr.bf16.mxu0 %v2458
        %2623 = vmatmul.mubr.bf16.gmra.mrb[0].mxu0 %v1883
        %v2624 = vpop.f32.mrb[0].mxu0
        %v2625 = vadd.f32 %v2584, %v2624
        %v2626 = vpop.f32.mrb[0].mxu0
        %v2627 = vadd.f32 %v2586, %v2626
        %v2628 = vpop.f32.mrb[0].mxu0
        %v2629 = vpop.f32.mrb[0].mxu0
        %2630 = vdwg.mxu0
        %2631 = vrot.lane.b32.xlu0 %v2625, 17
        %v2632 = vpop.permute.xlu0 %2631
        %2633 = vrot.lane.b32.xlu0 %v2627, 17
        %v2634 = vpop.permute.xlu0 %2633
        %v2635 = vlaneseq
        %v2636 = vand.u32 %v2635, 127
        %vm2637 = vcmp.lt.s32.totalorder %v2636, 17
        %v2638 = vsel %vm2637, %v2632, %v2634
        %v2639 = vsel %vm2637, %v2634, %v2632
        %2640 = vrot.lane.b32.xlu0 %v2625, 16
        %v2641 = vpop.permute.xlu0 %2640
        %2642 = vrot.lane.b32.xlu0 %v2627, 16
        %v2643 = vpop.permute.xlu0 %2642
        %vm2644 = vcmp.lt.s32.totalorder %v2636, 16
        %v2645 = vsel %vm2644, %v2641, %v2643
        %v2646 = vsel %vm2644, %v2643, %v2641
        %2647 = vrot.lane.b32.xlu0 %v2625, 15
        %v2648 = vpop.permute.xlu0 %2647
        %2649 = vrot.lane.b32.xlu0 %v2627, 15
        %v2650 = vpop.permute.xlu0 %2649
        %vm2651 = vcmp.lt.s32.totalorder %v2636, 15
        %v2652 = vsel %vm2651, %v2648, %v2650
        %v2653 = vsel %vm2651, %v2650, %v2648
        %2654 = vrot.lane.b32.xlu0 %v2625, 1
        %v2655 = vpop.permute.xlu0 %2654
        %2656 = vrot.lane.b32.xlu0 %v2627, 1
        %v2657 = vpop.permute.xlu0 %2656
        %vm2658 = vcmp.lt.s32.totalorder %v2636, 1
        %v2659 = vsel %vm2658, %v2655, %v2657
        %v2660 = vsel %vm2658, %v2657, %v2655
        %2661 = vrot.lane.b32.xlu0 %v2625, 127
        %v2662 = vpop.permute.xlu0 %2661
        %2663 = vrot.lane.b32.xlu0 %v2627, 127
        %v2664 = vpop.permute.xlu0 %2663
        %vm2665 = vcmp.lt.s32.totalorder %v2636, 127
        %v2666 = vsel %vm2665, %v2662, %v2664
        %v2667 = vsel %vm2665, %v2664, %v2662
        %2668 = vrot.lane.b32.xlu0 %v2625, 113
        %v2669 = vpop.permute.xlu0 %2668
        %2670 = vrot.lane.b32.xlu0 %v2627, 113
        %v2671 = vpop.permute.xlu0 %2670
        %vm2672 = vcmp.lt.s32.totalorder %v2636, 113
        %v2673 = vsel %vm2672, %v2669, %v2671
        %v2674 = vsel %vm2672, %v2671, %v2669
        %2675 = vrot.lane.b32.xlu0 %v2625, 112
        %v2676 = vpop.permute.xlu0 %2675
        %2677 = vrot.lane.b32.xlu0 %v2627, 112
        %v2678 = vpop.permute.xlu0 %2677
        %vm2679 = vcmp.lt.s32.totalorder %v2636, 112
        %v2680 = vsel %vm2679, %v2676, %v2678
        %v2681 = vsel %vm2679, %v2678, %v2676
        %2682 = vrot.lane.b32.xlu0 %v2625, 111
        %v2683 = vpop.permute.xlu0 %2682
        %2684 = vrot.lane.b32.xlu0 %v2627, 111
        %v2685 = vpop.permute.xlu0 %2684
        %vm2686 = vcmp.lt.s32.totalorder %v2636, 111
        %v2687 = vsel %vm2686, %v2683, %v2685
        %v2688 = vsel %vm2686, %v2685, %v2683
        %v2689 = vpack.c.bf16 %v2646, %v2639
        %v2690 = vpack.c.bf16 %v2645, %v2638
        %v2691 = vpack.c.bf16 %v2660, %v2653
        %v2692 = vpack.c.bf16 %v2659, %v2652
        %v2693 = vpack.c.bf16 %v2666, %v2625
        %v2694 = vpack.c.bf16 %v2667, %v2627
        %v2695 = vpack.c.bf16 %v2680, %v2673
        %v2696 = vpack.c.bf16 %v2681, %v2674
        %v2697 = vpack.c.bf16 %v2687, %v2687
        %v2698 = vpack.c.bf16 %v2688, %v2688
        %v2699 = vld [vmem:[#allocation7] sm:$0xf]
        %v2701 = vsel %vm1192, %v2699, 0
        %vm2703 = vcmask 1043456
        %v2705 = vsel %vm2703, %v2697, 0
        %v2708 = vsel %vm2703, %v2698, 0
        %2710 = vmatprep.subr.bf16.mxu0 %v2690
        %2711 = vmatpush1.bf16.msra.mxu0 %v2689
        %2712 = vmatprep.subr.bf16.mxu0 %v2692
        %2713 = vmatpush1.bf16.msra.mxu0 %v2691
        %2714 = vmatprep.subr.bf16.mxu0 %v2694
        %2715 = vmatpush1.bf16.msra.mxu0 %v2693
        %2716 = vmatprep.subr.bf16.mxu0 %v2696
        %2717 = vmatpush1.bf16.msra.mxu0 %v2695
        %2718 = vmatprep.subr.bf16.mxu0 %v2708
        %2719 = vmatpush1.bf16.msra.mxu0 %v2705
        %2720 = vmatprep.subr.bf16.mxu0 0
        %2721 = vmatpush1.bf16.msra.mxu0 0
        %2722 = vmatprep.subr.bf16.mxu0 0
        %2723 = vmatpush1.bf16.msra.mxu0 0
        %2724 = vmatprep.subr.bf16.mxu0 0
        %2725 = vmatpush1.bf16.msra.mxu0 0
        %2726 = vmatprep.subr.bf16.mxu0 0
        %2727 = vmatpush1.bf16.msra.mxu0 0
        %2728 = vmatprep.subr.bf16.mxu0 0
        %2729 = vmatpush1.bf16.msra.mxu0 0
        %2730 = vmatprep.subr.bf16.mxu0 0
        %2731 = vmatpush1.bf16.msra.mxu0 0
        %2732 = vmatprep.subr.bf16.mxu0 0
        %2733 = vmatpush1.bf16.msra.mxu0 0
        %2734 = vmatprep.subr.bf16.mxu0 0
        %2735 = vmatpush1.bf16.msra.mxu0 0
        %2736 = vmatprep.subr.bf16.mxu0 0
        %2737 = vmatpush1.bf16.msra.mxu0 0
        %2738 = vmatprep.subr.bf16.mxu0 0
        %2739 = vmatpush1.bf16.msra.mxu0 0
        %2740 = vmatprep.subr.bf16.mxu0 0
        %2741 = vmatpush1.bf16.msra.mxu0 0
        %2742 = vmatprep.mubr.bf16.mxu0 0
        %2743 = vmatmul.mubr.bf16.gmra.mrb[0].mxu0 %v2701
        %v2744 = vpop.f32.mrb[0].mxu0
        %v2745 = vadd.f32 0.0, %v2744
        %v2746 = vpop.f32.mrb[0].mxu0
        %v2747 = vadd.f32 0.0, %v2746
        %v2748 = vpop.f32.mrb[0].mxu0
        %v2749 = vpop.f32.mrb[0].mxu0
        %2750 = vdwg.mxu0
        %v2751 = vld [vmem:[%s7] sm:$0xff]
        %2753 = vset.pattern.permute.xlu0 0
        %2754 = vperm.xlu0 %2753, %v2751
        %v2755 = vpop.permute.xlu0 %2754
        %v2757 = vmul.f32 %v2745, %v2755
        %v2758 = vmul.f32 %v2747, %v2755
        %v2759 = vld [vmem:[%s8] sm:$0xff]
        %2761 = vset.pattern.permute.xlu0 0
        %2762 = vperm.xlu0 %2761, %v2759
        %v2763 = vpop.permute.xlu0 %2762
        %v2765 = vadd.f32 %v2757, %v2763
        %v2766 = vadd.f32 %v2758, %v2763
        %v2767 = vmax.f32 %v2765, 0.0
        %v2768 = vmax.f32 %v2766, 0.0
        %v2769 = vld [vmem:[#allocation8] sm:$0x3]
        %v2771 = vlaneseq
        %v2772 = vshrl.u32 %v2771, 7
        %v2773 = vsub.s32 0, %v2772
        %v2774 = vrot.slane %v2769, %v2773
        %v2775 = vlaneseq
        %v2776 = vshrl.u32 %v2775, 7
        %v2777 = vsub.s32 1, %v2776
        %v2778 = vrot.slane %v2769, %v2777
        %v2781 = vadd.f32 %v2767, %v2774
        %v2782 = vadd.f32 %v2768, %v2778
        %2783 = vrot.lane.b32.xlu0 %v2781, 16
        %v2784 = vpop.permute.xlu0 %2783
        %2785 = vrot.lane.b32.xlu0 %v2782, 16
        %v2786 = vpop.permute.xlu0 %2785
        %v2787 = vsel %vm2644, %v2784, %v2786
        %v2788 = vsel %vm2644, %v2786, %v2784
        %v2789 = vmax.f32 %v2788, %v2781
        %v2790 = vmax.f32 %v2787, %v2782
        %2791 = vrot.lane.b32.xlu0 %v2781, 112
        %v2792 = vpop.permute.xlu0 %2791
        %2793 = vrot.lane.b32.xlu0 %v2782, 112
        %v2794 = vpop.permute.xlu0 %2793
        %v2795 = vsel %vm2679, %v2792, %v2794
        %v2796 = vsel %vm2679, %v2794, %v2792
        %v2797 = vmax.f32 %v2789, %v2795
        %v2798 = vmax.f32 %v2790, %v2796
        %2799 = vrot.lane.b32.xlu0 %v2797, 1
        %v2800 = vpop.permute.xlu0 %2799
        %2801 = vrot.lane.b32.xlu0 %v2798, 1
        %v2802 = vpop.permute.xlu0 %2801
        %v2803 = vsel %vm2658, %v2800, %v2802
        %v2804 = vsel %vm2658, %v2802, %v2800
        %v2805 = vmax.f32 %v2804, %v2797
        %v2806 = vmax.f32 %v2803, %v2798
        %2807 = vrot.lane.b32.xlu0 %v2797, 127
        %v2808 = vpop.permute.xlu0 %2807
        %2809 = vrot.lane.b32.xlu0 %v2798, 127
        %v2810 = vpop.permute.xlu0 %2809
        %v2811 = vsel %vm2665, %v2808, %v2810
        %v2812 = vsel %vm2665, %v2810, %v2808
        %v2813 = vmax.f32 %v2805, %v2811
        %v2814 = vmax.f32 %v2806, %v2812
        %v2815 = vpack.c.bf16 %v2813, %v2813
        %v2816 = vpack.c.bf16 %v2814, %v2814
        %v2817 = vld [vmem:[%s10] sm:$0xf]
        %v2818 = vld [vmem:[%s10 + $0x4] sm:$0xf]
        %v2819 = vld [vmem:[%s10 + $0x8] sm:$0xf]
        %v2820 = vld [vmem:[%s10 + $0xc] sm:$0xf]
        %v2821 = vld [vmem:[%s10 + $0x10] sm:$0xf]
        %v2822 = vld [vmem:[%s10 + $0x14] sm:$0xf]
        %v2823 = vld [vmem:[%s10 + $0x18] sm:$0xf]
        %v2824 = vld [vmem:[%s10 + $0x1c] sm:$0xf]
        %v2825 = vld [vmem:[%s10 + $0x20] sm:$0xf]
        %v2826 = vld [vmem:[%s10 + $0x24] sm:$0xf]
        %v2827 = vld [vmem:[%s10 + $0x28] sm:$0xf]
        %v2828 = vld [vmem:[%s10 + $0x2c] sm:$0xf]
        %v2829 = vld [vmem:[%s10 + $0x30] sm:$0xf]
        %v2830 = vld [vmem:[%s10 + $0x34] sm:$0xf]
        %v2831 = vld [vmem:[%s10 + $0x38] sm:$0xf]
        %v2832 = vld [vmem:[%s10 + $0x3c] sm:$0xf]
        %v2833 = vld [vmem:[%s10 + $0x40] sm:$0xf]
        %v2834 = vld [vmem:[%s10 + $0x44] sm:$0xf]
        %v2835 = vld [vmem:[%s10 + $0x48] sm:$0xf]
        %v2836 = vld [vmem:[%s10 + $0x4c] sm:$0xf]
        %v2837 = vld [vmem:[%s10 + $0x50] sm:$0xf]
        %v2838 = vld [vmem:[%s10 + $0x54] sm:$0xf]
        %v2839 = vld [vmem:[%s10 + $0x58] sm:$0xf]
        %v2840 = vld [vmem:[%s10 + $0x5c] sm:$0xf]
        %v2841 = vld [vmem:[%s10 + $0x60] sm:$0xf]
        %v2842 = vld [vmem:[%s10 + $0x64] sm:$0xf]
        %v2843 = vld [vmem:[%s10 + $0x68] sm:$0xf]
        %v2844 = vld [vmem:[%s10 + $0x6c] sm:$0xf]
        %v2845 = vld [vmem:[%s10 + $0x70] sm:$0xf]
        %v2846 = vld [vmem:[%s10 + $0x74] sm:$0xf]
        %v2847 = vld [vmem:[%s10 + $0x78] sm:$0xf]
        %v2848 = vld [vmem:[%s10 + $0x7c] sm:$0xf]
        %v2881 = vunpack.c.l.b16 %v2817
        %v2882 = vunpack.c.l.b16 %v2818
        %v2883 = vunpack.c.l.b16 %v2819
        %v2884 = vunpack.c.l.b16 %v2820
        %v2885 = vunpack.c.l.b16 %v2821
        %v2886 = vunpack.c.l.b16 %v2822
        %v2887 = vunpack.c.l.b16 %v2823
        %v2888 = vunpack.c.l.b16 %v2824
        %v2889 = vunpack.c.l.b16 %v2825
        %v2890 = vunpack.c.l.b16 %v2826
        %v2891 = vunpack.c.l.b16 %v2827
        %v2892 = vunpack.c.l.b16 %v2828
        %v2893 = vunpack.c.l.b16 %v2829
        %v2894 = vunpack.c.l.b16 %v2830
        %v2895 = vunpack.c.l.b16 %v2831
        %v2896 = vunpack.c.l.b16 %v2832
        %v2897 = vunpack.c.l.b16 %v2833
        %v2898 = vunpack.c.l.b16 %v2834
        %v2899 = vunpack.c.l.b16 %v2835
        %v2900 = vunpack.c.l.b16 %v2836
        %v2901 = vunpack.c.l.b16 %v2837
        %v2902 = vunpack.c.l.b16 %v2838
        %v2903 = vunpack.c.l.b16 %v2839
        %v2904 = vunpack.c.l.b16 %v2840
        %v2905 = vunpack.c.l.b16 %v2841
        %v2906 = vunpack.c.l.b16 %v2842
        %v2907 = vunpack.c.l.b16 %v2843
        %v2908 = vunpack.c.l.b16 %v2844
        %v2909 = vunpack.c.l.b16 %v2845
        %v2910 = vunpack.c.l.b16 %v2846
        %v2911 = vunpack.c.l.b16 %v2847
        %v2912 = vunpack.c.l.b16 %v2848
        %v2913 = vpack.c.b16 %v2882, %v2881
        %v2914 = vpack.c.b16 %v2884, %v2883
        %v2915 = vpack.c.b16 %v2886, %v2885
        %v2916 = vpack.c.b16 %v2888, %v2887
        %v2917 = vpack.c.b16 %v2890, %v2889
        %v2918 = vpack.c.b16 %v2892, %v2891
        %v2919 = vpack.c.b16 %v2894, %v2893
        %v2920 = vpack.c.b16 %v2896, %v2895
        %v2921 = vpack.c.b16 %v2898, %v2897
        %v2922 = vpack.c.b16 %v2900, %v2899
        %v2923 = vpack.c.b16 %v2902, %v2901
        %v2924 = vpack.c.b16 %v2904, %v2903
        %v2925 = vpack.c.b16 %v2906, %v2905
        %v2926 = vpack.c.b16 %v2908, %v2907
        %v2927 = vpack.c.b16 %v2910, %v2909
        %v2928 = vpack.c.b16 %v2912, %v2911
        %2945 = vmatprep.subr.bf16.mxu0 0
        %2946 = vmatpush1.bf16.msra.mxu0 %v2913
        %2947 = vmatprep.subr.bf16.mxu0 0
        %2948 = vmatpush1.bf16.msra.mxu0 %v2914
        %2949 = vmatprep.subr.bf16.mxu0 0
        %2950 = vmatpush1.bf16.msra.mxu0 %v2915
        %2951 = vmatprep.subr.bf16.mxu0 0
        %2952 = vmatpush1.bf16.msra.mxu0 %v2916
        %2953 = vmatprep.subr.bf16.mxu0 0
        %2954 = vmatpush1.bf16.msra.mxu0 %v2917
        %2955 = vmatprep.subr.bf16.mxu0 0
        %2956 = vmatpush1.bf16.msra.mxu0 %v2918
        %2957 = vmatprep.subr.bf16.mxu0 0
        %2958 = vmatpush1.bf16.msra.mxu0 %v2919
        %2959 = vmatprep.subr.bf16.mxu0 0
        %2960 = vmatpush1.bf16.msra.mxu0 %v2920
        %2961 = vmatprep.subr.bf16.mxu0 0
        %2962 = vmatpush1.bf16.msra.mxu0 %v2921
        %2963 = vmatprep.subr.bf16.mxu0 0
        %2964 = vmatpush1.bf16.msra.mxu0 %v2922
        %2965 = vmatprep.subr.bf16.mxu0 0
        %2966 = vmatpush1.bf16.msra.mxu0 %v2923
        %2967 = vmatprep.subr.bf16.mxu0 0
        %2968 = vmatpush1.bf16.msra.mxu0 %v2924
        %2969 = vmatprep.subr.bf16.mxu0 0
        %2970 = vmatpush1.bf16.msra.mxu0 %v2925
        %2971 = vmatprep.subr.bf16.mxu0 0
        %2972 = vmatpush1.bf16.msra.mxu0 %v2926
        %2973 = vmatprep.subr.bf16.mxu0 0
        %2974 = vmatpush1.bf16.msra.mxu0 %v2927
        %2975 = vmatprep.subr.bf16.mxu0 0
        %2976 = vmatpush1.bf16.msra.mxu0 %v2928
        %2977 = vmatprep.mubr.bf16.mxu0 %v2816
        %2978 = vmatmul.mubr.bf16.gmra.mrb[0].mxu0 %v2815
        %v2979 = vpop.f32.mrb[0].mxu0
        %v2980 = vadd.f32 0.0, %v2979
        %v2981 = vpop.f32.mrb[0].mxu0
        %v2982 = vpop.f32.mrb[0].mxu0
        %v2983 = vpop.f32.mrb[0].mxu0
        %2984 = vdwg.mxu0
        %vm2985 = vcmask 1048200
        %2986 = vrot.lane.b32.xlu0 %v2980, 81
        %v2987 = vpop.permute.xlu0 %2986
        %v2988 = vsel %vm2985, %v2987, %v2980
        %2989 = vrot.lane.b32.xlu0 %v2988, 81
        %v2990 = vpop.permute.xlu0 %2989
        %v2991 = vsel %vm2985, %v2990, %v2980
        %2994 = vrot.lane.b32.xlu0 %v2991, 127
        %v2995 = vpop.permute.xlu0 %2994
        %2996 = vrot.lane.b32.xlu0 %v2990, 127
        %v2997 = vpop.permute.xlu0 %2996
        %v2998 = vsel %vm861, %v2995, %v2997
        %3001 = vrot.lane.b32.xlu0 %v2991, 126
        %v3002 = vpop.permute.xlu0 %3001
        %3003 = vrot.lane.b32.xlu0 %v2990, 126
        %v3004 = vpop.permute.xlu0 %3003
        %v3005 = vsel %vm921, %v3002, %v3004
        %3008 = vrot.lane.b32.xlu0 %v2991, 119
        %v3009 = vpop.permute.xlu0 %3008
        %3010 = vrot.lane.b32.xlu0 %v2990, 119
        %v3011 = vpop.permute.xlu0 %3010
        %vm3012 = vcmask 973824
        %v3013 = vsel %vm3012, %v3009, %v3011
        %3017 = vrot.lane.b32.xlu0 %v2980, 71
        %v3018 = vpop.permute.xlu0 %3017
        %3020 = vrot.lane.b32.xlu0 %v2991, 70
        %v3021 = vpop.permute.xlu0 %3020
        %3023 = vrot.lane.b32.xlu0 %v2991, 63
        %v3024 = vpop.permute.xlu0 %3023
        %3026 = vrot.lane.b32.xlu0 %v2991, 62
        %v3027 = vpop.permute.xlu0 %3026
        %3029 = vrot.lane.b32.xlu0 %v2991, 61
        %v3030 = vpop.permute.xlu0 %3029
        %v3032 = vpack.c.bf16 %v2998, %v2991
        %v3033 = vpack.c.bf16 %v2997, %v2990
        %v3034 = vpack.c.bf16 %v3013, %v3005
        %v3035 = vpack.c.bf16 %v3011, %v3004
        %v3036 = vpack.c.bf16 %v3021, %v3018
        %v3037 = vpack.c.bf16 %v3027, %v3024
        %v3038 = vpack.c.bf16 %v3030, %v3030
        %v3039 = vld [vmem:[#allocation10] sm:$0xf]
        %3047 = vrot.lane.b32.xlu0 %v3032, 57
        %v3048 = vpop.permute.xlu0 %3047
        %3049 = vrot.lane.b32.xlu0 %v3033, 57
        %v3050 = vpop.permute.xlu0 %3049
        %3051 = vrot.lane.b32.xlu0 %v3034, 57
        %v3052 = vpop.permute.xlu0 %3051
        %3053 = vrot.lane.b32.xlu0 %v3035, 57
        %v3054 = vpop.permute.xlu0 %3053
        %3055 = vrot.lane.b32.xlu0 %v3036, 57
        %v3056 = vpop.permute.xlu0 %3055
        %3057 = vrot.lane.b32.xlu0 %v3037, 57
        %v3058 = vpop.permute.xlu0 %3057
        %3059 = vrot.lane.b32.xlu0 %v3038, 57
        %v3060 = vpop.permute.xlu0 %3059
        %vm3061 = vcmask 465920
        %v3062 = vsel %vm3061, %v3048, %v3050
        %v3063 = vsel %vm3061, %v3052, %v3054
        %v3069 = vsel %vm1192, %v3039, 0
        %v3072 = vsel %vm2703, %v3060, 0
        %3074 = vmatprep.subr.bf16.mxu0 0
        %3075 = vmatpush1.bf16.msra.mxu0 %v3062
        %3076 = vmatprep.subr.bf16.mxu0 0
        %3077 = vmatpush1.bf16.msra.mxu0 %v3063
        %3078 = vmatprep.subr.bf16.mxu0 0
        %3079 = vmatpush1.bf16.msra.mxu0 %v3056
        %3080 = vmatprep.subr.bf16.mxu0 0
        %3081 = vmatpush1.bf16.msra.mxu0 %v3058
        %3082 = vmatprep.subr.bf16.mxu0 0
        %3083 = vmatpush1.bf16.msra.mxu0 %v3072
        %3084 = vmatprep.subr.bf16.mxu0 0
        %3085 = vmatpush1.bf16.msra.mxu0 0
        %3086 = vmatprep.subr.bf16.mxu0 0
        %3087 = vmatpush1.bf16.msra.mxu0 0
        %3088 = vmatprep.subr.bf16.mxu0 0
        %3089 = vmatpush1.bf16.msra.mxu0 0
        %3090 = vmatprep.subr.bf16.mxu0 0
        %3091 = vmatpush1.bf16.msra.mxu0 0
        %3092 = vmatprep.subr.bf16.mxu0 0
        %3093 = vmatpush1.bf16.msra.mxu0 0
        %3094 = vmatprep.subr.bf16.mxu0 0
        %3095 = vmatpush1.bf16.msra.mxu0 0
        %3096 = vmatprep.subr.bf16.mxu0 0
        %3097 = vmatpush1.bf16.msra.mxu0 0
        %3098 = vmatprep.subr.bf16.mxu0 0
        %3099 = vmatpush1.bf16.msra.mxu0 0
        %3100 = vmatprep.subr.bf16.mxu0 0
        %3101 = vmatpush1.bf16.msra.mxu0 0
        %3102 = vmatprep.subr.bf16.mxu0 0
        %3103 = vmatpush1.bf16.msra.mxu0 0
        %3104 = vmatprep.subr.bf16.mxu0 0
        %3105 = vmatpush1.bf16.msra.mxu0 0
        %3106 = vmatprep.mubr.bf16.mxu0 0
        %3107 = vmatmul.mubr.bf16.gmra.mrb[0].mxu0 %v3069
        %v3108 = vpop.f32.mrb[0].mxu0
        %v3109 = vadd.f32 0.0, %v3108
        %v3110 = vpop.f32.mrb[0].mxu0
        %v3111 = vpop.f32.mrb[0].mxu0
        %v3112 = vpop.f32.mrb[0].mxu0
        %3113 = vdwg.mxu0
        %v3114 = vld [vmem:[%s12] sm:$0xff]
        %3116 = vset.pattern.permute.xlu0 0
        %3117 = vperm.xlu0 %3116, %v3114
        %v3118 = vpop.permute.xlu0 %3117
        %v3120 = vmul.f32 %v3109, %v3118
        %v3121 = vld [vmem:[%s13] sm:$0xff]
        %3123 = vset.pattern.permute.xlu0 0
        %3124 = vperm.xlu0 %3123, %v3121
        %v3125 = vpop.permute.xlu0 %3124
        %v3127 = vadd.f32 %v3120, %v3125
        %v3128 = vmax.f32 %v3127, 0.0
        %v3129 = vld [vmem:[%s14] sm:$0x1]
        %v3131 = vlaneseq
        %v3132 = vshrl.u32 %v3131, 7
        %v3133 = vsub.s32 0, %v3132
        %v3134 = vrot.slane %v3129, %v3133
        %v3136 = vadd.f32 %v3128, %v3134
        %3137 = vrot.lane.b32.xlu0 %v3136, 81
        %v3138 = vpop.permute.xlu0 %3137
        %v3139 = vsel %vm2985, %v3138, %v3136
        %3140 = vrot.lane.b32.xlu0 %v3139, 81
        %v3141 = vpop.permute.xlu0 %3140
        %v3142 = vsel %vm2985, %v3141, %v3136
        %3144 = vrot.lane.b32.xlu0 %v3136, 72
        %v3145 = vpop.permute.xlu0 %3144
        %v3147 = vmax.f32 %v3142, %v3145
        %v3148 = vmax.f32 %v3141, %v3145
        %3150 = vrot.lane.b32.xlu0 %v3142, 63
        %v3151 = vpop.permute.xlu0 %3150
        %v3153 = vmax.f32 %v3147, %v3151
        %v3154 = vmax.f32 %v3148, %v3151
        %3157 = vrot.lane.b32.xlu0 %v3153, 56
        %v3158 = vpop.permute.xlu0 %3157
        %3159 = vrot.lane.b32.xlu0 %v3154, 56
        %v3160 = vpop.permute.xlu0 %3159
        %vm3161 = vcmask 457728
        %v3162 = vsel %vm3161, %v3158, %v3160
        %3164 = vrot.lane.b32.xlu0 %v3162, 81
        %v3165 = vpop.permute.xlu0 %3164
        %v3166 = vsel %vm2985, %v3165, %v3162
        %3167 = vrot.lane.b32.xlu0 %v3166, 81
        %v3168 = vpop.permute.xlu0 %3167
        %v3169 = vsel %vm2985, %v3168, %v3162
        %3170 = vrot.lane.b32.xlu0 %v3153, 8
        %v3171 = vpop.permute.xlu0 %3170
        %3172 = vrot.lane.b32.xlu0 %v3154, 8
        %v3173 = vpop.permute.xlu0 %3172
        %vm3174 = vcmask 64512
        %v3175 = vsel %vm3174, %v3171, %v3173
        %v3178 = vmax.f32 %v3169, %v3171
        %v3179 = vmax.f32 %v3168, %v3175
        %3181 = vrot.lane.b32.xlu0 %v3169, 79
        %v3182 = vpop.permute.xlu0 %3181
        %v3184 = vmax.f32 %v3178, %v3182
        %v3185 = vmax.f32 %v3179, %v3182
        %v3186 = vpack.c.bf16 %v3184, %v3184
        %v3187 = vpack.c.bf16 %v3185, %v3185
        %v3188 = vld [vmem:[%s15] sm:$0xff]
        %v3189 = vld [vmem:[%s15 + $0x8] sm:$0xff]
        %v3190 = vld [vmem:[%s15 + $0x10] sm:$0xff]
        %v3191 = vld [vmem:[%s15 + $0x18] sm:$0xff]
        %v3192 = vld [vmem:[%s15 + $0x20] sm:$0xff]
        %v3193 = vld [vmem:[%s15 + $0x28] sm:$0xff]
        %v3194 = vld [vmem:[%s15 + $0x30] sm:$0xff]
        %v3195 = vld [vmem:[%s15 + $0x38] sm:$0xff]
        %v3196 = vld [vmem:[%s15 + $0x40] sm:$0xff]
        %v3197 = vld [vmem:[%s15 + $0x48] sm:$0xff]
        %v3198 = vld [vmem:[%s15 + $0x50] sm:$0x11]
        %3201 = vrot.lane.b32.xlu0 %v3186, 48
        %v3202 = vpop.permute.xlu0 %3201
        %3203 = vrot.lane.b32.xlu0 %v3187, 48
        %v3204 = vpop.permute.xlu0 %3203
        %vm3205 = vcmask 392192
        %v3206 = vsel %vm3205, %v3202, %v3204
        %v3218 = vunpack.c.l.b16 %v3188
        %v3219 = vunpack.c.h.b16 %v3188
        %v3220 = vunpack.c.l.b16 %v3189
        %v3221 = vunpack.c.h.b16 %v3189
        %v3222 = vunpack.c.l.b16 %v3190
        %v3223 = vunpack.c.h.b16 %v3190
        %v3224 = vunpack.c.l.b16 %v3191
        %v3225 = vunpack.c.h.b16 %v3191
        %v3226 = vunpack.c.l.b16 %v3192
        %v3227 = vunpack.c.h.b16 %v3192
        %v3228 = vunpack.c.l.b16 %v3193
        %v3229 = vunpack.c.h.b16 %v3193
        %v3230 = vunpack.c.l.b16 %v3194
        %v3231 = vunpack.c.h.b16 %v3194
        %v3232 = vunpack.c.l.b16 %v3195
        %v3233 = vunpack.c.h.b16 %v3195
        %v3234 = vunpack.c.l.b16 %v3196
        %v3235 = vunpack.c.h.b16 %v3196
        %v3236 = vunpack.c.l.b16 %v3197
        %v3237 = vunpack.c.h.b16 %v3197
        %v3238 = vunpack.c.l.b16 %v3198
        %v3239 = vunpack.c.h.b16 %v3198
        %v3240 = vpack.c.b16 %v3220, %v3218
        %v3241 = vpack.c.b16 %v3221, %v3219
        %v3242 = vpack.c.b16 %v3224, %v3222
        %v3243 = vpack.c.b16 %v3225, %v3223
        %v3244 = vpack.c.b16 %v3228, %v3226
        %v3245 = vpack.c.b16 %v3229, %v3227
        %v3246 = vpack.c.b16 %v3232, %v3230
        %v3247 = vpack.c.b16 %v3233, %v3231
        %v3248 = vpack.c.b16 %v3236, %v3234
        %v3249 = vpack.c.b16 %v3237, %v3235
        %v3250 = vpack.c.b16 %v3238, %v3238
        %v3251 = vpack.c.b16 %v3239, %v3239
        %vm3262 = vcmask 662528
        %v3264 = vsel %vm3262, %v3206, 0
        %vm3266 = vcmask 1040384
        %v3267 = vsel 0, 4294967295, 65535
        %v3268 = vsel %vm3266, %v3267, 0
        %v3270 = vand.u32 %v3250, %v3268
        %v3273 = vand.u32 %v3251, %v3268
        %3275 = vmatprep.subr.bf16.mxu0 %v3241
        %3276 = vmatpush1.bf16.msra.mxu0 %v3240
        %3277 = vmatprep.subr.bf16.mxu0 %v3243
        %3278 = vmatpush1.bf16.msra.mxu0 %v3242
        %3279 = vmatprep.subr.bf16.mxu0 %v3245
        %3280 = vmatpush1.bf16.msra.mxu0 %v3244
        %3281 = vmatprep.subr.bf16.mxu0 %v3247
        %3282 = vmatpush1.bf16.msra.mxu0 %v3246
        %3283 = vmatprep.subr.bf16.mxu0 %v3249
        %3284 = vmatpush1.bf16.msra.mxu0 %v3248
        %3285 = vmatprep.subr.bf16.mxu0 %v3273
        %3286 = vmatpush1.bf16.msra.mxu0 %v3270
        %3287 = vmatprep.subr.bf16.mxu0 0
        %3288 = vmatpush1.bf16.msra.mxu0 0
        %3289 = vmatprep.subr.bf16.mxu0 0
        %3290 = vmatpush1.bf16.msra.mxu0 0
        %3291 = vmatprep.subr.bf16.mxu0 0
        %3292 = vmatpush1.bf16.msra.mxu0 0
        %3293 = vmatprep.subr.bf16.mxu0 0
        %3294 = vmatpush1.bf16.msra.mxu0 0
        %3295 = vmatprep.subr.bf16.mxu0 0
        %3296 = vmatpush1.bf16.msra.mxu0 0
        %3297 = vmatprep.subr.bf16.mxu0 0
        %3298 = vmatpush1.bf16.msra.mxu0 0
        %3299 = vmatprep.subr.bf16.mxu0 0
        %3300 = vmatpush1.bf16.msra.mxu0 0
        %3301 = vmatprep.subr.bf16.mxu0 0
        %3302 = vmatpush1.bf16.msra.mxu0 0
        %3303 = vmatprep.subr.bf16.mxu0 0
        %3304 = vmatpush1.bf16.msra.mxu0 0
        %3305 = vmatprep.subr.bf16.mxu0 0
        %3306 = vmatpush1.bf16.msra.mxu0 0
        %3307 = vmatprep.mubr.bf16.mxu0 0
        %3308 = vmatmul.mubr.bf16.gmra.mrb[0].mxu0 %v3264
        %v3309 = vpop.f32.mrb[0].mxu0
        %v3310 = vadd.f32 0.0, %v3309
        %v3311 = vpop.f32.mrb[0].mxu0
        %v3312 = vadd.f32 0.0, %v3311
        %v3313 = vpop.f32.mrb[0].mxu0
        %v3314 = vpop.f32.mrb[0].mxu0
        %3315 = vdwg.mxu0
        %v3316 = vld [vmem:[%s16] sm:$0xff]
        %v3317 = vld [vmem:[%s16 + $0x8] sm:$0xff]
        %v3318 = vmul.f32 %v3310, %v3316
        %v3319 = vmul.f32 %v3312, %v3317
        %v3320 = vrot.slane %v3318, 4
        %v3321 = vadd.f32 %v3318, %v3320
        %v3322 = vrot.slane %v3321, 2
        %v3323 = vadd.f32 %v3321, %v3322
        %v3324 = vrot.slane %v3323, 1
        %v3325 = vadd.f32 %v3323, %v3324
        %v3326 = vrot.slane %v3319, 4
        %v3327 = vadd.f32 %v3319, %v3326
        %v3328 = vrot.slane %v3327, 2
        %v3329 = vadd.f32 %v3327, %v3328
        %v3330 = vrot.slane %v3329, 1
        %v3331 = vadd.f32 %v3329, %v3330
        %v3332 = vld [vmem:[%s17] sm:$0xff]
        %v3333 = vld [vmem:[%s17 + $0x8] sm:$0xff]
        %v3334 = vld [vmem:[%s17 + $0x10] sm:$0xff]
        %v3335 = vld [vmem:[%s17 + $0x18] sm:$0xff]
        %v3336 = vld [vmem:[%s17 + $0x20] sm:$0xff]
        %v3337 = vld [vmem:[%s17 + $0x28] sm:$0xff]
        %v3338 = vld [vmem:[%s17 + $0x30] sm:$0xff]
        %v3339 = vld [vmem:[%s17 + $0x38] sm:$0xff]
        %v3340 = vld [vmem:[%s17 + $0x40] sm:$0xff]
        %v3341 = vld [vmem:[%s17 + $0x48] sm:$0xff]
        %v3342 = vld [vmem:[%s17 + $0x50] sm:$0xff]
        %v3343 = vld [vmem:[%s17 + $0x58] sm:$0xff]
        %v3344 = vld [vmem:[%s17 + $0x60] sm:$0xff]
        %v3345 = vld [vmem:[%s17 + $0x68] sm:$0xff]
        %v3346 = vld [vmem:[%s17 + $0x70] sm:$0xff]
        %v3347 = vld [vmem:[%s17 + $0x78] sm:$0xff]
        %v3348 = vld [vmem:[%s17 + $0x80] sm:$0xff]
        %v3349 = vld [vmem:[%s17 + $0x88] sm:$0xff]
        %v3350 = vld [vmem:[%s17 + $0x90] sm:$0xff]
        %v3351 = vld [vmem:[%s17 + $0x98] sm:$0xff]
        %v3352 = vld [vmem:[%s17 + $0xa0] sm:$0xff]
        %v3353 = vld [vmem:[%s17 + $0xa8] sm:$0xff]
        %v3354 = vld [vmem:[%s17 + $0xb0] sm:$0xff]
        %v3355 = vld [vmem:[%s17 + $0xb8] sm:$0xff]
        %v3356 = vld [vmem:[%s17 + $0xc0] sm:$0xff]
        %v3357 = vld [vmem:[%s17 + $0xc8] sm:$0xff]
        %v3358 = vld [vmem:[%s17 + $0xd0] sm:$0xff]
        %v3359 = vld [vmem:[%s17 + $0xd8] sm:$0xff]
        %v3360 = vld [vmem:[%s17 + $0xe0] sm:$0xff]
        %v3361 = vld [vmem:[%s17 + $0xe8] sm:$0xff]
        %v3362 = vld [vmem:[%s17 + $0xf0] sm:$0xff]
        %v3363 = vld [vmem:[%s17 + $0xf8] sm:$0xff]
        %v3364 = vld [vmem:[%s18] sm:$0x1]
        %3365 = vmatprep.subr.mxu0 0.0
        %3366 = vmatpush1.msra.mxu0 %v3332
        %3367 = vmatprep.subr.mxu0 0.0
        %3368 = vmatpush1.msra.mxu0 %v3333
        %3369 = vmatprep.subr.mxu0 0.0
        %3370 = vmatpush1.msra.mxu0 %v3334
        %3371 = vmatprep.subr.mxu0 0.0
        %3372 = vmatpush1.msra.mxu0 %v3335
        %3373 = vmatprep.subr.mxu0 0.0
        %3374 = vmatpush1.msra.mxu0 %v3336
        %3375 = vmatprep.subr.mxu0 0.0
        %3376 = vmatpush1.msra.mxu0 %v3337
        %3377 = vmatprep.subr.mxu0 0.0
        %3378 = vmatpush1.msra.mxu0 %v3338
        %3379 = vmatprep.subr.mxu0 0.0
        %3380 = vmatpush1.msra.mxu0 %v3339
        %3381 = vmatprep.subr.mxu0 0.0
        %3382 = vmatpush1.msra.mxu0 %v3340
        %3383 = vmatprep.subr.mxu0 0.0
        %3384 = vmatpush1.msra.mxu0 %v3341
        %3385 = vmatprep.subr.mxu0 0.0
        %3386 = vmatpush1.msra.mxu0 %v3342
        %3387 = vmatprep.subr.mxu0 0.0
        %3388 = vmatpush1.msra.mxu0 %v3343
        %3389 = vmatprep.subr.mxu0 0.0
        %3390 = vmatpush1.msra.mxu0 %v3344
        %3391 = vmatprep.subr.mxu0 0.0
        %3392 = vmatpush1.msra.mxu0 %v3345
        %3393 = vmatprep.subr.mxu0 0.0
        %3394 = vmatpush1.msra.mxu0 %v3346
        %3395 = vmatprep.subr.mxu0 0.0
        %3396 = vmatpush1.msra.mxu0 %v3347
        %3397 = vmatprep.subr.mxu0 0.0
        %3398 = vmatpush1.msra.mxu0 %v3348
        %3399 = vmatprep.subr.mxu0 0.0
        %3400 = vmatpush1.msra.mxu0 %v3349
        %3401 = vmatprep.subr.mxu0 0.0
        %3402 = vmatpush1.msra.mxu0 %v3350
        %3403 = vmatprep.subr.mxu0 0.0
        %3404 = vmatpush1.msra.mxu0 %v3351
        %3405 = vmatprep.subr.mxu0 0.0
        %3406 = vmatpush1.msra.mxu0 %v3352
        %3407 = vmatprep.subr.mxu0 0.0
        %3408 = vmatpush1.msra.mxu0 %v3353
        %3409 = vmatprep.subr.mxu0 0.0
        %3410 = vmatpush1.msra.mxu0 %v3354
        %3411 = vmatprep.subr.mxu0 0.0
        %3412 = vmatpush1.msra.mxu0 %v3355
        %3413 = vmatprep.subr.mxu0 0.0
        %3414 = vmatpush1.msra.mxu0 %v3356
        %3415 = vmatprep.subr.mxu0 0.0
        %3416 = vmatpush1.msra.mxu0 %v3357
        %3417 = vmatprep.subr.mxu0 0.0
        %3418 = vmatpush1.msra.mxu0 %v3358
        %3419 = vmatprep.subr.mxu0 0.0
        %3420 = vmatpush1.msra.mxu0 %v3359
        %3421 = vmatprep.subr.mxu0 0.0
        %3422 = vmatpush1.msra.mxu0 %v3360
        %3423 = vmatprep.subr.mxu0 0.0
        %3424 = vmatpush1.msra.mxu0 %v3361
        %3425 = vmatprep.subr.mxu0 0.0
        %3426 = vmatpush1.msra.mxu0 %v3362
        %3427 = vmatprep.subr.mxu0 0.0
        %3428 = vmatpush1.msra.mxu0 %v3363
        %3429 = vmatprep.mubr.f32.mxu0 %v3331
        %3430 = vmatmul.mubr.f32.gmra.mrb[0].mxu0 %v3325
        %v3431 = vpop.f32.mrb[0].mxu0
        %v3432 = vadd.f32 %v3364, %v3431
        %v3433 = vpop.f32.mrb[0].mxu0
        %3434 = vdwg.mxu0
        %v3435 = vmax.f32 %v3432, 0.0
        %v3436 = vld [vmem:[%s19] sm:$0xff]
        %v3437 = vld [vmem:[%s19 + $0x8] sm:$0xff]
        %v3438 = vld [vmem:[%s19 + $0x10] sm:$0xff]
        %v3439 = vld [vmem:[%s19 + $0x18] sm:$0xff]
        %v3440 = vld [vmem:[%s20] sm:$0x1]
        %vm3441 = vcmask 261120
        %v3443 = vsel %vm3441, %v3435, 0
        %3445 = vmatprep.subr.mxu0 0.0
        %3446 = vmatpush1.msra.mxu0 %v3436
        %3447 = vmatprep.subr.mxu0 0.0
        %3448 = vmatpush1.msra.mxu0 %v3437
        %3449 = vmatprep.subr.mxu0 0.0
        %3450 = vmatpush1.msra.mxu0 %v3438
        %3451 = vmatprep.subr.mxu0 0.0
        %3452 = vmatpush1.msra.mxu0 %v3439
        %3453 = vmatprep.subr.mxu0 0.0
        %3454 = vmatpush1.msra.mxu0 0.0
        %3455 = vmatprep.subr.mxu0 0.0
        %3456 = vmatpush1.msra.mxu0 0.0
        %3457 = vmatprep.subr.mxu0 0.0
        %3458 = vmatpush1.msra.mxu0 0.0
        %3459 = vmatprep.subr.mxu0 0.0
        %3460 = vmatpush1.msra.mxu0 0.0
        %3461 = vmatprep.subr.mxu0 0.0
        %3462 = vmatpush1.msra.mxu0 0.0
        %3463 = vmatprep.subr.mxu0 0.0
        %3464 = vmatpush1.msra.mxu0 0.0
        %3465 = vmatprep.subr.mxu0 0.0
        %3466 = vmatpush1.msra.mxu0 0.0
        %3467 = vmatprep.subr.mxu0 0.0
        %3468 = vmatpush1.msra.mxu0 0.0
        %3469 = vmatprep.subr.mxu0 0.0
        %3470 = vmatpush1.msra.mxu0 0.0
        %3471 = vmatprep.subr.mxu0 0.0
        %3472 = vmatpush1.msra.mxu0 0.0
        %3473 = vmatprep.subr.mxu0 0.0
        %3474 = vmatpush1.msra.mxu0 0.0
        %3475 = vmatprep.subr.mxu0 0.0
        %3476 = vmatpush1.msra.mxu0 0.0
        %3477 = vmatprep.subr.mxu0 0.0
        %3478 = vmatpush1.msra.mxu0 0.0
        %3479 = vmatprep.subr.mxu0 0.0
        %3480 = vmatpush1.msra.mxu0 0.0
        %3481 = vmatprep.subr.mxu0 0.0
        %3482 = vmatpush1.msra.mxu0 0.0
        %3483 = vmatprep.subr.mxu0 0.0
        %3484 = vmatpush1.msra.mxu0 0.0
        %3485 = vmatprep.subr.mxu0 0.0
        %3486 = vmatpush1.msra.mxu0 0.0
        %3487 = vmatprep.subr.mxu0 0.0
        %3488 = vmatpush1.msra.mxu0 0.0
        %3489 = vmatprep.subr.mxu0 0.0
        %3490 = vmatpush1.msra.mxu0 0.0
        %3491 = vmatprep.subr.mxu0 0.0
        %3492 = vmatpush1.msra.mxu0 0.0
        %3493 = vmatprep.subr.mxu0 0.0
        %3494 = vmatpush1.msra.mxu0 0.0
        %3495 = vmatprep.subr.mxu0 0.0
        %3496 = vmatpush1.msra.mxu0 0.0
        %3497 = vmatprep.subr.mxu0 0.0
        %3498 = vmatpush1.msra.mxu0 0.0
        %3499 = vmatprep.subr.mxu0 0.0
        %3500 = vmatpush1.msra.mxu0 0.0
        %3501 = vmatprep.subr.mxu0 0.0
        %3502 = vmatpush1.msra.mxu0 0.0
        %3503 = vmatprep.subr.mxu0 0.0
        %3504 = vmatpush1.msra.mxu0 0.0
        %3505 = vmatprep.subr.mxu0 0.0
        %3506 = vmatpush1.msra.mxu0 0.0
        %3507 = vmatprep.subr.mxu0 0.0
        %3508 = vmatpush1.msra.mxu0 0.0
        %3509 = vmatprep.mubr.f32.mxu0 0.0
        %3510 = vmatmul.mubr.f32.gmra.mrb[0].mxu0 %v3443
        %v3511 = vpop.f32.mrb[0].mxu0
        %v3512 = vadd.f32 %v3440, %v3511
        %v3513 = vpop.f32.mrb[0].mxu0
        %3514 = vdwg.mxu0
        %vm3515 = vcmask 73728
        %3516 = vst.msk [vmem:[%s709] sm:$0x1] %vm3515, %v3512
        %s3517 = sand.u32 %s492, 1
        %s3518 = scalar_lea.sflag [#allocation4], %s3517
        %s3519 = sand.u32 %s492, 1
        %s3520 = scalar_lea.vmem [#allocation11], %s3519
        // Predicated region
        $region125: #{lenet_forward.1} parent=103 // pred_check
          %p3521 = pneg %p502
        $region126: #{lenet_forward.1} parent=103 // pred_check_branch
          %3523 = sbr.rel (%p3521) target = $region128
        $region127: #{lenet_forward.1} parent=103 // pred_region
          %s3525 = ssub.s32 16, 16
          %3526 = vsyncadd %s3518, %s3525
          %s3527 = smul.addr %s38, 16
          %s3528 = scalar_lea.hbm %s21, %s3527
          %s3530 = sshll.u32 %s3520, 4
          %s3531 = int_to_ptr.vmem [resolvable:$true] %s3530
          %3533 = dma.vmem_to_hbm [thread:$0]  %s3531, 16, %s3528, %s3518
        $region128: #{lenet_forward.1} parent=103 // pred_fallthru
          _
      $region104: #{lenet_forward.1} parent=5 // pred_fallthru
        _
      %p3534 = scmp.le.s32.totalorder 2, %s33
      // Predicated region
      $region129: #{lenet_forward.1} parent=5 // pred_check
        %p3535 = pneg %p3534
      $region130: #{lenet_forward.1} parent=5 // pred_check_branch
        %3537 = sbr.rel (%p3535) target = $region132
      $region131: #{lenet_forward.1} parent=5 // pred_region
        %s3538 = ssub.s32 %s33, 2
        // Predicated region
        $region133: #{lenet_forward.1} parent=131 // pred_check
          %p3539 = pneg %p508
        $region134: #{lenet_forward.1} parent=131 // pred_check_branch
          %3541 = sbr.rel (%p3539) target = $region136
        $region135: #{lenet_forward.1} parent=131 // pred_region
          %s3542 = sand.u32 %s493, 1
          %s3543 = scalar_lea.sflag [#allocation4], %s3542
          %s3544 = sand.u32 %s493, 1
          %s3545 = scalar_lea.vmem [#allocation11], %s3544
          %3546 = dma.done %s3543, 16
        $region136: #{lenet_forward.1} parent=131 // pred_fallthru
          _
      $region132: #{lenet_forward.1} parent=5 // pred_fallthru
        _
    $region6: #{lenet_forward.1} parent=1 // loop_footer
      %s37 = sadd.s32 1, %s33
    $region7: #{lenet_forward.1} parent=1 // loop_footer_branch
      %32 = sbr.rel target = $region3
    $region8: #{lenet_forward.1} parent=1 // loop_exit
      _
    %3547 = vsyncpa [#allocation3], 1
    %s3548 = scalar_lea.sflag [#allocation3], 1
    %3549 = vsyncpa %s3548, 1
    %3550 = vsyncpa [#allocation6], 1
    %3551 = vsyncpa [#allocation9], 1
    %3552 = vsyncpa [#allocation4], 1
    %s3553 = scalar_lea.sflag [#allocation4], 1
    %3554 = vsyncpa %s3553, 1

</llo_original>
